<compile_context>
chip_gen: v7x
topology: tpu7x:2x2x1
jax: 0.10.0
libtpu: 0.0.40
codegen_flags: <defaults>
</compile_context>

<pallas_src>
import functools

import numpy as np
import jax
import jax.numpy as jnp
from jax.experimental import pallas as pl
from jax.experimental.pallas import tpu as pltpu


def _tap_kernel(x_ref, lbl_ref, out_ref, c_acc, cp_acc, np_acc, *, nq, scale, offset):
    """One (row-block, M-block) grid step.

    x_ref   : VMEM (tile_n, tile_m) scores in [min, max]
    lbl_ref : VMEM (tile_n, tile_m) labels in {0, 1}
    out_ref : VMEM (tile_n, 1)      per-row AP (written at last M step)
    c_acc   : VMEM scratch (tile_n, nq)  soft histogram of all scores
    cp_acc  : VMEM scratch (tile_n, nq)  soft histogram of positive scores
    np_acc  : VMEM scratch (tile_n, 1)   number of positives per row
    """
    m_idx = pl.program_id(1)

    @pl.when(m_idx == 0)
    def _init():
        c_acc[...] = jnp.zeros_like(c_acc)
        cp_acc[...] = jnp.zeros_like(cp_acc)
        np_acc[...] = jnp.zeros_like(np_acc)

    lbl = lbl_ref[...]                                  # (tile_n, tile_m)
    # Bin-space scores: one mul (+ optional add) per element for ALL bins.
    y = x_ref[...] * jnp.float32(scale)
    if offset != 0.0:
        y = y + jnp.float32(offset)

    np_acc[...] += jnp.sum(lbl, axis=-1, keepdims=True)

    one = jnp.float32(1.0)
    zero = jnp.float32(0.0)
    # Hat-function form of the Conv1d quantizer: bin k peaks at y == nq-1-k.
    #   interior: q_k = relu(1 - |y - (nq-1-k)|)
    #   k == 0   : q   = relu(min(y - (nq-2), 1))      (w1[0]=0, b1[0]=1)
    #   k == nq-1: q   = relu(min(1 - y, 1))           (w2[-1]=0, b2[-1]=1)
    for k in range(nq):
        if k == 0:
            q = jnp.maximum(jnp.minimum(y - jnp.float32(nq - 2), one), zero)
        elif k == nq - 1:
            q = jnp.maximum(jnp.minimum(one - y, one), zero)
        else:
            q = jnp.maximum(one - jnp.abs(y - jnp.float32(nq - 1 - k)), zero)
        # Narrow accumulator updates: cheap because tile_n is kept small by the
        # tile picker (column spans few vregs); vst/vld slots have slack here.
        c_acc[:, k:k + 1] += jnp.sum(q, axis=-1, keepdims=True)
        cp_acc[:, k:k + 1] += jnp.sum(q * lbl, axis=-1, keepdims=True)

    @pl.when(m_idx == pl.num_programs(1) - 1)
    def _finish():
        c = c_acc[...]        # (tile_n, nq)
        cp = cp_acc[...]      # (tile_n, nq)
        Np = np_acc[...]      # (tile_n, 1)
        eps = jnp.float32(1e-8)

        # Exact f32 running (exclusive/inclusive) cumsums over bins on the VPU,
        # folded directly into the per-bin AP terms (cold, once per row block).
        run_c = jnp.zeros_like(Np)
        run_cp = jnp.zeros_like(Np)
        ap = jnp.zeros_like(Np)
        for k in range(nq):
            ck = c[:, k:k + 1]
            cpk = cp[:, k:k + 1]
            C_1d = run_c                      # exclusive cumsum
            Cp_1d = run_cp
            run_c = C_1d + ck                 # inclusive cumsum
            run_cp = Cp_1d + cpk
            ratio = jnp.maximum(cpk - one, zero) / (jnp.maximum(ck - one, zero) + eps)
            ap += cpk * (ck * ratio
                         + (Cp_1d + one - ratio * (C_1d + one))
                         * jnp.log((run_c + one) / (C_1d + one))) / (ck + eps)
        # NaN if a row has zero positives -- matches the torch reference.
        out_ref[...] = ap / Np


def _vmem_capacity_bytes():
    try:
        return int(pltpu.get_tpu_info().vmem_capacity_bytes)
    except Exception:
        return 64 * 1024 * 1024   # conservative default (v7x per-core VMEM)


def _choose_tiles(N, M, vmem_cap):
    """Pick (tile_n, tile_m).

    Prefer: large tile_m (fewer accumulation rounds / grid steps), small tile_n
    (cheap per-bin accumulator updates + cross-lane reduces, and >=2 row blocks
    so the 'parallel' axis can shard across v7x's two TensorCores), while the
    two double-buffered f32 input blocks stay within ~1/3 of VMEM capacity.
    """
    budget = max(vmem_cap // 3, 8 * 1024 * 1024)
    tn_opts = [t for t in (8, 16, 32, 64, 128, 256) if N % t == 0]
    if not tn_opts:
        tn_opts = [N]                       # full dim is always a legal block
    two_blocks = [t for t in tn_opts if N // t >= 2]
    if two_blocks:
        tn_opts = two_blocks                # keep >=2 row blocks when possible
    tm_opts = sorted({t for t in (M, 16384, 8192, 4096, 2048, 1024, 512, 256, 128)
                      if t == M or (t < M and M % t == 0)}, reverse=True)
    target = 128 * 1024                     # elems/step/array (>=128 vregs of work)
    best = None
    for tm in tm_opts:
        for tn in tn_opts:
            if 2 * 2 * 4 * tn * tm > budget:     # 2 inputs x 2 buffers x 4 B
                continue
            score = (min(tn * tm, target), tm, -tn)
            if best is None or score > best[0]:
                best = (score, tn, tm)
    if best is None:
        # TODO(synk): huge prime-ish M that never fits the budget -- fall back to
        # the smallest legal tiles and let vmem_limit_bytes stretch.
        best = (None, min(tn_opts), min(tm_opts))
    return best[1], best[2]


def make_quantizer_params(nq=25, mn=0.0, mx=1.0):
    """Deterministic quantizer parameters, same formulas as APLoss.__init__.
    Only used by the numpy reference; the kernel bakes the equivalent constants."""
    gap = mx - mn
    a = (nq - 1) / gap
    w1 = np.full(nq, -a, dtype=np.float32)
    b1 = (a * mn + np.arange(nq, 0, -1)).astype(np.float32)
    w2 = np.full(nq, a, dtype=np.float32)
    b2 = (np.arange(2 - nq, 2) - a * mn).astype(np.float32)
    w1[0] = 0.0
    b1[0] = 1.0
    w2[-1] = 0.0
    b2[-1] = 1.0
    return np.stack([w1, b1, w2, b2], axis=0)            # (4, nq)


def tap_loss(x, label, nq=25, mn=0.0, mx=1.0, tile_n=None, tile_m=None):
    """TAPLoss.forward(x, label) with ret='1-mAP' (simplified=False, qw=None)."""
    assert x.shape == label.shape
    assert isinstance(nq, int) and 2 <= nq <= 100
    N, M = x.shape
    cap = _vmem_capacity_bytes()
    if tile_n is None or tile_m is None:
        auto_n, auto_m = _choose_tiles(N, M, cap)
        tile_n = auto_n if tile_n is None else tile_n
        tile_m = auto_m if tile_m is None else tile_m
    assert N % tile_n == 0 and M % tile_m == 0
    grid = (N // tile_n, M // tile_m)

    a = (nq - 1) / (mx - mn)
    kern = functools.partial(_tap_kernel, nq=nq,
                             scale=float(a), offset=float(-a * mn))

    # VMEM limit: cover the double-buffered inputs + headroom, capped well
    # below the chip's capacity (v7x: 64 MiB -> 48 MiB; v5e/v6e: 128 -> 96 MiB).
    need = 2 * 2 * 4 * tile_n * tile_m + (16 << 20)
    vmem_limit = int(min(max(need, 48 << 20), max(cap * 3 // 4, 48 << 20)))

    aps = pl.pallas_call(
        kern,
        out_shape=jax.ShapeDtypeStruct((N, 1), jnp.float32),
        grid_spec=pltpu.PrefetchScalarGridSpec(
            num_scalar_prefetch=0,
            grid=grid,
            in_specs=[
                pl.BlockSpec((tile_n, tile_m), lambda i, m: (i, m)),
                pl.BlockSpec((tile_n, tile_m), lambda i, m: (i, m)),
            ],
            out_specs=pl.BlockSpec((tile_n, 1), lambda i, m: (i, 0)),
            scratch_shapes=[
                pltpu.VMEM((tile_n, nq), jnp.float32),   # c accumulator
                pltpu.VMEM((tile_n, nq), jnp.float32),   # cp accumulator
                pltpu.VMEM((tile_n, 1), jnp.float32),    # Np accumulator
            ],
        ),
        compiler_params=pltpu.CompilerParams(
            dimension_semantics=("parallel", "arbitrary"),
            vmem_limit_bytes=vmem_limit,
        ),
    )(x.astype(jnp.float32), label.astype(jnp.float32))
    return 1.0 - jnp.mean(aps[:, 0])


def tap_loss_ref(x, label, params, nq):
    """Pure numpy reference mirroring the PyTorch TAPLoss.forward."""
    w1 = params[0][None, :, None]
    b1 = params[1][None, :, None]
    w2 = params[2][None, :, None]
    b2 = params[3][None, :, None]
    xe = x[:, None, :]
    q = np.maximum(np.minimum(w1 * xe + b1, w2 * xe + b2), 0.0)   # (N, nq, M)
    Np = label.sum(axis=-1, keepdims=True)
    c = q.sum(axis=-1)
    cp = (q * label[:, None, :]).sum(axis=-1)
    C = np.cumsum(c, axis=-1)
    Cp = np.cumsum(cp, axis=-1)
    z = np.zeros((x.shape[0], 1), dtype=np.float32)
    C_1d = np.concatenate([z, C[:, :-1]], axis=-1)
    Cp_1d = np.concatenate([z, Cp[:, :-1]], axis=-1)
    eps = 1e-8
    ratio = np.maximum(cp - 1, 0) / (np.maximum(c - 1, 0) + eps)
    aps = cp * (c * ratio + (Cp_1d + 1 - ratio * (C_1d + 1))
                * np.log((C + 1) / (C_1d + 1))) / (c + eps) / Np
    return 1.0 - aps.sum(axis=-1).mean()


if __name__ == "__main__":
    # Small shapes, chosen to exercise both grid axes (row blocks x M blocks).
    N, M, NQ = 16, 512, 25
    key = jax.random.PRNGKey(0)
    kx, kl = jax.random.split(key)
    x = jax.random.uniform(kx, (N, M), dtype=jnp.float32)               # in [0, 1]
    label = (jax.random.uniform(kl, (N, M)) < 0.3).astype(jnp.float32)  # {0, 1}

    params = make_quantizer_params(NQ, 0.0, 1.0)
    ref = tap_loss_ref(np.asarray(x), np.asarray(label), params, NQ)

    # Explicit tiles: grid (2, 2) -> tests the parallel row axis AND the
    # multi-step M accumulation path.
    loss1 = jax.block_until_ready(tap_loss(x, label, nq=NQ, tile_n=8, tile_m=256))
    # Auto tile selection path (tile_m == M here, single accumulation step).
    loss2 = jax.block_until_ready(tap_loss(x, label, nq=NQ))

    assert np.allclose(float(loss1), float(ref), rtol=1e-4, atol=1e-4), (
        float(loss1), float(ref))
    assert np.allclose(float(loss2), float(ref), rtol=1e-4, atol=1e-4), (
        float(loss2), float(ref))
    print("KERNEL_OK")
</pallas_src>

<mosaic_0001>
module attributes {stable_mosaic.version = 11 : i64} {
  func.func @_tap_kernel(%arg0: i32, %arg1: i32, %arg2: memref<8x256xf32, #tpu.memory_space<vmem>>, %arg3: memref<8x256xf32, #tpu.memory_space<vmem>>, %arg4: memref<8x1xf32, #tpu.memory_space<vmem>>, %arg5: memref<8x25xf32, #tpu.memory_space<vmem>>, %arg6: memref<8x25xf32, #tpu.memory_space<vmem>>, %arg7: memref<8x1xf32, #tpu.memory_space<vmem>>) attributes {dimension_semantics = [#tpu.dimension_semantics<parallel>, #tpu.dimension_semantics<arbitrary>], iteration_bounds = array<i64: 2, 2>, scalar_prefetch = 0 : i64, scratch_operands = 3 : i64, tpu.core_type = #tpu.core_type<tc>, window_params = [{transform_indices = @transform_0, window_bounds = array<i64: 8, 256>}, {transform_indices = @transform_1, window_bounds = array<i64: 8, 256>}, {transform_indices = @transform_2, window_bounds = array<i64: 8, 1>}]} {
    %c0_i32 = arith.constant 0 : i32
    %0 = arith.cmpi eq, %arg1, %c0_i32 : i32
    %1 = arith.extui %0 : i1 to i32
    %c0_i32_0 = arith.constant 0 : i32
    %2 = arith.cmpi ne, %1, %c0_i32_0 : i32
    scf.if %2 {
      %cst_313 = arith.constant 0.000000e+00 : f32
      %463 = vector.broadcast %cst_313 : f32 to vector<8x25xf32>
      %c0_314 = arith.constant 0 : index
      %c0_315 = arith.constant 0 : index
      %464 = vector.load %arg5[%c0_314, %c0_315] : memref<8x25xf32, #tpu.memory_space<vmem>>, vector<8x25xf32>
      tpu.vector_store %arg5[%c0_314, %c0_315], %463 {strides = array<i32>} : memref<8x25xf32, #tpu.memory_space<vmem>>, vector<8x25xf32>,
      %cst_316 = arith.constant 0.000000e+00 : f32
      %465 = vector.broadcast %cst_316 : f32 to vector<8x25xf32>
      %c0_317 = arith.constant 0 : index
      %c0_318 = arith.constant 0 : index
      %466 = vector.load %arg6[%c0_317, %c0_318] : memref<8x25xf32, #tpu.memory_space<vmem>>, vector<8x25xf32>
      tpu.vector_store %arg6[%c0_317, %c0_318], %465 {strides = array<i32>} : memref<8x25xf32, #tpu.memory_space<vmem>>, vector<8x25xf32>,
      %cst_319 = arith.constant 0.000000e+00 : f32
      %467 = vector.broadcast %cst_319 : f32 to vector<8x1xf32>
      %c0_320 = arith.constant 0 : index
      %c0_321 = arith.constant 0 : index
      %468 = vector.load %arg7[%c0_320, %c0_321] : memref<8x1xf32, #tpu.memory_space<vmem>>, vector<8x1xf32>
      tpu.vector_store %arg7[%c0_320, %c0_321], %467 {strides = array<i32>} : memref<8x1xf32, #tpu.memory_space<vmem>>, vector<8x1xf32>,
    } else {
    }
    %c0 = arith.constant 0 : index
    %c0_1 = arith.constant 0 : index
    %3 = vector.load %arg3[%c0, %c0_1] : memref<8x256xf32, #tpu.memory_space<vmem>>, vector<8x256xf32>
    %c0_2 = arith.constant 0 : index
    %c0_3 = arith.constant 0 : index
    %4 = vector.load %arg2[%c0_2, %c0_3] : memref<8x256xf32, #tpu.memory_space<vmem>>, vector<8x256xf32>
    %cst = arith.constant 2.400000e+01 : f32
    %5 = vector.broadcast %cst : f32 to vector<8x256xf32>
    %6 = arith.mulf %4, %5 : vector<8x256xf32>
    %c0_4 = arith.constant 0 : index
    %c0_5 = arith.constant 0 : index
    %7 = vector.load %arg7[%c0_4, %c0_5] : memref<8x1xf32, #tpu.memory_space<vmem>>, vector<8x1xf32>
    %cst_6 = arith.constant dense<0.000000e+00> : vector<8xf32>
    %8 = vector.multi_reduction <add>, %3, %cst_6 [1] : vector<8x256xf32> to vector<8xf32>
    %9 = vector.shape_cast %8 : vector<8xf32> to vector<8x1xf32>
    %10 = arith.addf %7, %9 : vector<8x1xf32>
    %c0_7 = arith.constant 0 : index
    %c0_8 = arith.constant 0 : index
    %11 = vector.load %arg7[%c0_7, %c0_8] : memref<8x1xf32, #tpu.memory_space<vmem>>, vector<8x1xf32>
    tpu.vector_store %arg7[%c0_7, %c0_8], %10 {strides = array<i32>} : memref<8x1xf32, #tpu.memory_space<vmem>>, vector<8x1xf32>,
    %cst_9 = arith.constant 2.300000e+01 : f32
    %12 = vector.broadcast %cst_9 : f32 to vector<8x256xf32>
    %13 = arith.subf %6, %12 : vector<8x256xf32>
    %cst_10 = arith.constant 1.000000e+00 : f32
    %14 = vector.broadcast %cst_10 : f32 to vector<8x256xf32>
    %15 = arith.minimumf %13, %14 : vector<8x256xf32>
    %cst_11 = arith.constant 0.000000e+00 : f32
    %16 = vector.broadcast %cst_11 : f32 to vector<8x256xf32>
    %17 = arith.maximumf %15, %16 : vector<8x256xf32>
    %c0_12 = arith.constant 0 : index
    %c0_13 = arith.constant 0 : index
    %18 = vector.load %arg5[%c0_12, %c0_13] : memref<8x25xf32, #tpu.memory_space<vmem>>, vector<8x1xf32>
    %cst_14 = arith.constant dense<0.000000e+00> : vector<8xf32>
    %19 = vector.multi_reduction <add>, %17, %cst_14 [1] : vector<8x256xf32> to vector<8xf32>
    %20 = vector.shape_cast %19 : vector<8xf32> to vector<8x1xf32>
    %21 = arith.addf %18, %20 : vector<8x1xf32>
    %c0_15 = arith.constant 0 : index
    %c0_16 = arith.constant 0 : index
    %22 = vector.load %arg5[%c0_15, %c0_16] : memref<8x25xf32, #tpu.memory_space<vmem>>, vector<8x1xf32>
    tpu.vector_store %arg5[%c0_15, %c0_16], %21 {strides = array<i32>} : memref<8x25xf32, #tpu.memory_space<vmem>>, vector<8x1xf32>,
    %c0_17 = arith.constant 0 : index
    %c0_18 = arith.constant 0 : index
    %23 = vector.load %arg6[%c0_17, %c0_18] : memref<8x25xf32, #tpu.memory_space<vmem>>, vector<8x1xf32>
    %24 = arith.mulf %17, %3 : vector<8x256xf32>
    %cst_19 = arith.constant dense<0.000000e+00> : vector<8xf32>
    %25 = vector.multi_reduction <add>, %24, %cst_19 [1] : vector<8x256xf32> to vector<8xf32>
    %26 = vector.shape_cast %25 : vector<8xf32> to vector<8x1xf32>
    %27 = arith.addf %23, %26 : vector<8x1xf32>
    %c0_20 = arith.constant 0 : index
    %c0_21 = arith.constant 0 : index
    %28 = vector.load %arg6[%c0_20, %c0_21] : memref<8x25xf32, #tpu.memory_space<vmem>>, vector<8x1xf32>
    tpu.vector_store %arg6[%c0_20, %c0_21], %27 {strides = array<i32>} : memref<8x25xf32, #tpu.memory_space<vmem>>, vector<8x1xf32>,
    %cst_22 = arith.constant 2.300000e+01 : f32
    %29 = vector.broadcast %cst_22 : f32 to vector<8x256xf32>
    %30 = arith.subf %6, %29 : vector<8x256xf32>
    %31 = math.absf %30 : vector<8x256xf32>
    %cst_23 = arith.constant 1.000000e+00 : f32
    %32 = vector.broadcast %cst_23 : f32 to vector<8x256xf32>
    %33 = arith.subf %32, %31 : vector<8x256xf32>
    %cst_24 = arith.constant 0.000000e+00 : f32
    %34 = vector.broadcast %cst_24 : f32 to vector<8x256xf32>
    %35 = arith.maximumf %33, %34 : vector<8x256xf32>
    %c0_25 = arith.constant 0 : index
    %c1 = arith.constant 1 : index
    %36 = vector.load %arg5[%c0_25, %c1] : memref<8x25xf32, #tpu.memory_space<vmem>>, vector<8x1xf32>
    %cst_26 = arith.constant dense<0.000000e+00> : vector<8xf32>
    %37 = vector.multi_reduction <add>, %35, %cst_26 [1] : vector<8x256xf32> to vector<8xf32>
    %38 = vector.shape_cast %37 : vector<8xf32> to vector<8x1xf32>
    %39 = arith.addf %36, %38 : vector<8x1xf32>
    %c0_27 = arith.constant 0 : index
    %c1_28 = arith.constant 1 : index
    %40 = vector.load %arg5[%c0_27, %c1_28] : memref<8x25xf32, #tpu.memory_space<vmem>>, vector<8x1xf32>
    tpu.vector_store %arg5[%c0_27, %c1_28], %39 {strides = array<i32>} : memref<8x25xf32, #tpu.memory_space<vmem>>, vector<8x1xf32>,
    %c0_29 = arith.constant 0 : index
    %c1_30 = arith.constant 1 : index
    %41 = vector.load %arg6[%c0_29, %c1_30] : memref<8x25xf32, #tpu.memory_space<vmem>>, vector<8x1xf32>
    %42 = arith.mulf %35, %3 : vector<8x256xf32>
    %cst_31 = arith.constant dense<0.000000e+00> : vector<8xf32>
    %43 = vector.multi_reduction <add>, %42, %cst_31 [1] : vector<8x256xf32> to vector<8xf32>
    %44 = vector.shape_cast %43 : vector<8xf32> to vector<8x1xf32>
    %45 = arith.addf %41, %44 : vector<8x1xf32>
    %c0_32 = arith.constant 0 : index
    %c1_33 = arith.constant 1 : index
    %46 = vector.load %arg6[%c0_32, %c1_33] : memref<8x25xf32, #tpu.memory_space<vmem>>, vector<8x1xf32>
    tpu.vector_store %arg6[%c0_32, %c1_33], %45 {strides = array<i32>} : memref<8x25xf32, #tpu.memory_space<vmem>>, vector<8x1xf32>,
    %cst_34 = arith.constant 2.200000e+01 : f32
    %47 = vector.broadcast %cst_34 : f32 to vector<8x256xf32>
    %48 = arith.subf %6, %47 : vector<8x256xf32>
    %49 = math.absf %48 : vector<8x256xf32>
    %cst_35 = arith.constant 1.000000e+00 : f32
    %50 = vector.broadcast %cst_35 : f32 to vector<8x256xf32>
    %51 = arith.subf %50, %49 : vector<8x256xf32>
    %cst_36 = arith.constant 0.000000e+00 : f32
    %52 = vector.broadcast %cst_36 : f32 to vector<8x256xf32>
    %53 = arith.maximumf %51, %52 : vector<8x256xf32>
    %c0_37 = arith.constant 0 : index
    %c2 = arith.constant 2 : index
    %54 = vector.load %arg5[%c0_37, %c2] : memref<8x25xf32, #tpu.memory_space<vmem>>, vector<8x1xf32>
    %cst_38 = arith.constant dense<0.000000e+00> : vector<8xf32>
    %55 = vector.multi_reduction <add>, %53, %cst_38 [1] : vector<8x256xf32> to vector<8xf32>
    %56 = vector.shape_cast %55 : vector<8xf32> to vector<8x1xf32>
    %57 = arith.addf %54, %56 : vector<8x1xf32>
    %c0_39 = arith.constant 0 : index
    %c2_40 = arith.constant 2 : index
    %58 = vector.load %arg5[%c0_39, %c2_40] : memref<8x25xf32, #tpu.memory_space<vmem>>, vector<8x1xf32>
    tpu.vector_store %arg5[%c0_39, %c2_40], %57 {strides = array<i32>} : memref<8x25xf32, #tpu.memory_space<vmem>>, vector<8x1xf32>,
    %c0_41 = arith.constant 0 : index
    %c2_42 = arith.constant 2 : index
    %59 = vector.load %arg6[%c0_41, %c2_42] : memref<8x25xf32, #tpu.memory_space<vmem>>, vector<8x1xf32>
    %60 = arith.mulf %53, %3 : vector<8x256xf32>
    %cst_43 = arith.constant dense<0.000000e+00> : vector<8xf32>
    %61 = vector.multi_reduction <add>, %60, %cst_43 [1] : vector<8x256xf32> to vector<8xf32>
    %62 = vector.shape_cast %61 : vector<8xf32> to vector<8x1xf32>
    %63 = arith.addf %59, %62 : vector<8x1xf32>
    %c0_44 = arith.constant 0 : index
    %c2_45 = arith.constant 2 : index
    %64 = vector.load %arg6[%c0_44, %c2_45] : memref<8x25xf32, #tpu.memory_space<vmem>>, vector<8x1xf32>
    tpu.vector_store %arg6[%c0_44, %c2_45], %63 {strides = array<i32>} : memref<8x25xf32, #tpu.memory_space<vmem>>, vector<8x1xf32>,
    %cst_46 = arith.constant 2.100000e+01 : f32
    %65 = vector.broadcast %cst_46 : f32 to vector<8x256xf32>
    %66 = arith.subf %6, %65 : vector<8x256xf32>
    %67 = math.absf %66 : vector<8x256xf32>
    %cst_47 = arith.constant 1.000000e+00 : f32
    %68 = vector.broadcast %cst_47 : f32 to vector<8x256xf32>
    %69 = arith.subf %68, %67 : vector<8x256xf32>
    %cst_48 = arith.constant 0.000000e+00 : f32
    %70 = vector.broadcast %cst_48 : f32 to vector<8x256xf32>
    %71 = arith.maximumf %69, %70 : vector<8x256xf32>
    %c0_49 = arith.constant 0 : index
    %c3 = arith.constant 3 : index
    %72 = vector.load %arg5[%c0_49, %c3] : memref<8x25xf32, #tpu.memory_space<vmem>>, vector<8x1xf32>
    %cst_50 = arith.constant dense<0.000000e+00> : vector<8xf32>
    %73 = vector.multi_reduction <add>, %71, %cst_50 [1] : vector<8x256xf32> to vector<8xf32>
    %74 = vector.shape_cast %73 : vector<8xf32> to vector<8x1xf32>
    %75 = arith.addf %72, %74 : vector<8x1xf32>
    %c0_51 = arith.constant 0 : index
    %c3_52 = arith.constant 3 : index
    %76 = vector.load %arg5[%c0_51, %c3_52] : memref<8x25xf32, #tpu.memory_space<vmem>>, vector<8x1xf32>
    tpu.vector_store %arg5[%c0_51, %c3_52], %75 {strides = array<i32>} : memref<8x25xf32, #tpu.memory_space<vmem>>, vector<8x1xf32>,
    %c0_53 = arith.constant 0 : index
    %c3_54 = arith.constant 3 : index
    %77 = vector.load %arg6[%c0_53, %c3_54] : memref<8x25xf32, #tpu.memory_space<vmem>>, vector<8x1xf32>
    %78 = arith.mulf %71, %3 : vector<8x256xf32>
    %cst_55 = arith.constant dense<0.000000e+00> : vector<8xf32>
    %79 = vector.multi_reduction <add>, %78, %cst_55 [1] : vector<8x256xf32> to vector<8xf32>
    %80 = vector.shape_cast %79 : vector<8xf32> to vector<8x1xf32>
    %81 = arith.addf %77, %80 : vector<8x1xf32>
    %c0_56 = arith.constant 0 : index
    %c3_57 = arith.constant 3 : index
    %82 = vector.load %arg6[%c0_56, %c3_57] : memref<8x25xf32, #tpu.memory_space<vmem>>, vector<8x1xf32>
    tpu.vector_store %arg6[%c0_56, %c3_57], %81 {strides = array<i32>} : memref<8x25xf32, #tpu.memory_space<vmem>>, vector<8x1xf32>,
    %cst_58 = arith.constant 2.000000e+01 : f32
    %83 = vector.broadcast %cst_58 : f32 to vector<8x256xf32>
    %84 = arith.subf %6, %83 : vector<8x256xf32>
    %85 = math.absf %84 : vector<8x256xf32>
    %cst_59 = arith.constant 1.000000e+00 : f32
    %86 = vector.broadcast %cst_59 : f32 to vector<8x256xf32>
    %87 = arith.subf %86, %85 : vector<8x256xf32>
    %cst_60 = arith.constant 0.000000e+00 : f32
    %88 = vector.broadcast %cst_60 : f32 to vector<8x256xf32>
    %89 = arith.maximumf %87, %88 : vector<8x256xf32>
    %c0_61 = arith.constant 0 : index
    %c4 = arith.constant 4 : index
    %90 = vector.load %arg5[%c0_61, %c4] : memref<8x25xf32, #tpu.memory_space<vmem>>, vector<8x1xf32>
    %cst_62 = arith.constant dense<0.000000e+00> : vector<8xf32>
    %91 = vector.multi_reduction <add>, %89, %cst_62 [1] : vector<8x256xf32> to vector<8xf32>
    %92 = vector.shape_cast %91 : vector<8xf32> to vector<8x1xf32>
    %93 = arith.addf %90, %92 : vector<8x1xf32>
    %c0_63 = arith.constant 0 : index
    %c4_64 = arith.constant 4 : index
    %94 = vector.load %arg5[%c0_63, %c4_64] : memref<8x25xf32, #tpu.memory_space<vmem>>, vector<8x1xf32>
    tpu.vector_store %arg5[%c0_63, %c4_64], %93 {strides = array<i32>} : memref<8x25xf32, #tpu.memory_space<vmem>>, vector<8x1xf32>,
    %c0_65 = arith.constant 0 : index
    %c4_66 = arith.constant 4 : index
    %95 = vector.load %arg6[%c0_65, %c4_66] : memref<8x25xf32, #tpu.memory_space<vmem>>, vector<8x1xf32>
    %96 = arith.mulf %89, %3 : vector<8x256xf32>
    %cst_67 = arith.constant dense<0.000000e+00> : vector<8xf32>
    %97 = vector.multi_reduction <add>, %96, %cst_67 [1] : vector<8x256xf32> to vector<8xf32>
    %98 = vector.shape_cast %97 : vector<8xf32> to vector<8x1xf32>
    %99 = arith.addf %95, %98 : vector<8x1xf32>
    %c0_68 = arith.constant 0 : index
    %c4_69 = arith.constant 4 : index
    %100 = vector.load %arg6[%c0_68, %c4_69] : memref<8x25xf32, #tpu.memory_space<vmem>>, vector<8x1xf32>
    tpu.vector_store %arg6[%c0_68, %c4_69], %99 {strides = array<i32>} : memref<8x25xf32, #tpu.memory_space<vmem>>, vector<8x1xf32>,
    %cst_70 = arith.constant 1.900000e+01 : f32
    %101 = vector.broadcast %cst_70 : f32 to vector<8x256xf32>
    %102 = arith.subf %6, %101 : vector<8x256xf32>
    %103 = math.absf %102 : vector<8x256xf32>
    %cst_71 = arith.constant 1.000000e+00 : f32
    %104 = vector.broadcast %cst_71 : f32 to vector<8x256xf32>
    %105 = arith.subf %104, %103 : vector<8x256xf32>
    %cst_72 = arith.constant 0.000000e+00 : f32
    %106 = vector.broadcast %cst_72 : f32 to vector<8x256xf32>
    %107 = arith.maximumf %105, %106 : vector<8x256xf32>
    %c0_73 = arith.constant 0 : index
    %c5 = arith.constant 5 : index
    %108 = vector.load %arg5[%c0_73, %c5] : memref<8x25xf32, #tpu.memory_space<vmem>>, vector<8x1xf32>
    %cst_74 = arith.constant dense<0.000000e+00> : vector<8xf32>
    %109 = vector.multi_reduction <add>, %107, %cst_74 [1] : vector<8x256xf32> to vector<8xf32>
    %110 = vector.shape_cast %109 : vector<8xf32> to vector<8x1xf32>
    %111 = arith.addf %108, %110 : vector<8x1xf32>
    %c0_75 = arith.constant 0 : index
    %c5_76 = arith.constant 5 : index
    %112 = vector.load %arg5[%c0_75, %c5_76] : memref<8x25xf32, #tpu.memory_space<vmem>>, vector<8x1xf32>
    tpu.vector_store %arg5[%c0_75, %c5_76], %111 {strides = array<i32>} : memref<8x25xf32, #tpu.memory_space<vmem>>, vector<8x1xf32>,
    %c0_77 = arith.constant 0 : index
    %c5_78 = arith.constant 5 : index
    %113 = vector.load %arg6[%c0_77, %c5_78] : memref<8x25xf32, #tpu.memory_space<vmem>>, vector<8x1xf32>
    %114 = arith.mulf %107, %3 : vector<8x256xf32>
    %cst_79 = arith.constant dense<0.000000e+00> : vector<8xf32>
    %115 = vector.multi_reduction <add>, %114, %cst_79 [1] : vector<8x256xf32> to vector<8xf32>
    %116 = vector.shape_cast %115 : vector<8xf32> to vector<8x1xf32>
    %117 = arith.addf %113, %116 : vector<8x1xf32>
    %c0_80 = arith.constant 0 : index
    %c5_81 = arith.constant 5 : index
    %118 = vector.load %arg6[%c0_80, %c5_81] : memref<8x25xf32, #tpu.memory_space<vmem>>, vector<8x1xf32>
    tpu.vector_store %arg6[%c0_80, %c5_81], %117 {strides = array<i32>} : memref<8x25xf32, #tpu.memory_space<vmem>>, vector<8x1xf32>,
    %cst_82 = arith.constant 1.800000e+01 : f32
    %119 = vector.broadcast %cst_82 : f32 to vector<8x256xf32>
    %120 = arith.subf %6, %119 : vector<8x256xf32>
    %121 = math.absf %120 : vector<8x256xf32>
    %cst_83 = arith.constant 1.000000e+00 : f32
    %122 = vector.broadcast %cst_83 : f32 to vector<8x256xf32>
    %123 = arith.subf %122, %121 : vector<8x256xf32>
    %cst_84 = arith.constant 0.000000e+00 : f32
    %124 = vector.broadcast %cst_84 : f32 to vector<8x256xf32>
    %125 = arith.maximumf %123, %124 : vector<8x256xf32>
    %c0_85 = arith.constant 0 : index
    %c6 = arith.constant 6 : index
    %126 = vector.load %arg5[%c0_85, %c6] : memref<8x25xf32, #tpu.memory_space<vmem>>, vector<8x1xf32>
    %cst_86 = arith.constant dense<0.000000e+00> : vector<8xf32>
    %127 = vector.multi_reduction <add>, %125, %cst_86 [1] : vector<8x256xf32> to vector<8xf32>
    %128 = vector.shape_cast %127 : vector<8xf32> to vector<8x1xf32>
    %129 = arith.addf %126, %128 : vector<8x1xf32>
    %c0_87 = arith.constant 0 : index
    %c6_88 = arith.constant 6 : index
    %130 = vector.load %arg5[%c0_87, %c6_88] : memref<8x25xf32, #tpu.memory_space<vmem>>, vector<8x1xf32>
    tpu.vector_store %arg5[%c0_87, %c6_88], %129 {strides = array<i32>} : memref<8x25xf32, #tpu.memory_space<vmem>>, vector<8x1xf32>,
    %c0_89 = arith.constant 0 : index
    %c6_90 = arith.constant 6 : index
    %131 = vector.load %arg6[%c0_89, %c6_90] : memref<8x25xf32, #tpu.memory_space<vmem>>, vector<8x1xf32>
    %132 = arith.mulf %125, %3 : vector<8x256xf32>
    %cst_91 = arith.constant dense<0.000000e+00> : vector<8xf32>
    %133 = vector.multi_reduction <add>, %132, %cst_91 [1] : vector<8x256xf32> to vector<8xf32>
    %134 = vector.shape_cast %133 : vector<8xf32> to vector<8x1xf32>
    %135 = arith.addf %131, %134 : vector<8x1xf32>
    %c0_92 = arith.constant 0 : index
    %c6_93 = arith.constant 6 : index
    %136 = vector.load %arg6[%c0_92, %c6_93] : memref<8x25xf32, #tpu.memory_space<vmem>>, vector<8x1xf32>
    tpu.vector_store %arg6[%c0_92, %c6_93], %135 {strides = array<i32>} : memref<8x25xf32, #tpu.memory_space<vmem>>, vector<8x1xf32>,
    %cst_94 = arith.constant 1.700000e+01 : f32
    %137 = vector.broadcast %cst_94 : f32 to vector<8x256xf32>
    %138 = arith.subf %6, %137 : vector<8x256xf32>
    %139 = math.absf %138 : vector<8x256xf32>
    %cst_95 = arith.constant 1.000000e+00 : f32
    %140 = vector.broadcast %cst_95 : f32 to vector<8x256xf32>
    %141 = arith.subf %140, %139 : vector<8x256xf32>
    %cst_96 = arith.constant 0.000000e+00 : f32
    %142 = vector.broadcast %cst_96 : f32 to vector<8x256xf32>
    %143 = arith.maximumf %141, %142 : vector<8x256xf32>
    %c0_97 = arith.constant 0 : index
    %c7 = arith.constant 7 : index
    %144 = vector.load %arg5[%c0_97, %c7] : memref<8x25xf32, #tpu.memory_space<vmem>>, vector<8x1xf32>
    %cst_98 = arith.constant dense<0.000000e+00> : vector<8xf32>
    %145 = vector.multi_reduction <add>, %143, %cst_98 [1] : vector<8x256xf32> to vector<8xf32>
    %146 = vector.shape_cast %145 : vector<8xf32> to vector<8x1xf32>
    %147 = arith.addf %144, %146 : vector<8x1xf32>
    %c0_99 = arith.constant 0 : index
    %c7_100 = arith.constant 7 : index
    %148 = vector.load %arg5[%c0_99, %c7_100] : memref<8x25xf32, #tpu.memory_space<vmem>>, vector<8x1xf32>
    tpu.vector_store %arg5[%c0_99, %c7_100], %147 {strides = array<i32>} : memref<8x25xf32, #tpu.memory_space<vmem>>, vector<8x1xf32>,
    %c0_101 = arith.constant 0 : index
    %c7_102 = arith.constant 7 : index
    %149 = vector.load %arg6[%c0_101, %c7_102] : memref<8x25xf32, #tpu.memory_space<vmem>>, vector<8x1xf32>
    %150 = arith.mulf %143, %3 : vector<8x256xf32>
    %cst_103 = arith.constant dense<0.000000e+00> : vector<8xf32>
    %151 = vector.multi_reduction <add>, %150, %cst_103 [1] : vector<8x256xf32> to vector<8xf32>
    %152 = vector.shape_cast %151 : vector<8xf32> to vector<8x1xf32>
    %153 = arith.addf %149, %152 : vector<8x1xf32>
    %c0_104 = arith.constant 0 : index
    %c7_105 = arith.constant 7 : index
    %154 = vector.load %arg6[%c0_104, %c7_105] : memref<8x25xf32, #tpu.memory_space<vmem>>, vector<8x1xf32>
    tpu.vector_store %arg6[%c0_104, %c7_105], %153 {strides = array<i32>} : memref<8x25xf32, #tpu.memory_space<vmem>>, vector<8x1xf32>,
    %cst_106 = arith.constant 1.600000e+01 : f32
    %155 = vector.broadcast %cst_106 : f32 to vector<8x256xf32>
    %156 = arith.subf %6, %155 : vector<8x256xf32>
    %157 = math.absf %156 : vector<8x256xf32>
    %cst_107 = arith.constant 1.000000e+00 : f32
    %158 = vector.broadcast %cst_107 : f32 to vector<8x256xf32>
    %159 = arith.subf %158, %157 : vector<8x256xf32>
    %cst_108 = arith.constant 0.000000e+00 : f32
    %160 = vector.broadcast %cst_108 : f32 to vector<8x256xf32>
    %161 = arith.maximumf %159, %160 : vector<8x256xf32>
    %c0_109 = arith.constant 0 : index
    %c8 = arith.constant 8 : index
    %162 = vector.load %arg5[%c0_109, %c8] : memref<8x25xf32, #tpu.memory_space<vmem>>, vector<8x1xf32>
    %cst_110 = arith.constant dense<0.000000e+00> : vector<8xf32>
    %163 = vector.multi_reduction <add>, %161, %cst_110 [1] : vector<8x256xf32> to vector<8xf32>
    %164 = vector.shape_cast %163 : vector<8xf32> to vector<8x1xf32>
    %165 = arith.addf %162, %164 : vector<8x1xf32>
    %c0_111 = arith.constant 0 : index
    %c8_112 = arith.constant 8 : index
    %166 = vector.load %arg5[%c0_111, %c8_112] : memref<8x25xf32, #tpu.memory_space<vmem>>, vector<8x1xf32>
    tpu.vector_store %arg5[%c0_111, %c8_112], %165 {strides = array<i32>} : memref<8x25xf32, #tpu.memory_space<vmem>>, vector<8x1xf32>,
    %c0_113 = arith.constant 0 : index
    %c8_114 = arith.constant 8 : index
    %167 = vector.load %arg6[%c0_113, %c8_114] : memref<8x25xf32, #tpu.memory_space<vmem>>, vector<8x1xf32>
    %168 = arith.mulf %161, %3 : vector<8x256xf32>
    %cst_115 = arith.constant dense<0.000000e+00> : vector<8xf32>
    %169 = vector.multi_reduction <add>, %168, %cst_115 [1] : vector<8x256xf32> to vector<8xf32>
    %170 = vector.shape_cast %169 : vector<8xf32> to vector<8x1xf32>
    %171 = arith.addf %167, %170 : vector<8x1xf32>
    %c0_116 = arith.constant 0 : index
    %c8_117 = arith.constant 8 : index
    %172 = vector.load %arg6[%c0_116, %c8_117] : memref<8x25xf32, #tpu.memory_space<vmem>>, vector<8x1xf32>
    tpu.vector_store %arg6[%c0_116, %c8_117], %171 {strides = array<i32>} : memref<8x25xf32, #tpu.memory_space<vmem>>, vector<8x1xf32>,
    %cst_118 = arith.constant 1.500000e+01 : f32
    %173 = vector.broadcast %cst_118 : f32 to vector<8x256xf32>
    %174 = arith.subf %6, %173 : vector<8x256xf32>
    %175 = math.absf %174 : vector<8x256xf32>
    %cst_119 = arith.constant 1.000000e+00 : f32
    %176 = vector.broadcast %cst_119 : f32 to vector<8x256xf32>
    %177 = arith.subf %176, %175 : vector<8x256xf32>
    %cst_120 = arith.constant 0.000000e+00 : f32
    %178 = vector.broadcast %cst_120 : f32 to vector<8x256xf32>
    %179 = arith.maximumf %177, %178 : vector<8x256xf32>
    %c0_121 = arith.constant 0 : index
    %c9 = arith.constant 9 : index
    %180 = vector.load %arg5[%c0_121, %c9] : memref<8x25xf32, #tpu.memory_space<vmem>>, vector<8x1xf32>
    %cst_122 = arith.constant dense<0.000000e+00> : vector<8xf32>
    %181 = vector.multi_reduction <add>, %179, %cst_122 [1] : vector<8x256xf32> to vector<8xf32>
    %182 = vector.shape_cast %181 : vector<8xf32> to vector<8x1xf32>
    %183 = arith.addf %180, %182 : vector<8x1xf32>
    %c0_123 = arith.constant 0 : index
    %c9_124 = arith.constant 9 : index
    %184 = vector.load %arg5[%c0_123, %c9_124] : memref<8x25xf32, #tpu.memory_space<vmem>>, vector<8x1xf32>
    tpu.vector_store %arg5[%c0_123, %c9_124], %183 {strides = array<i32>} : memref<8x25xf32, #tpu.memory_space<vmem>>, vector<8x1xf32>,
    %c0_125 = arith.constant 0 : index
    %c9_126 = arith.constant 9 : index
    %185 = vector.load %arg6[%c0_125, %c9_126] : memref<8x25xf32, #tpu.memory_space<vmem>>, vector<8x1xf32>
    %186 = arith.mulf %179, %3 : vector<8x256xf32>
    %cst_127 = arith.constant dense<0.000000e+00> : vector<8xf32>
    %187 = vector.multi_reduction <add>, %186, %cst_127 [1] : vector<8x256xf32> to vector<8xf32>
    %188 = vector.shape_cast %187 : vector<8xf32> to vector<8x1xf32>
    %189 = arith.addf %185, %188 : vector<8x1xf32>
    %c0_128 = arith.constant 0 : index
    %c9_129 = arith.constant 9 : index
    %190 = vector.load %arg6[%c0_128, %c9_129] : memref<8x25xf32, #tpu.memory_space<vmem>>, vector<8x1xf32>
    tpu.vector_store %arg6[%c0_128, %c9_129], %189 {strides = array<i32>} : memref<8x25xf32, #tpu.memory_space<vmem>>, vector<8x1xf32>,
    %cst_130 = arith.constant 1.400000e+01 : f32
    %191 = vector.broadcast %cst_130 : f32 to vector<8x256xf32>
    %192 = arith.subf %6, %191 : vector<8x256xf32>
    %193 = math.absf %192 : vector<8x256xf32>
    %cst_131 = arith.constant 1.000000e+00 : f32
    %194 = vector.broadcast %cst_131 : f32 to vector<8x256xf32>
    %195 = arith.subf %194, %193 : vector<8x256xf32>
    %cst_132 = arith.constant 0.000000e+00 : f32
    %196 = vector.broadcast %cst_132 : f32 to vector<8x256xf32>
    %197 = arith.maximumf %195, %196 : vector<8x256xf32>
    %c0_133 = arith.constant 0 : index
    %c10 = arith.constant 10 : index
    %198 = vector.load %arg5[%c0_133, %c10] : memref<8x25xf32, #tpu.memory_space<vmem>>, vector<8x1xf32>
    %cst_134 = arith.constant dense<0.000000e+00> : vector<8xf32>
    %199 = vector.multi_reduction <add>, %197, %cst_134 [1] : vector<8x256xf32> to vector<8xf32>
    %200 = vector.shape_cast %199 : vector<8xf32> to vector<8x1xf32>
    %201 = arith.addf %198, %200 : vector<8x1xf32>
    %c0_135 = arith.constant 0 : index
    %c10_136 = arith.constant 10 : index
    %202 = vector.load %arg5[%c0_135, %c10_136] : memref<8x25xf32, #tpu.memory_space<vmem>>, vector<8x1xf32>
    tpu.vector_store %arg5[%c0_135, %c10_136], %201 {strides = array<i32>} : memref<8x25xf32, #tpu.memory_space<vmem>>, vector<8x1xf32>,
    %c0_137 = arith.constant 0 : index
    %c10_138 = arith.constant 10 : index
    %203 = vector.load %arg6[%c0_137, %c10_138] : memref<8x25xf32, #tpu.memory_space<vmem>>, vector<8x1xf32>
    %204 = arith.mulf %197, %3 : vector<8x256xf32>
    %cst_139 = arith.constant dense<0.000000e+00> : vector<8xf32>
    %205 = vector.multi_reduction <add>, %204, %cst_139 [1] : vector<8x256xf32> to vector<8xf32>
    %206 = vector.shape_cast %205 : vector<8xf32> to vector<8x1xf32>
    %207 = arith.addf %203, %206 : vector<8x1xf32>
    %c0_140 = arith.constant 0 : index
    %c10_141 = arith.constant 10 : index
    %208 = vector.load %arg6[%c0_140, %c10_141] : memref<8x25xf32, #tpu.memory_space<vmem>>, vector<8x1xf32>
    tpu.vector_store %arg6[%c0_140, %c10_141], %207 {strides = array<i32>} : memref<8x25xf32, #tpu.memory_space<vmem>>, vector<8x1xf32>,
    %cst_142 = arith.constant 1.300000e+01 : f32
    %209 = vector.broadcast %cst_142 : f32 to vector<8x256xf32>
    %210 = arith.subf %6, %209 : vector<8x256xf32>
    %211 = math.absf %210 : vector<8x256xf32>
    %cst_143 = arith.constant 1.000000e+00 : f32
    %212 = vector.broadcast %cst_143 : f32 to vector<8x256xf32>
    %213 = arith.subf %212, %211 : vector<8x256xf32>
    %cst_144 = arith.constant 0.000000e+00 : f32
    %214 = vector.broadcast %cst_144 : f32 to vector<8x256xf32>
    %215 = arith.maximumf %213, %214 : vector<8x256xf32>
    %c0_145 = arith.constant 0 : index
    %c11 = arith.constant 11 : index
    %216 = vector.load %arg5[%c0_145, %c11] : memref<8x25xf32, #tpu.memory_space<vmem>>, vector<8x1xf32>
    %cst_146 = arith.constant dense<0.000000e+00> : vector<8xf32>
    %217 = vector.multi_reduction <add>, %215, %cst_146 [1] : vector<8x256xf32> to vector<8xf32>
    %218 = vector.shape_cast %217 : vector<8xf32> to vector<8x1xf32>
    %219 = arith.addf %216, %218 : vector<8x1xf32>
    %c0_147 = arith.constant 0 : index
    %c11_148 = arith.constant 11 : index
    %220 = vector.load %arg5[%c0_147, %c11_148] : memref<8x25xf32, #tpu.memory_space<vmem>>, vector<8x1xf32>
    tpu.vector_store %arg5[%c0_147, %c11_148], %219 {strides = array<i32>} : memref<8x25xf32, #tpu.memory_space<vmem>>, vector<8x1xf32>,
    %c0_149 = arith.constant 0 : index
    %c11_150 = arith.constant 11 : index
    %221 = vector.load %arg6[%c0_149, %c11_150] : memref<8x25xf32, #tpu.memory_space<vmem>>, vector<8x1xf32>
    %222 = arith.mulf %215, %3 : vector<8x256xf32>
    %cst_151 = arith.constant dense<0.000000e+00> : vector<8xf32>
    %223 = vector.multi_reduction <add>, %222, %cst_151 [1] : vector<8x256xf32> to vector<8xf32>
    %224 = vector.shape_cast %223 : vector<8xf32> to vector<8x1xf32>
    %225 = arith.addf %221, %224 : vector<8x1xf32>
    %c0_152 = arith.constant 0 : index
    %c11_153 = arith.constant 11 : index
    %226 = vector.load %arg6[%c0_152, %c11_153] : memref<8x25xf32, #tpu.memory_space<vmem>>, vector<8x1xf32>
    tpu.vector_store %arg6[%c0_152, %c11_153], %225 {strides = array<i32>} : memref<8x25xf32, #tpu.memory_space<vmem>>, vector<8x1xf32>,
    %cst_154 = arith.constant 1.200000e+01 : f32
    %227 = vector.broadcast %cst_154 : f32 to vector<8x256xf32>
    %228 = arith.subf %6, %227 : vector<8x256xf32>
    %229 = math.absf %228 : vector<8x256xf32>
    %cst_155 = arith.constant 1.000000e+00 : f32
    %230 = vector.broadcast %cst_155 : f32 to vector<8x256xf32>
    %231 = arith.subf %230, %229 : vector<8x256xf32>
    %cst_156 = arith.constant 0.000000e+00 : f32
    %232 = vector.broadcast %cst_156 : f32 to vector<8x256xf32>
    %233 = arith.maximumf %231, %232 : vector<8x256xf32>
    %c0_157 = arith.constant 0 : index
    %c12 = arith.constant 12 : index
    %234 = vector.load %arg5[%c0_157, %c12] : memref<8x25xf32, #tpu.memory_space<vmem>>, vector<8x1xf32>
    %cst_158 = arith.constant dense<0.000000e+00> : vector<8xf32>
    %235 = vector.multi_reduction <add>, %233, %cst_158 [1] : vector<8x256xf32> to vector<8xf32>
    %236 = vector.shape_cast %235 : vector<8xf32> to vector<8x1xf32>
    %237 = arith.addf %234, %236 : vector<8x1xf32>
    %c0_159 = arith.constant 0 : index
    %c12_160 = arith.constant 12 : index
    %238 = vector.load %arg5[%c0_159, %c12_160] : memref<8x25xf32, #tpu.memory_space<vmem>>, vector<8x1xf32>
    tpu.vector_store %arg5[%c0_159, %c12_160], %237 {strides = array<i32>} : memref<8x25xf32, #tpu.memory_space<vmem>>, vector<8x1xf32>,
    %c0_161 = arith.constant 0 : index
    %c12_162 = arith.constant 12 : index
    %239 = vector.load %arg6[%c0_161, %c12_162] : memref<8x25xf32, #tpu.memory_space<vmem>>, vector<8x1xf32>
    %240 = arith.mulf %233, %3 : vector<8x256xf32>
    %cst_163 = arith.constant dense<0.000000e+00> : vector<8xf32>
    %241 = vector.multi_reduction <add>, %240, %cst_163 [1] : vector<8x256xf32> to vector<8xf32>
    %242 = vector.shape_cast %241 : vector<8xf32> to vector<8x1xf32>
    %243 = arith.addf %239, %242 : vector<8x1xf32>
    %c0_164 = arith.constant 0 : index
    %c12_165 = arith.constant 12 : index
    %244 = vector.load %arg6[%c0_164, %c12_165] : memref<8x25xf32, #tpu.memory_space<vmem>>, vector<8x1xf32>
    tpu.vector_store %arg6[%c0_164, %c12_165], %243 {strides = array<i32>} : memref<8x25xf32, #tpu.memory_space<vmem>>, vector<8x1xf32>,
    %cst_166 = arith.constant 1.100000e+01 : f32
    %245 = vector.broadcast %cst_166 : f32 to vector<8x256xf32>
    %246 = arith.subf %6, %245 : vector<8x256xf32>
    %247 = math.absf %246 : vector<8x256xf32>
    %cst_167 = arith.constant 1.000000e+00 : f32
    %248 = vector.broadcast %cst_167 : f32 to vector<8x256xf32>
    %249 = arith.subf %248, %247 : vector<8x256xf32>
    %cst_168 = arith.constant 0.000000e+00 : f32
    %250 = vector.broadcast %cst_168 : f32 to vector<8x256xf32>
    %251 = arith.maximumf %249, %250 : vector<8x256xf32>
    %c0_169 = arith.constant 0 : index
    %c13 = arith.constant 13 : index
    %252 = vector.load %arg5[%c0_169, %c13] : memref<8x25xf32, #tpu.memory_space<vmem>>, vector<8x1xf32>
    %cst_170 = arith.constant dense<0.000000e+00> : vector<8xf32>
    %253 = vector.multi_reduction <add>, %251, %cst_170 [1] : vector<8x256xf32> to vector<8xf32>
    %254 = vector.shape_cast %253 : vector<8xf32> to vector<8x1xf32>
    %255 = arith.addf %252, %254 : vector<8x1xf32>
    %c0_171 = arith.constant 0 : index
    %c13_172 = arith.constant 13 : index
    %256 = vector.load %arg5[%c0_171, %c13_172] : memref<8x25xf32, #tpu.memory_space<vmem>>, vector<8x1xf32>
    tpu.vector_store %arg5[%c0_171, %c13_172], %255 {strides = array<i32>} : memref<8x25xf32, #tpu.memory_space<vmem>>, vector<8x1xf32>,
    %c0_173 = arith.constant 0 : index
    %c13_174 = arith.constant 13 : index
    %257 = vector.load %arg6[%c0_173, %c13_174] : memref<8x25xf32, #tpu.memory_space<vmem>>, vector<8x1xf32>
    %258 = arith.mulf %251, %3 : vector<8x256xf32>
    %cst_175 = arith.constant dense<0.000000e+00> : vector<8xf32>
    %259 = vector.multi_reduction <add>, %258, %cst_175 [1] : vector<8x256xf32> to vector<8xf32>
    %260 = vector.shape_cast %259 : vector<8xf32> to vector<8x1xf32>
    %261 = arith.addf %257, %260 : vector<8x1xf32>
    %c0_176 = arith.constant 0 : index
    %c13_177 = arith.constant 13 : index
    %262 = vector.load %arg6[%c0_176, %c13_177] : memref<8x25xf32, #tpu.memory_space<vmem>>, vector<8x1xf32>
    tpu.vector_store %arg6[%c0_176, %c13_177], %261 {strides = array<i32>} : memref<8x25xf32, #tpu.memory_space<vmem>>, vector<8x1xf32>,
    %cst_178 = arith.constant 1.000000e+01 : f32
    %263 = vector.broadcast %cst_178 : f32 to vector<8x256xf32>
    %264 = arith.subf %6, %263 : vector<8x256xf32>
    %265 = math.absf %264 : vector<8x256xf32>
    %cst_179 = arith.constant 1.000000e+00 : f32
    %266 = vector.broadcast %cst_179 : f32 to vector<8x256xf32>
    %267 = arith.subf %266, %265 : vector<8x256xf32>
    %cst_180 = arith.constant 0.000000e+00 : f32
    %268 = vector.broadcast %cst_180 : f32 to vector<8x256xf32>
    %269 = arith.maximumf %267, %268 : vector<8x256xf32>
    %c0_181 = arith.constant 0 : index
    %c14 = arith.constant 14 : index
    %270 = vector.load %arg5[%c0_181, %c14] : memref<8x25xf32, #tpu.memory_space<vmem>>, vector<8x1xf32>
    %cst_182 = arith.constant dense<0.000000e+00> : vector<8xf32>
    %271 = vector.multi_reduction <add>, %269, %cst_182 [1] : vector<8x256xf32> to vector<8xf32>
    %272 = vector.shape_cast %271 : vector<8xf32> to vector<8x1xf32>
    %273 = arith.addf %270, %272 : vector<8x1xf32>
    %c0_183 = arith.constant 0 : index
    %c14_184 = arith.constant 14 : index
    %274 = vector.load %arg5[%c0_183, %c14_184] : memref<8x25xf32, #tpu.memory_space<vmem>>, vector<8x1xf32>
    tpu.vector_store %arg5[%c0_183, %c14_184], %273 {strides = array<i32>} : memref<8x25xf32, #tpu.memory_space<vmem>>, vector<8x1xf32>,
    %c0_185 = arith.constant 0 : index
    %c14_186 = arith.constant 14 : index
    %275 = vector.load %arg6[%c0_185, %c14_186] : memref<8x25xf32, #tpu.memory_space<vmem>>, vector<8x1xf32>
    %276 = arith.mulf %269, %3 : vector<8x256xf32>
    %cst_187 = arith.constant dense<0.000000e+00> : vector<8xf32>
    %277 = vector.multi_reduction <add>, %276, %cst_187 [1] : vector<8x256xf32> to vector<8xf32>
    %278 = vector.shape_cast %277 : vector<8xf32> to vector<8x1xf32>
    %279 = arith.addf %275, %278 : vector<8x1xf32>
    %c0_188 = arith.constant 0 : index
    %c14_189 = arith.constant 14 : index
    %280 = vector.load %arg6[%c0_188, %c14_189] : memref<8x25xf32, #tpu.memory_space<vmem>>, vector<8x1xf32>
    tpu.vector_store %arg6[%c0_188, %c14_189], %279 {strides = array<i32>} : memref<8x25xf32, #tpu.memory_space<vmem>>, vector<8x1xf32>,
    %cst_190 = arith.constant 9.000000e+00 : f32
    %281 = vector.broadcast %cst_190 : f32 to vector<8x256xf32>
    %282 = arith.subf %6, %281 : vector<8x256xf32>
    %283 = math.absf %282 : vector<8x256xf32>
    %cst_191 = arith.constant 1.000000e+00 : f32
    %284 = vector.broadcast %cst_191 : f32 to vector<8x256xf32>
    %285 = arith.subf %284, %283 : vector<8x256xf32>
    %cst_192 = arith.constant 0.000000e+00 : f32
    %286 = vector.broadcast %cst_192 : f32 to vector<8x256xf32>
    %287 = arith.maximumf %285, %286 : vector<8x256xf32>
    %c0_193 = arith.constant 0 : index
    %c15 = arith.constant 15 : index
    %288 = vector.load %arg5[%c0_193, %c15] : memref<8x25xf32, #tpu.memory_space<vmem>>, vector<8x1xf32>
    %cst_194 = arith.constant dense<0.000000e+00> : vector<8xf32>
    %289 = vector.multi_reduction <add>, %287, %cst_194 [1] : vector<8x256xf32> to vector<8xf32>
    %290 = vector.shape_cast %289 : vector<8xf32> to vector<8x1xf32>
    %291 = arith.addf %288, %290 : vector<8x1xf32>
    %c0_195 = arith.constant 0 : index
    %c15_196 = arith.constant 15 : index
    %292 = vector.load %arg5[%c0_195, %c15_196] : memref<8x25xf32, #tpu.memory_space<vmem>>, vector<8x1xf32>
    tpu.vector_store %arg5[%c0_195, %c15_196], %291 {strides = array<i32>} : memref<8x25xf32, #tpu.memory_space<vmem>>, vector<8x1xf32>,
    %c0_197 = arith.constant 0 : index
    %c15_198 = arith.constant 15 : index
    %293 = vector.load %arg6[%c0_197, %c15_198] : memref<8x25xf32, #tpu.memory_space<vmem>>, vector<8x1xf32>
    %294 = arith.mulf %287, %3 : vector<8x256xf32>
    %cst_199 = arith.constant dense<0.000000e+00> : vector<8xf32>
    %295 = vector.multi_reduction <add>, %294, %cst_199 [1] : vector<8x256xf32> to vector<8xf32>
    %296 = vector.shape_cast %295 : vector<8xf32> to vector<8x1xf32>
    %297 = arith.addf %293, %296 : vector<8x1xf32>
    %c0_200 = arith.constant 0 : index
    %c15_201 = arith.constant 15 : index
    %298 = vector.load %arg6[%c0_200, %c15_201] : memref<8x25xf32, #tpu.memory_space<vmem>>, vector<8x1xf32>
    tpu.vector_store %arg6[%c0_200, %c15_201], %297 {strides = array<i32>} : memref<8x25xf32, #tpu.memory_space<vmem>>, vector<8x1xf32>,
    %cst_202 = arith.constant 8.000000e+00 : f32
    %299 = vector.broadcast %cst_202 : f32 to vector<8x256xf32>
    %300 = arith.subf %6, %299 : vector<8x256xf32>
    %301 = math.absf %300 : vector<8x256xf32>
    %cst_203 = arith.constant 1.000000e+00 : f32
    %302 = vector.broadcast %cst_203 : f32 to vector<8x256xf32>
    %303 = arith.subf %302, %301 : vector<8x256xf32>
    %cst_204 = arith.constant 0.000000e+00 : f32
    %304 = vector.broadcast %cst_204 : f32 to vector<8x256xf32>
    %305 = arith.maximumf %303, %304 : vector<8x256xf32>
    %c0_205 = arith.constant 0 : index
    %c16 = arith.constant 16 : index
    %306 = vector.load %arg5[%c0_205, %c16] : memref<8x25xf32, #tpu.memory_space<vmem>>, vector<8x1xf32>
    %cst_206 = arith.constant dense<0.000000e+00> : vector<8xf32>
    %307 = vector.multi_reduction <add>, %305, %cst_206 [1] : vector<8x256xf32> to vector<8xf32>
    %308 = vector.shape_cast %307 : vector<8xf32> to vector<8x1xf32>
    %309 = arith.addf %306, %308 : vector<8x1xf32>
    %c0_207 = arith.constant 0 : index
    %c16_208 = arith.constant 16 : index
    %310 = vector.load %arg5[%c0_207, %c16_208] : memref<8x25xf32, #tpu.memory_space<vmem>>, vector<8x1xf32>
    tpu.vector_store %arg5[%c0_207, %c16_208], %309 {strides = array<i32>} : memref<8x25xf32, #tpu.memory_space<vmem>>, vector<8x1xf32>,
    %c0_209 = arith.constant 0 : index
    %c16_210 = arith.constant 16 : index
    %311 = vector.load %arg6[%c0_209, %c16_210] : memref<8x25xf32, #tpu.memory_space<vmem>>, vector<8x1xf32>
    %312 = arith.mulf %305, %3 : vector<8x256xf32>
    %cst_211 = arith.constant dense<0.000000e+00> : vector<8xf32>
    %313 = vector.multi_reduction <add>, %312, %cst_211 [1] : vector<8x256xf32> to vector<8xf32>
    %314 = vector.shape_cast %313 : vector<8xf32> to vector<8x1xf32>
    %315 = arith.addf %311, %314 : vector<8x1xf32>
    %c0_212 = arith.constant 0 : index
    %c16_213 = arith.constant 16 : index
    %316 = vector.load %arg6[%c0_212, %c16_213] : memref<8x25xf32, #tpu.memory_space<vmem>>, vector<8x1xf32>
    tpu.vector_store %arg6[%c0_212, %c16_213], %315 {strides = array<i32>} : memref<8x25xf32, #tpu.memory_space<vmem>>, vector<8x1xf32>,
    %cst_214 = arith.constant 7.000000e+00 : f32
    %317 = vector.broadcast %cst_214 : f32 to vector<8x256xf32>
    %318 = arith.subf %6, %317 : vector<8x256xf32>
    %319 = math.absf %318 : vector<8x256xf32>
    %cst_215 = arith.constant 1.000000e+00 : f32
    %320 = vector.broadcast %cst_215 : f32 to vector<8x256xf32>
    %321 = arith.subf %320, %319 : vector<8x256xf32>
    %cst_216 = arith.constant 0.000000e+00 : f32
    %322 = vector.broadcast %cst_216 : f32 to vector<8x256xf32>
    %323 = arith.maximumf %321, %322 : vector<8x256xf32>
    %c0_217 = arith.constant 0 : index
    %c17 = arith.constant 17 : index
    %324 = vector.load %arg5[%c0_217, %c17] : memref<8x25xf32, #tpu.memory_space<vmem>>, vector<8x1xf32>
    %cst_218 = arith.constant dense<0.000000e+00> : vector<8xf32>
    %325 = vector.multi_reduction <add>, %323, %cst_218 [1] : vector<8x256xf32> to vector<8xf32>
    %326 = vector.shape_cast %325 : vector<8xf32> to vector<8x1xf32>
    %327 = arith.addf %324, %326 : vector<8x1xf32>
    %c0_219 = arith.constant 0 : index
    %c17_220 = arith.constant 17 : index
    %328 = vector.load %arg5[%c0_219, %c17_220] : memref<8x25xf32, #tpu.memory_space<vmem>>, vector<8x1xf32>
    tpu.vector_store %arg5[%c0_219, %c17_220], %327 {strides = array<i32>} : memref<8x25xf32, #tpu.memory_space<vmem>>, vector<8x1xf32>,
    %c0_221 = arith.constant 0 : index
    %c17_222 = arith.constant 17 : index
    %329 = vector.load %arg6[%c0_221, %c17_222] : memref<8x25xf32, #tpu.memory_space<vmem>>, vector<8x1xf32>
    %330 = arith.mulf %323, %3 : vector<8x256xf32>
    %cst_223 = arith.constant dense<0.000000e+00> : vector<8xf32>
    %331 = vector.multi_reduction <add>, %330, %cst_223 [1] : vector<8x256xf32> to vector<8xf32>
    %332 = vector.shape_cast %331 : vector<8xf32> to vector<8x1xf32>
    %333 = arith.addf %329, %332 : vector<8x1xf32>
    %c0_224 = arith.constant 0 : index
    %c17_225 = arith.constant 17 : index
    %334 = vector.load %arg6[%c0_224, %c17_225] : memref<8x25xf32, #tpu.memory_space<vmem>>, vector<8x1xf32>
    tpu.vector_store %arg6[%c0_224, %c17_225], %333 {strides = array<i32>} : memref<8x25xf32, #tpu.memory_space<vmem>>, vector<8x1xf32>,
    %cst_226 = arith.constant 6.000000e+00 : f32
    %335 = vector.broadcast %cst_226 : f32 to vector<8x256xf32>
    %336 = arith.subf %6, %335 : vector<8x256xf32>
    %337 = math.absf %336 : vector<8x256xf32>
    %cst_227 = arith.constant 1.000000e+00 : f32
    %338 = vector.broadcast %cst_227 : f32 to vector<8x256xf32>
    %339 = arith.subf %338, %337 : vector<8x256xf32>
    %cst_228 = arith.constant 0.000000e+00 : f32
    %340 = vector.broadcast %cst_228 : f32 to vector<8x256xf32>
    %341 = arith.maximumf %339, %340 : vector<8x256xf32>
    %c0_229 = arith.constant 0 : index
    %c18 = arith.constant 18 : index
    %342 = vector.load %arg5[%c0_229, %c18] : memref<8x25xf32, #tpu.memory_space<vmem>>, vector<8x1xf32>
    %cst_230 = arith.constant dense<0.000000e+00> : vector<8xf32>
    %343 = vector.multi_reduction <add>, %341, %cst_230 [1] : vector<8x256xf32> to vector<8xf32>
    %344 = vector.shape_cast %343 : vector<8xf32> to vector<8x1xf32>
    %345 = arith.addf %342, %344 : vector<8x1xf32>
    %c0_231 = arith.constant 0 : index
    %c18_232 = arith.constant 18 : index
    %346 = vector.load %arg5[%c0_231, %c18_232] : memref<8x25xf32, #tpu.memory_space<vmem>>, vector<8x1xf32>
    tpu.vector_store %arg5[%c0_231, %c18_232], %345 {strides = array<i32>} : memref<8x25xf32, #tpu.memory_space<vmem>>, vector<8x1xf32>,
    %c0_233 = arith.constant 0 : index
    %c18_234 = arith.constant 18 : index
    %347 = vector.load %arg6[%c0_233, %c18_234] : memref<8x25xf32, #tpu.memory_space<vmem>>, vector<8x1xf32>
    %348 = arith.mulf %341, %3 : vector<8x256xf32>
    %cst_235 = arith.constant dense<0.000000e+00> : vector<8xf32>
    %349 = vector.multi_reduction <add>, %348, %cst_235 [1] : vector<8x256xf32> to vector<8xf32>
    %350 = vector.shape_cast %349 : vector<8xf32> to vector<8x1xf32>
    %351 = arith.addf %347, %350 : vector<8x1xf32>
    %c0_236 = arith.constant 0 : index
    %c18_237 = arith.constant 18 : index
    %352 = vector.load %arg6[%c0_236, %c18_237] : memref<8x25xf32, #tpu.memory_space<vmem>>, vector<8x1xf32>
    tpu.vector_store %arg6[%c0_236, %c18_237], %351 {strides = array<i32>} : memref<8x25xf32, #tpu.memory_space<vmem>>, vector<8x1xf32>,
    %cst_238 = arith.constant 5.000000e+00 : f32
    %353 = vector.broadcast %cst_238 : f32 to vector<8x256xf32>
    %354 = arith.subf %6, %353 : vector<8x256xf32>
    %355 = math.absf %354 : vector<8x256xf32>
    %cst_239 = arith.constant 1.000000e+00 : f32
    %356 = vector.broadcast %cst_239 : f32 to vector<8x256xf32>
    %357 = arith.subf %356, %355 : vector<8x256xf32>
    %cst_240 = arith.constant 0.000000e+00 : f32
    %358 = vector.broadcast %cst_240 : f32 to vector<8x256xf32>
    %359 = arith.maximumf %357, %358 : vector<8x256xf32>
    %c0_241 = arith.constant 0 : index
    %c19 = arith.constant 19 : index
    %360 = vector.load %arg5[%c0_241, %c19] : memref<8x25xf32, #tpu.memory_space<vmem>>, vector<8x1xf32>
    %cst_242 = arith.constant dense<0.000000e+00> : vector<8xf32>
    %361 = vector.multi_reduction <add>, %359, %cst_242 [1] : vector<8x256xf32> to vector<8xf32>
    %362 = vector.shape_cast %361 : vector<8xf32> to vector<8x1xf32>
    %363 = arith.addf %360, %362 : vector<8x1xf32>
    %c0_243 = arith.constant 0 : index
    %c19_244 = arith.constant 19 : index
    %364 = vector.load %arg5[%c0_243, %c19_244] : memref<8x25xf32, #tpu.memory_space<vmem>>, vector<8x1xf32>
    tpu.vector_store %arg5[%c0_243, %c19_244], %363 {strides = array<i32>} : memref<8x25xf32, #tpu.memory_space<vmem>>, vector<8x1xf32>,
    %c0_245 = arith.constant 0 : index
    %c19_246 = arith.constant 19 : index
    %365 = vector.load %arg6[%c0_245, %c19_246] : memref<8x25xf32, #tpu.memory_space<vmem>>, vector<8x1xf32>
    %366 = arith.mulf %359, %3 : vector<8x256xf32>
    %cst_247 = arith.constant dense<0.000000e+00> : vector<8xf32>
    %367 = vector.multi_reduction <add>, %366, %cst_247 [1] : vector<8x256xf32> to vector<8xf32>
    %368 = vector.shape_cast %367 : vector<8xf32> to vector<8x1xf32>
    %369 = arith.addf %365, %368 : vector<8x1xf32>
    %c0_248 = arith.constant 0 : index
    %c19_249 = arith.constant 19 : index
    %370 = vector.load %arg6[%c0_248, %c19_249] : memref<8x25xf32, #tpu.memory_space<vmem>>, vector<8x1xf32>
    tpu.vector_store %arg6[%c0_248, %c19_249], %369 {strides = array<i32>} : memref<8x25xf32, #tpu.memory_space<vmem>>, vector<8x1xf32>,
    %cst_250 = arith.constant 4.000000e+00 : f32
    %371 = vector.broadcast %cst_250 : f32 to vector<8x256xf32>
    %372 = arith.subf %6, %371 : vector<8x256xf32>
    %373 = math.absf %372 : vector<8x256xf32>
    %cst_251 = arith.constant 1.000000e+00 : f32
    %374 = vector.broadcast %cst_251 : f32 to vector<8x256xf32>
    %375 = arith.subf %374, %373 : vector<8x256xf32>
    %cst_252 = arith.constant 0.000000e+00 : f32
    %376 = vector.broadcast %cst_252 : f32 to vector<8x256xf32>
    %377 = arith.maximumf %375, %376 : vector<8x256xf32>
    %c0_253 = arith.constant 0 : index
    %c20 = arith.constant 20 : index
    %378 = vector.load %arg5[%c0_253, %c20] : memref<8x25xf32, #tpu.memory_space<vmem>>, vector<8x1xf32>
    %cst_254 = arith.constant dense<0.000000e+00> : vector<8xf32>
    %379 = vector.multi_reduction <add>, %377, %cst_254 [1] : vector<8x256xf32> to vector<8xf32>
    %380 = vector.shape_cast %379 : vector<8xf32> to vector<8x1xf32>
    %381 = arith.addf %378, %380 : vector<8x1xf32>
    %c0_255 = arith.constant 0 : index
    %c20_256 = arith.constant 20 : index
    %382 = vector.load %arg5[%c0_255, %c20_256] : memref<8x25xf32, #tpu.memory_space<vmem>>, vector<8x1xf32>
    tpu.vector_store %arg5[%c0_255, %c20_256], %381 {strides = array<i32>} : memref<8x25xf32, #tpu.memory_space<vmem>>, vector<8x1xf32>,
    %c0_257 = arith.constant 0 : index
    %c20_258 = arith.constant 20 : index
    %383 = vector.load %arg6[%c0_257, %c20_258] : memref<8x25xf32, #tpu.memory_space<vmem>>, vector<8x1xf32>
    %384 = arith.mulf %377, %3 : vector<8x256xf32>
    %cst_259 = arith.constant dense<0.000000e+00> : vector<8xf32>
    %385 = vector.multi_reduction <add>, %384, %cst_259 [1] : vector<8x256xf32> to vector<8xf32>
    %386 = vector.shape_cast %385 : vector<8xf32> to vector<8x1xf32>
    %387 = arith.addf %383, %386 : vector<8x1xf32>
    %c0_260 = arith.constant 0 : index
    %c20_261 = arith.constant 20 : index
    %388 = vector.load %arg6[%c0_260, %c20_261] : memref<8x25xf32, #tpu.memory_space<vmem>>, vector<8x1xf32>
    tpu.vector_store %arg6[%c0_260, %c20_261], %387 {strides = array<i32>} : memref<8x25xf32, #tpu.memory_space<vmem>>, vector<8x1xf32>,
    %cst_262 = arith.constant 3.000000e+00 : f32
    %389 = vector.broadcast %cst_262 : f32 to vector<8x256xf32>
    %390 = arith.subf %6, %389 : vector<8x256xf32>
    %391 = math.absf %390 : vector<8x256xf32>
    %cst_263 = arith.constant 1.000000e+00 : f32
    %392 = vector.broadcast %cst_263 : f32 to vector<8x256xf32>
    %393 = arith.subf %392, %391 : vector<8x256xf32>
    %cst_264 = arith.constant 0.000000e+00 : f32
    %394 = vector.broadcast %cst_264 : f32 to vector<8x256xf32>
    %395 = arith.maximumf %393, %394 : vector<8x256xf32>
    %c0_265 = arith.constant 0 : index
    %c21 = arith.constant 21 : index
    %396 = vector.load %arg5[%c0_265, %c21] : memref<8x25xf32, #tpu.memory_space<vmem>>, vector<8x1xf32>
    %cst_266 = arith.constant dense<0.000000e+00> : vector<8xf32>
    %397 = vector.multi_reduction <add>, %395, %cst_266 [1] : vector<8x256xf32> to vector<8xf32>
    %398 = vector.shape_cast %397 : vector<8xf32> to vector<8x1xf32>
    %399 = arith.addf %396, %398 : vector<8x1xf32>
    %c0_267 = arith.constant 0 : index
    %c21_268 = arith.constant 21 : index
    %400 = vector.load %arg5[%c0_267, %c21_268] : memref<8x25xf32, #tpu.memory_space<vmem>>, vector<8x1xf32>
    tpu.vector_store %arg5[%c0_267, %c21_268], %399 {strides = array<i32>} : memref<8x25xf32, #tpu.memory_space<vmem>>, vector<8x1xf32>,
    %c0_269 = arith.constant 0 : index
    %c21_270 = arith.constant 21 : index
    %401 = vector.load %arg6[%c0_269, %c21_270] : memref<8x25xf32, #tpu.memory_space<vmem>>, vector<8x1xf32>
    %402 = arith.mulf %395, %3 : vector<8x256xf32>
    %cst_271 = arith.constant dense<0.000000e+00> : vector<8xf32>
    %403 = vector.multi_reduction <add>, %402, %cst_271 [1] : vector<8x256xf32> to vector<8xf32>
    %404 = vector.shape_cast %403 : vector<8xf32> to vector<8x1xf32>
    %405 = arith.addf %401, %404 : vector<8x1xf32>
    %c0_272 = arith.constant 0 : index
    %c21_273 = arith.constant 21 : index
    %406 = vector.load %arg6[%c0_272, %c21_273] : memref<8x25xf32, #tpu.memory_space<vmem>>, vector<8x1xf32>
    tpu.vector_store %arg6[%c0_272, %c21_273], %405 {strides = array<i32>} : memref<8x25xf32, #tpu.memory_space<vmem>>, vector<8x1xf32>,
    %cst_274 = arith.constant 2.000000e+00 : f32
    %407 = vector.broadcast %cst_274 : f32 to vector<8x256xf32>
    %408 = arith.subf %6, %407 : vector<8x256xf32>
    %409 = math.absf %408 : vector<8x256xf32>
    %cst_275 = arith.constant 1.000000e+00 : f32
    %410 = vector.broadcast %cst_275 : f32 to vector<8x256xf32>
    %411 = arith.subf %410, %409 : vector<8x256xf32>
    %cst_276 = arith.constant 0.000000e+00 : f32
    %412 = vector.broadcast %cst_276 : f32 to vector<8x256xf32>
    %413 = arith.maximumf %411, %412 : vector<8x256xf32>
    %c0_277 = arith.constant 0 : index
    %c22 = arith.constant 22 : index
    %414 = vector.load %arg5[%c0_277, %c22] : memref<8x25xf32, #tpu.memory_space<vmem>>, vector<8x1xf32>
    %cst_278 = arith.constant dense<0.000000e+00> : vector<8xf32>
    %415 = vector.multi_reduction <add>, %413, %cst_278 [1] : vector<8x256xf32> to vector<8xf32>
    %416 = vector.shape_cast %415 : vector<8xf32> to vector<8x1xf32>
    %417 = arith.addf %414, %416 : vector<8x1xf32>
    %c0_279 = arith.constant 0 : index
    %c22_280 = arith.constant 22 : index
    %418 = vector.load %arg5[%c0_279, %c22_280] : memref<8x25xf32, #tpu.memory_space<vmem>>, vector<8x1xf32>
    tpu.vector_store %arg5[%c0_279, %c22_280], %417 {strides = array<i32>} : memref<8x25xf32, #tpu.memory_space<vmem>>, vector<8x1xf32>,
    %c0_281 = arith.constant 0 : index
    %c22_282 = arith.constant 22 : index
    %419 = vector.load %arg6[%c0_281, %c22_282] : memref<8x25xf32, #tpu.memory_space<vmem>>, vector<8x1xf32>
    %420 = arith.mulf %413, %3 : vector<8x256xf32>
    %cst_283 = arith.constant dense<0.000000e+00> : vector<8xf32>
    %421 = vector.multi_reduction <add>, %420, %cst_283 [1] : vector<8x256xf32> to vector<8xf32>
    %422 = vector.shape_cast %421 : vector<8xf32> to vector<8x1xf32>
    %423 = arith.addf %419, %422 : vector<8x1xf32>
    %c0_284 = arith.constant 0 : index
    %c22_285 = arith.constant 22 : index
    %424 = vector.load %arg6[%c0_284, %c22_285] : memref<8x25xf32, #tpu.memory_space<vmem>>, vector<8x1xf32>
    tpu.vector_store %arg6[%c0_284, %c22_285], %423 {strides = array<i32>} : memref<8x25xf32, #tpu.memory_space<vmem>>, vector<8x1xf32>,
    %cst_286 = arith.constant 1.000000e+00 : f32
    %425 = vector.broadcast %cst_286 : f32 to vector<8x256xf32>
    %426 = arith.subf %6, %425 : vector<8x256xf32>
    %427 = math.absf %426 : vector<8x256xf32>
    %cst_287 = arith.constant 1.000000e+00 : f32
    %428 = vector.broadcast %cst_287 : f32 to vector<8x256xf32>
    %429 = arith.subf %428, %427 : vector<8x256xf32>
    %cst_288 = arith.constant 0.000000e+00 : f32
    %430 = vector.broadcast %cst_288 : f32 to vector<8x256xf32>
    %431 = arith.maximumf %429, %430 : vector<8x256xf32>
    %c0_289 = arith.constant 0 : index
    %c23 = arith.constant 23 : index
    %432 = vector.load %arg5[%c0_289, %c23] : memref<8x25xf32, #tpu.memory_space<vmem>>, vector<8x1xf32>
    %cst_290 = arith.constant dense<0.000000e+00> : vector<8xf32>
    %433 = vector.multi_reduction <add>, %431, %cst_290 [1] : vector<8x256xf32> to vector<8xf32>
    %434 = vector.shape_cast %433 : vector<8xf32> to vector<8x1xf32>
    %435 = arith.addf %432, %434 : vector<8x1xf32>
    %c0_291 = arith.constant 0 : index
    %c23_292 = arith.constant 23 : index
    %436 = vector.load %arg5[%c0_291, %c23_292] : memref<8x25xf32, #tpu.memory_space<vmem>>, vector<8x1xf32>
    tpu.vector_store %arg5[%c0_291, %c23_292], %435 {strides = array<i32>} : memref<8x25xf32, #tpu.memory_space<vmem>>, vector<8x1xf32>,
    %c0_293 = arith.constant 0 : index
    %c23_294 = arith.constant 23 : index
    %437 = vector.load %arg6[%c0_293, %c23_294] : memref<8x25xf32, #tpu.memory_space<vmem>>, vector<8x1xf32>
    %438 = arith.mulf %431, %3 : vector<8x256xf32>
    %cst_295 = arith.constant dense<0.000000e+00> : vector<8xf32>
    %439 = vector.multi_reduction <add>, %438, %cst_295 [1] : vector<8x256xf32> to vector<8xf32>
    %440 = vector.shape_cast %439 : vector<8xf32> to vector<8x1xf32>
    %441 = arith.addf %437, %440 : vector<8x1xf32>
    %c0_296 = arith.constant 0 : index
    %c23_297 = arith.constant 23 : index
    %442 = vector.load %arg6[%c0_296, %c23_297] : memref<8x25xf32, #tpu.memory_space<vmem>>, vector<8x1xf32>
    tpu.vector_store %arg6[%c0_296, %c23_297], %441 {strides = array<i32>} : memref<8x25xf32, #tpu.memory_space<vmem>>, vector<8x1xf32>,
    %cst_298 = arith.constant 1.000000e+00 : f32
    %443 = vector.broadcast %cst_298 : f32 to vector<8x256xf32>
    %444 = arith.subf %443, %6 : vector<8x256xf32>
    %cst_299 = arith.constant 1.000000e+00 : f32
    %445 = vector.broadcast %cst_299 : f32 to vector<8x256xf32>
    %446 = arith.minimumf %444, %445 : vector<8x256xf32>
    %cst_300 = arith.constant 0.000000e+00 : f32
    %447 = vector.broadcast %cst_300 : f32 to vector<8x256xf32>
    %448 = arith.maximumf %446, %447 : vector<8x256xf32>
    %c0_301 = arith.constant 0 : index
    %c24 = arith.constant 24 : index
    %449 = vector.load %arg5[%c0_301, %c24] : memref<8x25xf32, #tpu.memory_space<vmem>>, vector<8x1xf32>
    %cst_302 = arith.constant dense<0.000000e+00> : vector<8xf32>
    %450 = vector.multi_reduction <add>, %448, %cst_302 [1] : vector<8x256xf32> to vector<8xf32>
    %451 = vector.shape_cast %450 : vector<8xf32> to vector<8x1xf32>
    %452 = arith.addf %449, %451 : vector<8x1xf32>
    %c0_303 = arith.constant 0 : index
    %c24_304 = arith.constant 24 : index
    %453 = vector.load %arg5[%c0_303, %c24_304] : memref<8x25xf32, #tpu.memory_space<vmem>>, vector<8x1xf32>
    tpu.vector_store %arg5[%c0_303, %c24_304], %452 {strides = array<i32>} : memref<8x25xf32, #tpu.memory_space<vmem>>, vector<8x1xf32>,
    %c0_305 = arith.constant 0 : index
    %c24_306 = arith.constant 24 : index
    %454 = vector.load %arg6[%c0_305, %c24_306] : memref<8x25xf32, #tpu.memory_space<vmem>>, vector<8x1xf32>
    %455 = arith.mulf %448, %3 : vector<8x256xf32>
    %cst_307 = arith.constant dense<0.000000e+00> : vector<8xf32>
    %456 = vector.multi_reduction <add>, %455, %cst_307 [1] : vector<8x256xf32> to vector<8xf32>
    %457 = vector.shape_cast %456 : vector<8xf32> to vector<8x1xf32>
    %458 = arith.addf %454, %457 : vector<8x1xf32>
    %c0_308 = arith.constant 0 : index
    %c24_309 = arith.constant 24 : index
    %459 = vector.load %arg6[%c0_308, %c24_309] : memref<8x25xf32, #tpu.memory_space<vmem>>, vector<8x1xf32>
    tpu.vector_store %arg6[%c0_308, %c24_309], %458 {strides = array<i32>} : memref<8x25xf32, #tpu.memory_space<vmem>>, vector<8x1xf32>,
    %c1_i32 = arith.constant 1 : i32
    %460 = arith.cmpi eq, %arg1, %c1_i32 : i32
    %461 = arith.extui %460 : i1 to i32
    %cst_310 = arith.constant 1.000000e+00 : f32
    %cst_311 = arith.constant 0.000000e+00 : f32
    %c0_i32_312 = arith.constant 0 : i32
    %462 = arith.cmpi ne, %461, %c0_i32_312 : i32
    scf.if %462 {
      %c0_313 = arith.constant 0 : index
      %c0_314 = arith.constant 0 : index
      %463 = vector.load %arg5[%c0_313, %c0_314] : memref<8x25xf32, #tpu.memory_space<vmem>>, vector<8x25xf32>
      %c0_315 = arith.constant 0 : index
      %c0_316 = arith.constant 0 : index
      %464 = vector.load %arg6[%c0_315, %c0_316] : memref<8x25xf32, #tpu.memory_space<vmem>>, vector<8x25xf32>
      %c0_317 = arith.constant 0 : index
      %c0_318 = arith.constant 0 : index
      %465 = vector.load %arg7[%c0_317, %c0_318] : memref<8x1xf32, #tpu.memory_space<vmem>>, vector<8x1xf32>
      %cst_319 = arith.constant 0.000000e+00 : f32
      %466 = vector.broadcast %cst_319 : f32 to vector<8x1xf32>
      %cst_320 = arith.constant 0.000000e+00 : f32
      %467 = vector.broadcast %cst_320 : f32 to vector<8x1xf32>
      %cst_321 = arith.constant 0.000000e+00 : f32
      %468 = vector.broadcast %cst_321 : f32 to vector<8x1xf32>
      %469 = vector.extract_strided_slice %463 {offsets = [0, 0], sizes = [8, 1], strides = [1, 1]} : vector<8x25xf32> to vector<8x1xf32>
      %470 = vector.extract_strided_slice %464 {offsets = [0, 0], sizes = [8, 1], strides = [1, 1]} : vector<8x25xf32> to vector<8x1xf32>
      %471 = arith.addf %466, %469 : vector<8x1xf32>
      %472 = arith.addf %467, %470 : vector<8x1xf32>
      %473 = vector.broadcast %cst_310 : f32 to vector<8x1xf32>
      %474 = arith.subf %470, %473 : vector<8x1xf32>
      %475 = vector.broadcast %cst_311 : f32 to vector<8x1xf32>
      %476 = arith.maximumf %474, %475 : vector<8x1xf32>
      %477 = vector.broadcast %cst_310 : f32 to vector<8x1xf32>
      %478 = arith.subf %469, %477 : vector<8x1xf32>
      %479 = vector.broadcast %cst_311 : f32 to vector<8x1xf32>
      %480 = arith.maximumf %478, %479 : vector<8x1xf32>
      %cst_322 = arith.constant 9.99999993E-9 : f32
      %481 = vector.broadcast %cst_322 : f32 to vector<8x1xf32>
      %482 = arith.addf %480, %481 : vector<8x1xf32>
      %483 = arith.divf %476, %482 : vector<8x1xf32>
      %484 = arith.mulf %469, %483 : vector<8x1xf32>
      %485 = vector.broadcast %cst_310 : f32 to vector<8x1xf32>
      %486 = arith.addf %467, %485 : vector<8x1xf32>
      %487 = vector.broadcast %cst_310 : f32 to vector<8x1xf32>
      %488 = arith.addf %466, %487 : vector<8x1xf32>
      %489 = arith.mulf %483, %488 : vector<8x1xf32>
      %490 = arith.subf %486, %489 : vector<8x1xf32>
      %491 = vector.broadcast %cst_310 : f32 to vector<8x1xf32>
      %492 = arith.addf %471, %491 : vector<8x1xf32>
      %493 = vector.broadcast %cst_310 : f32 to vector<8x1xf32>
      %494 = arith.addf %466, %493 : vector<8x1xf32>
      %495 = arith.divf %492, %494 : vector<8x1xf32>
      %496 = math.log %495 : vector<8x1xf32>
      %497 = arith.mulf %490, %496 : vector<8x1xf32>
      %498 = arith.addf %484, %497 : vector<8x1xf32>
      %499 = arith.mulf %470, %498 : vector<8x1xf32>
      %cst_323 = arith.constant 9.99999993E-9 : f32
      %500 = vector.broadcast %cst_323 : f32 to vector<8x1xf32>
      %501 = arith.addf %469, %500 : vector<8x1xf32>
      %502 = arith.divf %499, %501 : vector<8x1xf32>
      %503 = arith.addf %468, %502 : vector<8x1xf32>
      %504 = vector.extract_strided_slice %463 {offsets = [0, 1], sizes = [8, 1], strides = [1, 1]} : vector<8x25xf32> to vector<8x1xf32>
      %505 = vector.extract_strided_slice %464 {offsets = [0, 1], sizes = [8, 1], strides = [1, 1]} : vector<8x25xf32> to vector<8x1xf32>
      %506 = arith.addf %471, %504 : vector<8x1xf32>
      %507 = arith.addf %472, %505 : vector<8x1xf32>
      %508 = vector.broadcast %cst_310 : f32 to vector<8x1xf32>
      %509 = arith.subf %505, %508 : vector<8x1xf32>
      %510 = vector.broadcast %cst_311 : f32 to vector<8x1xf32>
      %511 = arith.maximumf %509, %510 : vector<8x1xf32>
      %512 = vector.broadcast %cst_310 : f32 to vector<8x1xf32>
      %513 = arith.subf %504, %512 : vector<8x1xf32>
      %514 = vector.broadcast %cst_311 : f32 to vector<8x1xf32>
      %515 = arith.maximumf %513, %514 : vector<8x1xf32>
      %cst_324 = arith.constant 9.99999993E-9 : f32
      %516 = vector.broadcast %cst_324 : f32 to vector<8x1xf32>
      %517 = arith.addf %515, %516 : vector<8x1xf32>
      %518 = arith.divf %511, %517 : vector<8x1xf32>
      %519 = arith.mulf %504, %518 : vector<8x1xf32>
      %520 = vector.broadcast %cst_310 : f32 to vector<8x1xf32>
      %521 = arith.addf %472, %520 : vector<8x1xf32>
      %522 = vector.broadcast %cst_310 : f32 to vector<8x1xf32>
      %523 = arith.addf %471, %522 : vector<8x1xf32>
      %524 = arith.mulf %518, %523 : vector<8x1xf32>
      %525 = arith.subf %521, %524 : vector<8x1xf32>
      %526 = vector.broadcast %cst_310 : f32 to vector<8x1xf32>
      %527 = arith.addf %506, %526 : vector<8x1xf32>
      %528 = vector.broadcast %cst_310 : f32 to vector<8x1xf32>
      %529 = arith.addf %471, %528 : vector<8x1xf32>
      %530 = arith.divf %527, %529 : vector<8x1xf32>
      %531 = math.log %530 : vector<8x1xf32>
      %532 = arith.mulf %525, %531 : vector<8x1xf32>
      %533 = arith.addf %519, %532 : vector<8x1xf32>
      %534 = arith.mulf %505, %533 : vector<8x1xf32>
      %cst_325 = arith.constant 9.99999993E-9 : f32
      %535 = vector.broadcast %cst_325 : f32 to vector<8x1xf32>
      %536 = arith.addf %504, %535 : vector<8x1xf32>
      %537 = arith.divf %534, %536 : vector<8x1xf32>
      %538 = arith.addf %503, %537 : vector<8x1xf32>
      %539 = vector.extract_strided_slice %463 {offsets = [0, 2], sizes = [8, 1], strides = [1, 1]} : vector<8x25xf32> to vector<8x1xf32>
      %540 = vector.extract_strided_slice %464 {offsets = [0, 2], sizes = [8, 1], strides = [1, 1]} : vector<8x25xf32> to vector<8x1xf32>
      %541 = arith.addf %506, %539 : vector<8x1xf32>
      %542 = arith.addf %507, %540 : vector<8x1xf32>
      %543 = vector.broadcast %cst_310 : f32 to vector<8x1xf32>
      %544 = arith.subf %540, %543 : vector<8x1xf32>
      %545 = vector.broadcast %cst_311 : f32 to vector<8x1xf32>
      %546 = arith.maximumf %544, %545 : vector<8x1xf32>
      %547 = vector.broadcast %cst_310 : f32 to vector<8x1xf32>
      %548 = arith.subf %539, %547 : vector<8x1xf32>
      %549 = vector.broadcast %cst_311 : f32 to vector<8x1xf32>
      %550 = arith.maximumf %548, %549 : vector<8x1xf32>
      %cst_326 = arith.constant 9.99999993E-9 : f32
      %551 = vector.broadcast %cst_326 : f32 to vector<8x1xf32>
      %552 = arith.addf %550, %551 : vector<8x1xf32>
      %553 = arith.divf %546, %552 : vector<8x1xf32>
      %554 = arith.mulf %539, %553 : vector<8x1xf32>
      %555 = vector.broadcast %cst_310 : f32 to vector<8x1xf32>
      %556 = arith.addf %507, %555 : vector<8x1xf32>
      %557 = vector.broadcast %cst_310 : f32 to vector<8x1xf32>
      %558 = arith.addf %506, %557 : vector<8x1xf32>
      %559 = arith.mulf %553, %558 : vector<8x1xf32>
      %560 = arith.subf %556, %559 : vector<8x1xf32>
      %561 = vector.broadcast %cst_310 : f32 to vector<8x1xf32>
      %562 = arith.addf %541, %561 : vector<8x1xf32>
      %563 = vector.broadcast %cst_310 : f32 to vector<8x1xf32>
      %564 = arith.addf %506, %563 : vector<8x1xf32>
      %565 = arith.divf %562, %564 : vector<8x1xf32>
      %566 = math.log %565 : vector<8x1xf32>
      %567 = arith.mulf %560, %566 : vector<8x1xf32>
      %568 = arith.addf %554, %567 : vector<8x1xf32>
      %569 = arith.mulf %540, %568 : vector<8x1xf32>
      %cst_327 = arith.constant 9.99999993E-9 : f32
      %570 = vector.broadcast %cst_327 : f32 to vector<8x1xf32>
      %571 = arith.addf %539, %570 : vector<8x1xf32>
      %572 = arith.divf %569, %571 : vector<8x1xf32>
      %573 = arith.addf %538, %572 : vector<8x1xf32>
      %574 = vector.extract_strided_slice %463 {offsets = [0, 3], sizes = [8, 1], strides = [1, 1]} : vector<8x25xf32> to vector<8x1xf32>
      %575 = vector.extract_strided_slice %464 {offsets = [0, 3], sizes = [8, 1], strides = [1, 1]} : vector<8x25xf32> to vector<8x1xf32>
      %576 = arith.addf %541, %574 : vector<8x1xf32>
      %577 = arith.addf %542, %575 : vector<8x1xf32>
      %578 = vector.broadcast %cst_310 : f32 to vector<8x1xf32>
      %579 = arith.subf %575, %578 : vector<8x1xf32>
      %580 = vector.broadcast %cst_311 : f32 to vector<8x1xf32>
      %581 = arith.maximumf %579, %580 : vector<8x1xf32>
      %582 = vector.broadcast %cst_310 : f32 to vector<8x1xf32>
      %583 = arith.subf %574, %582 : vector<8x1xf32>
      %584 = vector.broadcast %cst_311 : f32 to vector<8x1xf32>
      %585 = arith.maximumf %583, %584 : vector<8x1xf32>
      %cst_328 = arith.constant 9.99999993E-9 : f32
      %586 = vector.broadcast %cst_328 : f32 to vector<8x1xf32>
      %587 = arith.addf %585, %586 : vector<8x1xf32>
      %588 = arith.divf %581, %587 : vector<8x1xf32>
      %589 = arith.mulf %574, %588 : vector<8x1xf32>
      %590 = vector.broadcast %cst_310 : f32 to vector<8x1xf32>
      %591 = arith.addf %542, %590 : vector<8x1xf32>
      %592 = vector.broadcast %cst_310 : f32 to vector<8x1xf32>
      %593 = arith.addf %541, %592 : vector<8x1xf32>
      %594 = arith.mulf %588, %593 : vector<8x1xf32>
      %595 = arith.subf %591, %594 : vector<8x1xf32>
      %596 = vector.broadcast %cst_310 : f32 to vector<8x1xf32>
      %597 = arith.addf %576, %596 : vector<8x1xf32>
      %598 = vector.broadcast %cst_310 : f32 to vector<8x1xf32>
      %599 = arith.addf %541, %598 : vector<8x1xf32>
      %600 = arith.divf %597, %599 : vector<8x1xf32>
      %601 = math.log %600 : vector<8x1xf32>
      %602 = arith.mulf %595, %601 : vector<8x1xf32>
      %603 = arith.addf %589, %602 : vector<8x1xf32>
      %604 = arith.mulf %575, %603 : vector<8x1xf32>
      %cst_329 = arith.constant 9.99999993E-9 : f32
      %605 = vector.broadcast %cst_329 : f32 to vector<8x1xf32>
      %606 = arith.addf %574, %605 : vector<8x1xf32>
      %607 = arith.divf %604, %606 : vector<8x1xf32>
      %608 = arith.addf %573, %607 : vector<8x1xf32>
      %609 = vector.extract_strided_slice %463 {offsets = [0, 4], sizes = [8, 1], strides = [1, 1]} : vector<8x25xf32> to vector<8x1xf32>
      %610 = vector.extract_strided_slice %464 {offsets = [0, 4], sizes = [8, 1], strides = [1, 1]} : vector<8x25xf32> to vector<8x1xf32>
      %611 = arith.addf %576, %609 : vector<8x1xf32>
      %612 = arith.addf %577, %610 : vector<8x1xf32>
      %613 = vector.broadcast %cst_310 : f32 to vector<8x1xf32>
      %614 = arith.subf %610, %613 : vector<8x1xf32>
      %615 = vector.broadcast %cst_311 : f32 to vector<8x1xf32>
      %616 = arith.maximumf %614, %615 : vector<8x1xf32>
      %617 = vector.broadcast %cst_310 : f32 to vector<8x1xf32>
      %618 = arith.subf %609, %617 : vector<8x1xf32>
      %619 = vector.broadcast %cst_311 : f32 to vector<8x1xf32>
      %620 = arith.maximumf %618, %619 : vector<8x1xf32>
      %cst_330 = arith.constant 9.99999993E-9 : f32
      %621 = vector.broadcast %cst_330 : f32 to vector<8x1xf32>
      %622 = arith.addf %620, %621 : vector<8x1xf32>
      %623 = arith.divf %616, %622 : vector<8x1xf32>
      %624 = arith.mulf %609, %623 : vector<8x1xf32>
      %625 = vector.broadcast %cst_310 : f32 to vector<8x1xf32>
      %626 = arith.addf %577, %625 : vector<8x1xf32>
      %627 = vector.broadcast %cst_310 : f32 to vector<8x1xf32>
      %628 = arith.addf %576, %627 : vector<8x1xf32>
      %629 = arith.mulf %623, %628 : vector<8x1xf32>
      %630 = arith.subf %626, %629 : vector<8x1xf32>
      %631 = vector.broadcast %cst_310 : f32 to vector<8x1xf32>
      %632 = arith.addf %611, %631 : vector<8x1xf32>
      %633 = vector.broadcast %cst_310 : f32 to vector<8x1xf32>
      %634 = arith.addf %576, %633 : vector<8x1xf32>
      %635 = arith.divf %632, %634 : vector<8x1xf32>
      %636 = math.log %635 : vector<8x1xf32>
      %637 = arith.mulf %630, %636 : vector<8x1xf32>
      %638 = arith.addf %624, %637 : vector<8x1xf32>
      %639 = arith.mulf %610, %638 : vector<8x1xf32>
      %cst_331 = arith.constant 9.99999993E-9 : f32
      %640 = vector.broadcast %cst_331 : f32 to vector<8x1xf32>
      %641 = arith.addf %609, %640 : vector<8x1xf32>
      %642 = arith.divf %639, %641 : vector<8x1xf32>
      %643 = arith.addf %608, %642 : vector<8x1xf32>
      %644 = vector.extract_strided_slice %463 {offsets = [0, 5], sizes = [8, 1], strides = [1, 1]} : vector<8x25xf32> to vector<8x1xf32>
      %645 = vector.extract_strided_slice %464 {offsets = [0, 5], sizes = [8, 1], strides = [1, 1]} : vector<8x25xf32> to vector<8x1xf32>
      %646 = arith.addf %611, %644 : vector<8x1xf32>
      %647 = arith.addf %612, %645 : vector<8x1xf32>
      %648 = vector.broadcast %cst_310 : f32 to vector<8x1xf32>
      %649 = arith.subf %645, %648 : vector<8x1xf32>
      %650 = vector.broadcast %cst_311 : f32 to vector<8x1xf32>
      %651 = arith.maximumf %649, %650 : vector<8x1xf32>
      %652 = vector.broadcast %cst_310 : f32 to vector<8x1xf32>
      %653 = arith.subf %644, %652 : vector<8x1xf32>
      %654 = vector.broadcast %cst_311 : f32 to vector<8x1xf32>
      %655 = arith.maximumf %653, %654 : vector<8x1xf32>
      %cst_332 = arith.constant 9.99999993E-9 : f32
      %656 = vector.broadcast %cst_332 : f32 to vector<8x1xf32>
      %657 = arith.addf %655, %656 : vector<8x1xf32>
      %658 = arith.divf %651, %657 : vector<8x1xf32>
      %659 = arith.mulf %644, %658 : vector<8x1xf32>
      %660 = vector.broadcast %cst_310 : f32 to vector<8x1xf32>
      %661 = arith.addf %612, %660 : vector<8x1xf32>
      %662 = vector.broadcast %cst_310 : f32 to vector<8x1xf32>
      %663 = arith.addf %611, %662 : vector<8x1xf32>
      %664 = arith.mulf %658, %663 : vector<8x1xf32>
      %665 = arith.subf %661, %664 : vector<8x1xf32>
      %666 = vector.broadcast %cst_310 : f32 to vector<8x1xf32>
      %667 = arith.addf %646, %666 : vector<8x1xf32>
      %668 = vector.broadcast %cst_310 : f32 to vector<8x1xf32>
      %669 = arith.addf %611, %668 : vector<8x1xf32>
      %670 = arith.divf %667, %669 : vector<8x1xf32>
      %671 = math.log %670 : vector<8x1xf32>
      %672 = arith.mulf %665, %671 : vector<8x1xf32>
      %673 = arith.addf %659, %672 : vector<8x1xf32>
      %674 = arith.mulf %645, %673 : vector<8x1xf32>
      %cst_333 = arith.constant 9.99999993E-9 : f32
      %675 = vector.broadcast %cst_333 : f32 to vector<8x1xf32>
      %676 = arith.addf %644, %675 : vector<8x1xf32>
      %677 = arith.divf %674, %676 : vector<8x1xf32>
      %678 = arith.addf %643, %677 : vector<8x1xf32>
      %679 = vector.extract_strided_slice %463 {offsets = [0, 6], sizes = [8, 1], strides = [1, 1]} : vector<8x25xf32> to vector<8x1xf32>
      %680 = vector.extract_strided_slice %464 {offsets = [0, 6], sizes = [8, 1], strides = [1, 1]} : vector<8x25xf32> to vector<8x1xf32>
      %681 = arith.addf %646, %679 : vector<8x1xf32>
      %682 = arith.addf %647, %680 : vector<8x1xf32>
      %683 = vector.broadcast %cst_310 : f32 to vector<8x1xf32>
      %684 = arith.subf %680, %683 : vector<8x1xf32>
      %685 = vector.broadcast %cst_311 : f32 to vector<8x1xf32>
      %686 = arith.maximumf %684, %685 : vector<8x1xf32>
      %687 = vector.broadcast %cst_310 : f32 to vector<8x1xf32>
      %688 = arith.subf %679, %687 : vector<8x1xf32>
      %689 = vector.broadcast %cst_311 : f32 to vector<8x1xf32>
      %690 = arith.maximumf %688, %689 : vector<8x1xf32>
      %cst_334 = arith.constant 9.99999993E-9 : f32
      %691 = vector.broadcast %cst_334 : f32 to vector<8x1xf32>
      %692 = arith.addf %690, %691 : vector<8x1xf32>
      %693 = arith.divf %686, %692 : vector<8x1xf32>
      %694 = arith.mulf %679, %693 : vector<8x1xf32>
      %695 = vector.broadcast %cst_310 : f32 to vector<8x1xf32>
      %696 = arith.addf %647, %695 : vector<8x1xf32>
      %697 = vector.broadcast %cst_310 : f32 to vector<8x1xf32>
      %698 = arith.addf %646, %697 : vector<8x1xf32>
      %699 = arith.mulf %693, %698 : vector<8x1xf32>
      %700 = arith.subf %696, %699 : vector<8x1xf32>
      %701 = vector.broadcast %cst_310 : f32 to vector<8x1xf32>
      %702 = arith.addf %681, %701 : vector<8x1xf32>
      %703 = vector.broadcast %cst_310 : f32 to vector<8x1xf32>
      %704 = arith.addf %646, %703 : vector<8x1xf32>
      %705 = arith.divf %702, %704 : vector<8x1xf32>
      %706 = math.log %705 : vector<8x1xf32>
      %707 = arith.mulf %700, %706 : vector<8x1xf32>
      %708 = arith.addf %694, %707 : vector<8x1xf32>
      %709 = arith.mulf %680, %708 : vector<8x1xf32>
      %cst_335 = arith.constant 9.99999993E-9 : f32
      %710 = vector.broadcast %cst_335 : f32 to vector<8x1xf32>
      %711 = arith.addf %679, %710 : vector<8x1xf32>
      %712 = arith.divf %709, %711 : vector<8x1xf32>
      %713 = arith.addf %678, %712 : vector<8x1xf32>
      %714 = vector.extract_strided_slice %463 {offsets = [0, 7], sizes = [8, 1], strides = [1, 1]} : vector<8x25xf32> to vector<8x1xf32>
      %715 = vector.extract_strided_slice %464 {offsets = [0, 7], sizes = [8, 1], strides = [1, 1]} : vector<8x25xf32> to vector<8x1xf32>
      %716 = arith.addf %681, %714 : vector<8x1xf32>
      %717 = arith.addf %682, %715 : vector<8x1xf32>
      %718 = vector.broadcast %cst_310 : f32 to vector<8x1xf32>
      %719 = arith.subf %715, %718 : vector<8x1xf32>
      %720 = vector.broadcast %cst_311 : f32 to vector<8x1xf32>
      %721 = arith.maximumf %719, %720 : vector<8x1xf32>
      %722 = vector.broadcast %cst_310 : f32 to vector<8x1xf32>
      %723 = arith.subf %714, %722 : vector<8x1xf32>
      %724 = vector.broadcast %cst_311 : f32 to vector<8x1xf32>
      %725 = arith.maximumf %723, %724 : vector<8x1xf32>
      %cst_336 = arith.constant 9.99999993E-9 : f32
      %726 = vector.broadcast %cst_336 : f32 to vector<8x1xf32>
      %727 = arith.addf %725, %726 : vector<8x1xf32>
      %728 = arith.divf %721, %727 : vector<8x1xf32>
      %729 = arith.mulf %714, %728 : vector<8x1xf32>
      %730 = vector.broadcast %cst_310 : f32 to vector<8x1xf32>
      %731 = arith.addf %682, %730 : vector<8x1xf32>
      %732 = vector.broadcast %cst_310 : f32 to vector<8x1xf32>
      %733 = arith.addf %681, %732 : vector<8x1xf32>
      %734 = arith.mulf %728, %733 : vector<8x1xf32>
      %735 = arith.subf %731, %734 : vector<8x1xf32>
      %736 = vector.broadcast %cst_310 : f32 to vector<8x1xf32>
      %737 = arith.addf %716, %736 : vector<8x1xf32>
      %738 = vector.broadcast %cst_310 : f32 to vector<8x1xf32>
      %739 = arith.addf %681, %738 : vector<8x1xf32>
      %740 = arith.divf %737, %739 : vector<8x1xf32>
      %741 = math.log %740 : vector<8x1xf32>
      %742 = arith.mulf %735, %741 : vector<8x1xf32>
      %743 = arith.addf %729, %742 : vector<8x1xf32>
      %744 = arith.mulf %715, %743 : vector<8x1xf32>
      %cst_337 = arith.constant 9.99999993E-9 : f32
      %745 = vector.broadcast %cst_337 : f32 to vector<8x1xf32>
      %746 = arith.addf %714, %745 : vector<8x1xf32>
      %747 = arith.divf %744, %746 : vector<8x1xf32>
      %748 = arith.addf %713, %747 : vector<8x1xf32>
      %749 = vector.extract_strided_slice %463 {offsets = [0, 8], sizes = [8, 1], strides = [1, 1]} : vector<8x25xf32> to vector<8x1xf32>
      %750 = vector.extract_strided_slice %464 {offsets = [0, 8], sizes = [8, 1], strides = [1, 1]} : vector<8x25xf32> to vector<8x1xf32>
      %751 = arith.addf %716, %749 : vector<8x1xf32>
      %752 = arith.addf %717, %750 : vector<8x1xf32>
      %753 = vector.broadcast %cst_310 : f32 to vector<8x1xf32>
      %754 = arith.subf %750, %753 : vector<8x1xf32>
      %755 = vector.broadcast %cst_311 : f32 to vector<8x1xf32>
      %756 = arith.maximumf %754, %755 : vector<8x1xf32>
      %757 = vector.broadcast %cst_310 : f32 to vector<8x1xf32>
      %758 = arith.subf %749, %757 : vector<8x1xf32>
      %759 = vector.broadcast %cst_311 : f32 to vector<8x1xf32>
      %760 = arith.maximumf %758, %759 : vector<8x1xf32>
      %cst_338 = arith.constant 9.99999993E-9 : f32
      %761 = vector.broadcast %cst_338 : f32 to vector<8x1xf32>
      %762 = arith.addf %760, %761 : vector<8x1xf32>
      %763 = arith.divf %756, %762 : vector<8x1xf32>
      %764 = arith.mulf %749, %763 : vector<8x1xf32>
      %765 = vector.broadcast %cst_310 : f32 to vector<8x1xf32>
      %766 = arith.addf %717, %765 : vector<8x1xf32>
      %767 = vector.broadcast %cst_310 : f32 to vector<8x1xf32>
      %768 = arith.addf %716, %767 : vector<8x1xf32>
      %769 = arith.mulf %763, %768 : vector<8x1xf32>
      %770 = arith.subf %766, %769 : vector<8x1xf32>
      %771 = vector.broadcast %cst_310 : f32 to vector<8x1xf32>
      %772 = arith.addf %751, %771 : vector<8x1xf32>
      %773 = vector.broadcast %cst_310 : f32 to vector<8x1xf32>
      %774 = arith.addf %716, %773 : vector<8x1xf32>
      %775 = arith.divf %772, %774 : vector<8x1xf32>
      %776 = math.log %775 : vector<8x1xf32>
      %777 = arith.mulf %770, %776 : vector<8x1xf32>
      %778 = arith.addf %764, %777 : vector<8x1xf32>
      %779 = arith.mulf %750, %778 : vector<8x1xf32>
      %cst_339 = arith.constant 9.99999993E-9 : f32
      %780 = vector.broadcast %cst_339 : f32 to vector<8x1xf32>
      %781 = arith.addf %749, %780 : vector<8x1xf32>
      %782 = arith.divf %779, %781 : vector<8x1xf32>
      %783 = arith.addf %748, %782 : vector<8x1xf32>
      %784 = vector.extract_strided_slice %463 {offsets = [0, 9], sizes = [8, 1], strides = [1, 1]} : vector<8x25xf32> to vector<8x1xf32>
      %785 = vector.extract_strided_slice %464 {offsets = [0, 9], sizes = [8, 1], strides = [1, 1]} : vector<8x25xf32> to vector<8x1xf32>
      %786 = arith.addf %751, %784 : vector<8x1xf32>
      %787 = arith.addf %752, %785 : vector<8x1xf32>
      %788 = vector.broadcast %cst_310 : f32 to vector<8x1xf32>
      %789 = arith.subf %785, %788 : vector<8x1xf32>
      %790 = vector.broadcast %cst_311 : f32 to vector<8x1xf32>
      %791 = arith.maximumf %789, %790 : vector<8x1xf32>
      %792 = vector.broadcast %cst_310 : f32 to vector<8x1xf32>
      %793 = arith.subf %784, %792 : vector<8x1xf32>
      %794 = vector.broadcast %cst_311 : f32 to vector<8x1xf32>
      %795 = arith.maximumf %793, %794 : vector<8x1xf32>
      %cst_340 = arith.constant 9.99999993E-9 : f32
      %796 = vector.broadcast %cst_340 : f32 to vector<8x1xf32>
      %797 = arith.addf %795, %796 : vector<8x1xf32>
      %798 = arith.divf %791, %797 : vector<8x1xf32>
      %799 = arith.mulf %784, %798 : vector<8x1xf32>
      %800 = vector.broadcast %cst_310 : f32 to vector<8x1xf32>
      %801 = arith.addf %752, %800 : vector<8x1xf32>
      %802 = vector.broadcast %cst_310 : f32 to vector<8x1xf32>
      %803 = arith.addf %751, %802 : vector<8x1xf32>
      %804 = arith.mulf %798, %803 : vector<8x1xf32>
      %805 = arith.subf %801, %804 : vector<8x1xf32>
      %806 = vector.broadcast %cst_310 : f32 to vector<8x1xf32>
      %807 = arith.addf %786, %806 : vector<8x1xf32>
      %808 = vector.broadcast %cst_310 : f32 to vector<8x1xf32>
      %809 = arith.addf %751, %808 : vector<8x1xf32>
      %810 = arith.divf %807, %809 : vector<8x1xf32>
      %811 = math.log %810 : vector<8x1xf32>
      %812 = arith.mulf %805, %811 : vector<8x1xf32>
      %813 = arith.addf %799, %812 : vector<8x1xf32>
      %814 = arith.mulf %785, %813 : vector<8x1xf32>
      %cst_341 = arith.constant 9.99999993E-9 : f32
      %815 = vector.broadcast %cst_341 : f32 to vector<8x1xf32>
      %816 = arith.addf %784, %815 : vector<8x1xf32>
      %817 = arith.divf %814, %816 : vector<8x1xf32>
      %818 = arith.addf %783, %817 : vector<8x1xf32>
      %819 = vector.extract_strided_slice %463 {offsets = [0, 10], sizes = [8, 1], strides = [1, 1]} : vector<8x25xf32> to vector<8x1xf32>
      %820 = vector.extract_strided_slice %464 {offsets = [0, 10], sizes = [8, 1], strides = [1, 1]} : vector<8x25xf32> to vector<8x1xf32>
      %821 = arith.addf %786, %819 : vector<8x1xf32>
      %822 = arith.addf %787, %820 : vector<8x1xf32>
      %823 = vector.broadcast %cst_310 : f32 to vector<8x1xf32>
      %824 = arith.subf %820, %823 : vector<8x1xf32>
      %825 = vector.broadcast %cst_311 : f32 to vector<8x1xf32>
      %826 = arith.maximumf %824, %825 : vector<8x1xf32>
      %827 = vector.broadcast %cst_310 : f32 to vector<8x1xf32>
      %828 = arith.subf %819, %827 : vector<8x1xf32>
      %829 = vector.broadcast %cst_311 : f32 to vector<8x1xf32>
      %830 = arith.maximumf %828, %829 : vector<8x1xf32>
      %cst_342 = arith.constant 9.99999993E-9 : f32
      %831 = vector.broadcast %cst_342 : f32 to vector<8x1xf32>
      %832 = arith.addf %830, %831 : vector<8x1xf32>
      %833 = arith.divf %826, %832 : vector<8x1xf32>
      %834 = arith.mulf %819, %833 : vector<8x1xf32>
      %835 = vector.broadcast %cst_310 : f32 to vector<8x1xf32>
      %836 = arith.addf %787, %835 : vector<8x1xf32>
      %837 = vector.broadcast %cst_310 : f32 to vector<8x1xf32>
      %838 = arith.addf %786, %837 : vector<8x1xf32>
      %839 = arith.mulf %833, %838 : vector<8x1xf32>
      %840 = arith.subf %836, %839 : vector<8x1xf32>
      %841 = vector.broadcast %cst_310 : f32 to vector<8x1xf32>
      %842 = arith.addf %821, %841 : vector<8x1xf32>
      %843 = vector.broadcast %cst_310 : f32 to vector<8x1xf32>
      %844 = arith.addf %786, %843 : vector<8x1xf32>
      %845 = arith.divf %842, %844 : vector<8x1xf32>
      %846 = math.log %845 : vector<8x1xf32>
      %847 = arith.mulf %840, %846 : vector<8x1xf32>
      %848 = arith.addf %834, %847 : vector<8x1xf32>
      %849 = arith.mulf %820, %848 : vector<8x1xf32>
      %cst_343 = arith.constant 9.99999993E-9 : f32
      %850 = vector.broadcast %cst_343 : f32 to vector<8x1xf32>
      %851 = arith.addf %819, %850 : vector<8x1xf32>
      %852 = arith.divf %849, %851 : vector<8x1xf32>
      %853 = arith.addf %818, %852 : vector<8x1xf32>
      %854 = vector.extract_strided_slice %463 {offsets = [0, 11], sizes = [8, 1], strides = [1, 1]} : vector<8x25xf32> to vector<8x1xf32>
      %855 = vector.extract_strided_slice %464 {offsets = [0, 11], sizes = [8, 1], strides = [1, 1]} : vector<8x25xf32> to vector<8x1xf32>
      %856 = arith.addf %821, %854 : vector<8x1xf32>
      %857 = arith.addf %822, %855 : vector<8x1xf32>
      %858 = vector.broadcast %cst_310 : f32 to vector<8x1xf32>
      %859 = arith.subf %855, %858 : vector<8x1xf32>
      %860 = vector.broadcast %cst_311 : f32 to vector<8x1xf32>
      %861 = arith.maximumf %859, %860 : vector<8x1xf32>
      %862 = vector.broadcast %cst_310 : f32 to vector<8x1xf32>
      %863 = arith.subf %854, %862 : vector<8x1xf32>
      %864 = vector.broadcast %cst_311 : f32 to vector<8x1xf32>
      %865 = arith.maximumf %863, %864 : vector<8x1xf32>
      %cst_344 = arith.constant 9.99999993E-9 : f32
      %866 = vector.broadcast %cst_344 : f32 to vector<8x1xf32>
      %867 = arith.addf %865, %866 : vector<8x1xf32>
      %868 = arith.divf %861, %867 : vector<8x1xf32>
      %869 = arith.mulf %854, %868 : vector<8x1xf32>
      %870 = vector.broadcast %cst_310 : f32 to vector<8x1xf32>
      %871 = arith.addf %822, %870 : vector<8x1xf32>
      %872 = vector.broadcast %cst_310 : f32 to vector<8x1xf32>
      %873 = arith.addf %821, %872 : vector<8x1xf32>
      %874 = arith.mulf %868, %873 : vector<8x1xf32>
      %875 = arith.subf %871, %874 : vector<8x1xf32>
      %876 = vector.broadcast %cst_310 : f32 to vector<8x1xf32>
      %877 = arith.addf %856, %876 : vector<8x1xf32>
      %878 = vector.broadcast %cst_310 : f32 to vector<8x1xf32>
      %879 = arith.addf %821, %878 : vector<8x1xf32>
      %880 = arith.divf %877, %879 : vector<8x1xf32>
      %881 = math.log %880 : vector<8x1xf32>
      %882 = arith.mulf %875, %881 : vector<8x1xf32>
      %883 = arith.addf %869, %882 : vector<8x1xf32>
      %884 = arith.mulf %855, %883 : vector<8x1xf32>
      %cst_345 = arith.constant 9.99999993E-9 : f32
      %885 = vector.broadcast %cst_345 : f32 to vector<8x1xf32>
      %886 = arith.addf %854, %885 : vector<8x1xf32>
      %887 = arith.divf %884, %886 : vector<8x1xf32>
      %888 = arith.addf %853, %887 : vector<8x1xf32>
      %889 = vector.extract_strided_slice %463 {offsets = [0, 12], sizes = [8, 1], strides = [1, 1]} : vector<8x25xf32> to vector<8x1xf32>
      %890 = vector.extract_strided_slice %464 {offsets = [0, 12], sizes = [8, 1], strides = [1, 1]} : vector<8x25xf32> to vector<8x1xf32>
      %891 = arith.addf %856, %889 : vector<8x1xf32>
      %892 = arith.addf %857, %890 : vector<8x1xf32>
      %893 = vector.broadcast %cst_310 : f32 to vector<8x1xf32>
      %894 = arith.subf %890, %893 : vector<8x1xf32>
      %895 = vector.broadcast %cst_311 : f32 to vector<8x1xf32>
      %896 = arith.maximumf %894, %895 : vector<8x1xf32>
      %897 = vector.broadcast %cst_310 : f32 to vector<8x1xf32>
      %898 = arith.subf %889, %897 : vector<8x1xf32>
      %899 = vector.broadcast %cst_311 : f32 to vector<8x1xf32>
      %900 = arith.maximumf %898, %899 : vector<8x1xf32>
      %cst_346 = arith.constant 9.99999993E-9 : f32
      %901 = vector.broadcast %cst_346 : f32 to vector<8x1xf32>
      %902 = arith.addf %900, %901 : vector<8x1xf32>
      %903 = arith.divf %896, %902 : vector<8x1xf32>
      %904 = arith.mulf %889, %903 : vector<8x1xf32>
      %905 = vector.broadcast %cst_310 : f32 to vector<8x1xf32>
      %906 = arith.addf %857, %905 : vector<8x1xf32>
      %907 = vector.broadcast %cst_310 : f32 to vector<8x1xf32>
      %908 = arith.addf %856, %907 : vector<8x1xf32>
      %909 = arith.mulf %903, %908 : vector<8x1xf32>
      %910 = arith.subf %906, %909 : vector<8x1xf32>
      %911 = vector.broadcast %cst_310 : f32 to vector<8x1xf32>
      %912 = arith.addf %891, %911 : vector<8x1xf32>
      %913 = vector.broadcast %cst_310 : f32 to vector<8x1xf32>
      %914 = arith.addf %856, %913 : vector<8x1xf32>
      %915 = arith.divf %912, %914 : vector<8x1xf32>
      %916 = math.log %915 : vector<8x1xf32>
      %917 = arith.mulf %910, %916 : vector<8x1xf32>
      %918 = arith.addf %904, %917 : vector<8x1xf32>
      %919 = arith.mulf %890, %918 : vector<8x1xf32>
      %cst_347 = arith.constant 9.99999993E-9 : f32
      %920 = vector.broadcast %cst_347 : f32 to vector<8x1xf32>
      %921 = arith.addf %889, %920 : vector<8x1xf32>
      %922 = arith.divf %919, %921 : vector<8x1xf32>
      %923 = arith.addf %888, %922 : vector<8x1xf32>
      %924 = vector.extract_strided_slice %463 {offsets = [0, 13], sizes = [8, 1], strides = [1, 1]} : vector<8x25xf32> to vector<8x1xf32>
      %925 = vector.extract_strided_slice %464 {offsets = [0, 13], sizes = [8, 1], strides = [1, 1]} : vector<8x25xf32> to vector<8x1xf32>
      %926 = arith.addf %891, %924 : vector<8x1xf32>
      %927 = arith.addf %892, %925 : vector<8x1xf32>
      %928 = vector.broadcast %cst_310 : f32 to vector<8x1xf32>
      %929 = arith.subf %925, %928 : vector<8x1xf32>
      %930 = vector.broadcast %cst_311 : f32 to vector<8x1xf32>
      %931 = arith.maximumf %929, %930 : vector<8x1xf32>
      %932 = vector.broadcast %cst_310 : f32 to vector<8x1xf32>
      %933 = arith.subf %924, %932 : vector<8x1xf32>
      %934 = vector.broadcast %cst_311 : f32 to vector<8x1xf32>
      %935 = arith.maximumf %933, %934 : vector<8x1xf32>
      %cst_348 = arith.constant 9.99999993E-9 : f32
      %936 = vector.broadcast %cst_348 : f32 to vector<8x1xf32>
      %937 = arith.addf %935, %936 : vector<8x1xf32>
      %938 = arith.divf %931, %937 : vector<8x1xf32>
      %939 = arith.mulf %924, %938 : vector<8x1xf32>
      %940 = vector.broadcast %cst_310 : f32 to vector<8x1xf32>
      %941 = arith.addf %892, %940 : vector<8x1xf32>
      %942 = vector.broadcast %cst_310 : f32 to vector<8x1xf32>
      %943 = arith.addf %891, %942 : vector<8x1xf32>
      %944 = arith.mulf %938, %943 : vector<8x1xf32>
      %945 = arith.subf %941, %944 : vector<8x1xf32>
      %946 = vector.broadcast %cst_310 : f32 to vector<8x1xf32>
      %947 = arith.addf %926, %946 : vector<8x1xf32>
      %948 = vector.broadcast %cst_310 : f32 to vector<8x1xf32>
      %949 = arith.addf %891, %948 : vector<8x1xf32>
      %950 = arith.divf %947, %949 : vector<8x1xf32>
      %951 = math.log %950 : vector<8x1xf32>
      %952 = arith.mulf %945, %951 : vector<8x1xf32>
      %953 = arith.addf %939, %952 : vector<8x1xf32>
      %954 = arith.mulf %925, %953 : vector<8x1xf32>
      %cst_349 = arith.constant 9.99999993E-9 : f32
      %955 = vector.broadcast %cst_349 : f32 to vector<8x1xf32>
      %956 = arith.addf %924, %955 : vector<8x1xf32>
      %957 = arith.divf %954, %956 : vector<8x1xf32>
      %958 = arith.addf %923, %957 : vector<8x1xf32>
      %959 = vector.extract_strided_slice %463 {offsets = [0, 14], sizes = [8, 1], strides = [1, 1]} : vector<8x25xf32> to vector<8x1xf32>
      %960 = vector.extract_strided_slice %464 {offsets = [0, 14], sizes = [8, 1], strides = [1, 1]} : vector<8x25xf32> to vector<8x1xf32>
      %961 = arith.addf %926, %959 : vector<8x1xf32>
      %962 = arith.addf %927, %960 : vector<8x1xf32>
      %963 = vector.broadcast %cst_310 : f32 to vector<8x1xf32>
      %964 = arith.subf %960, %963 : vector<8x1xf32>
      %965 = vector.broadcast %cst_311 : f32 to vector<8x1xf32>
      %966 = arith.maximumf %964, %965 : vector<8x1xf32>
      %967 = vector.broadcast %cst_310 : f32 to vector<8x1xf32>
      %968 = arith.subf %959, %967 : vector<8x1xf32>
      %969 = vector.broadcast %cst_311 : f32 to vector<8x1xf32>
      %970 = arith.maximumf %968, %969 : vector<8x1xf32>
      %cst_350 = arith.constant 9.99999993E-9 : f32
      %971 = vector.broadcast %cst_350 : f32 to vector<8x1xf32>
      %972 = arith.addf %970, %971 : vector<8x1xf32>
      %973 = arith.divf %966, %972 : vector<8x1xf32>
      %974 = arith.mulf %959, %973 : vector<8x1xf32>
      %975 = vector.broadcast %cst_310 : f32 to vector<8x1xf32>
      %976 = arith.addf %927, %975 : vector<8x1xf32>
      %977 = vector.broadcast %cst_310 : f32 to vector<8x1xf32>
      %978 = arith.addf %926, %977 : vector<8x1xf32>
      %979 = arith.mulf %973, %978 : vector<8x1xf32>
      %980 = arith.subf %976, %979 : vector<8x1xf32>
      %981 = vector.broadcast %cst_310 : f32 to vector<8x1xf32>
      %982 = arith.addf %961, %981 : vector<8x1xf32>
      %983 = vector.broadcast %cst_310 : f32 to vector<8x1xf32>
      %984 = arith.addf %926, %983 : vector<8x1xf32>
      %985 = arith.divf %982, %984 : vector<8x1xf32>
      %986 = math.log %985 : vector<8x1xf32>
      %987 = arith.mulf %980, %986 : vector<8x1xf32>
      %988 = arith.addf %974, %987 : vector<8x1xf32>
      %989 = arith.mulf %960, %988 : vector<8x1xf32>
      %cst_351 = arith.constant 9.99999993E-9 : f32
      %990 = vector.broadcast %cst_351 : f32 to vector<8x1xf32>
      %991 = arith.addf %959, %990 : vector<8x1xf32>
      %992 = arith.divf %989, %991 : vector<8x1xf32>
      %993 = arith.addf %958, %992 : vector<8x1xf32>
      %994 = vector.extract_strided_slice %463 {offsets = [0, 15], sizes = [8, 1], strides = [1, 1]} : vector<8x25xf32> to vector<8x1xf32>
      %995 = vector.extract_strided_slice %464 {offsets = [0, 15], sizes = [8, 1], strides = [1, 1]} : vector<8x25xf32> to vector<8x1xf32>
      %996 = arith.addf %961, %994 : vector<8x1xf32>
      %997 = arith.addf %962, %995 : vector<8x1xf32>
      %998 = vector.broadcast %cst_310 : f32 to vector<8x1xf32>
      %999 = arith.subf %995, %998 : vector<8x1xf32>
      %1000 = vector.broadcast %cst_311 : f32 to vector<8x1xf32>
      %1001 = arith.maximumf %999, %1000 : vector<8x1xf32>
      %1002 = vector.broadcast %cst_310 : f32 to vector<8x1xf32>
      %1003 = arith.subf %994, %1002 : vector<8x1xf32>
      %1004 = vector.broadcast %cst_311 : f32 to vector<8x1xf32>
      %1005 = arith.maximumf %1003, %1004 : vector<8x1xf32>
      %cst_352 = arith.constant 9.99999993E-9 : f32
      %1006 = vector.broadcast %cst_352 : f32 to vector<8x1xf32>
      %1007 = arith.addf %1005, %1006 : vector<8x1xf32>
      %1008 = arith.divf %1001, %1007 : vector<8x1xf32>
      %1009 = arith.mulf %994, %1008 : vector<8x1xf32>
      %1010 = vector.broadcast %cst_310 : f32 to vector<8x1xf32>
      %1011 = arith.addf %962, %1010 : vector<8x1xf32>
      %1012 = vector.broadcast %cst_310 : f32 to vector<8x1xf32>
      %1013 = arith.addf %961, %1012 : vector<8x1xf32>
      %1014 = arith.mulf %1008, %1013 : vector<8x1xf32>
      %1015 = arith.subf %1011, %1014 : vector<8x1xf32>
      %1016 = vector.broadcast %cst_310 : f32 to vector<8x1xf32>
      %1017 = arith.addf %996, %1016 : vector<8x1xf32>
      %1018 = vector.broadcast %cst_310 : f32 to vector<8x1xf32>
      %1019 = arith.addf %961, %1018 : vector<8x1xf32>
      %1020 = arith.divf %1017, %1019 : vector<8x1xf32>
      %1021 = math.log %1020 : vector<8x1xf32>
      %1022 = arith.mulf %1015, %1021 : vector<8x1xf32>
      %1023 = arith.addf %1009, %1022 : vector<8x1xf32>
      %1024 = arith.mulf %995, %1023 : vector<8x1xf32>
      %cst_353 = arith.constant 9.99999993E-9 : f32
      %1025 = vector.broadcast %cst_353 : f32 to vector<8x1xf32>
      %1026 = arith.addf %994, %1025 : vector<8x1xf32>
      %1027 = arith.divf %1024, %1026 : vector<8x1xf32>
      %1028 = arith.addf %993, %1027 : vector<8x1xf32>
      %1029 = vector.extract_strided_slice %463 {offsets = [0, 16], sizes = [8, 1], strides = [1, 1]} : vector<8x25xf32> to vector<8x1xf32>
      %1030 = vector.extract_strided_slice %464 {offsets = [0, 16], sizes = [8, 1], strides = [1, 1]} : vector<8x25xf32> to vector<8x1xf32>
      %1031 = arith.addf %996, %1029 : vector<8x1xf32>
      %1032 = arith.addf %997, %1030 : vector<8x1xf32>
      %1033 = vector.broadcast %cst_310 : f32 to vector<8x1xf32>
      %1034 = arith.subf %1030, %1033 : vector<8x1xf32>
      %1035 = vector.broadcast %cst_311 : f32 to vector<8x1xf32>
      %1036 = arith.maximumf %1034, %1035 : vector<8x1xf32>
      %1037 = vector.broadcast %cst_310 : f32 to vector<8x1xf32>
      %1038 = arith.subf %1029, %1037 : vector<8x1xf32>
      %1039 = vector.broadcast %cst_311 : f32 to vector<8x1xf32>
      %1040 = arith.maximumf %1038, %1039 : vector<8x1xf32>
      %cst_354 = arith.constant 9.99999993E-9 : f32
      %1041 = vector.broadcast %cst_354 : f32 to vector<8x1xf32>
      %1042 = arith.addf %1040, %1041 : vector<8x1xf32>
      %1043 = arith.divf %1036, %1042 : vector<8x1xf32>
      %1044 = arith.mulf %1029, %1043 : vector<8x1xf32>
      %1045 = vector.broadcast %cst_310 : f32 to vector<8x1xf32>
      %1046 = arith.addf %997, %1045 : vector<8x1xf32>
      %1047 = vector.broadcast %cst_310 : f32 to vector<8x1xf32>
      %1048 = arith.addf %996, %1047 : vector<8x1xf32>
      %1049 = arith.mulf %1043, %1048 : vector<8x1xf32>
      %1050 = arith.subf %1046, %1049 : vector<8x1xf32>
      %1051 = vector.broadcast %cst_310 : f32 to vector<8x1xf32>
      %1052 = arith.addf %1031, %1051 : vector<8x1xf32>
      %1053 = vector.broadcast %cst_310 : f32 to vector<8x1xf32>
      %1054 = arith.addf %996, %1053 : vector<8x1xf32>
      %1055 = arith.divf %1052, %1054 : vector<8x1xf32>
      %1056 = math.log %1055 : vector<8x1xf32>
      %1057 = arith.mulf %1050, %1056 : vector<8x1xf32>
      %1058 = arith.addf %1044, %1057 : vector<8x1xf32>
      %1059 = arith.mulf %1030, %1058 : vector<8x1xf32>
      %cst_355 = arith.constant 9.99999993E-9 : f32
      %1060 = vector.broadcast %cst_355 : f32 to vector<8x1xf32>
      %1061 = arith.addf %1029, %1060 : vector<8x1xf32>
      %1062 = arith.divf %1059, %1061 : vector<8x1xf32>
      %1063 = arith.addf %1028, %1062 : vector<8x1xf32>
      %1064 = vector.extract_strided_slice %463 {offsets = [0, 17], sizes = [8, 1], strides = [1, 1]} : vector<8x25xf32> to vector<8x1xf32>
      %1065 = vector.extract_strided_slice %464 {offsets = [0, 17], sizes = [8, 1], strides = [1, 1]} : vector<8x25xf32> to vector<8x1xf32>
      %1066 = arith.addf %1031, %1064 : vector<8x1xf32>
      %1067 = arith.addf %1032, %1065 : vector<8x1xf32>
      %1068 = vector.broadcast %cst_310 : f32 to vector<8x1xf32>
      %1069 = arith.subf %1065, %1068 : vector<8x1xf32>
      %1070 = vector.broadcast %cst_311 : f32 to vector<8x1xf32>
      %1071 = arith.maximumf %1069, %1070 : vector<8x1xf32>
      %1072 = vector.broadcast %cst_310 : f32 to vector<8x1xf32>
      %1073 = arith.subf %1064, %1072 : vector<8x1xf32>
      %1074 = vector.broadcast %cst_311 : f32 to vector<8x1xf32>
      %1075 = arith.maximumf %1073, %1074 : vector<8x1xf32>
      %cst_356 = arith.constant 9.99999993E-9 : f32
      %1076 = vector.broadcast %cst_356 : f32 to vector<8x1xf32>
      %1077 = arith.addf %1075, %1076 : vector<8x1xf32>
      %1078 = arith.divf %1071, %1077 : vector<8x1xf32>
      %1079 = arith.mulf %1064, %1078 : vector<8x1xf32>
      %1080 = vector.broadcast %cst_310 : f32 to vector<8x1xf32>
      %1081 = arith.addf %1032, %1080 : vector<8x1xf32>
      %1082 = vector.broadcast %cst_310 : f32 to vector<8x1xf32>
      %1083 = arith.addf %1031, %1082 : vector<8x1xf32>
      %1084 = arith.mulf %1078, %1083 : vector<8x1xf32>
      %1085 = arith.subf %1081, %1084 : vector<8x1xf32>
      %1086 = vector.broadcast %cst_310 : f32 to vector<8x1xf32>
      %1087 = arith.addf %1066, %1086 : vector<8x1xf32>
      %1088 = vector.broadcast %cst_310 : f32 to vector<8x1xf32>
      %1089 = arith.addf %1031, %1088 : vector<8x1xf32>
      %1090 = arith.divf %1087, %1089 : vector<8x1xf32>
      %1091 = math.log %1090 : vector<8x1xf32>
      %1092 = arith.mulf %1085, %1091 : vector<8x1xf32>
      %1093 = arith.addf %1079, %1092 : vector<8x1xf32>
      %1094 = arith.mulf %1065, %1093 : vector<8x1xf32>
      %cst_357 = arith.constant 9.99999993E-9 : f32
      %1095 = vector.broadcast %cst_357 : f32 to vector<8x1xf32>
      %1096 = arith.addf %1064, %1095 : vector<8x1xf32>
      %1097 = arith.divf %1094, %1096 : vector<8x1xf32>
      %1098 = arith.addf %1063, %1097 : vector<8x1xf32>
      %1099 = vector.extract_strided_slice %463 {offsets = [0, 18], sizes = [8, 1], strides = [1, 1]} : vector<8x25xf32> to vector<8x1xf32>
      %1100 = vector.extract_strided_slice %464 {offsets = [0, 18], sizes = [8, 1], strides = [1, 1]} : vector<8x25xf32> to vector<8x1xf32>
      %1101 = arith.addf %1066, %1099 : vector<8x1xf32>
      %1102 = arith.addf %1067, %1100 : vector<8x1xf32>
      %1103 = vector.broadcast %cst_310 : f32 to vector<8x1xf32>
      %1104 = arith.subf %1100, %1103 : vector<8x1xf32>
      %1105 = vector.broadcast %cst_311 : f32 to vector<8x1xf32>
      %1106 = arith.maximumf %1104, %1105 : vector<8x1xf32>
      %1107 = vector.broadcast %cst_310 : f32 to vector<8x1xf32>
      %1108 = arith.subf %1099, %1107 : vector<8x1xf32>
      %1109 = vector.broadcast %cst_311 : f32 to vector<8x1xf32>
      %1110 = arith.maximumf %1108, %1109 : vector<8x1xf32>
      %cst_358 = arith.constant 9.99999993E-9 : f32
      %1111 = vector.broadcast %cst_358 : f32 to vector<8x1xf32>
      %1112 = arith.addf %1110, %1111 : vector<8x1xf32>
      %1113 = arith.divf %1106, %1112 : vector<8x1xf32>
      %1114 = arith.mulf %1099, %1113 : vector<8x1xf32>
      %1115 = vector.broadcast %cst_310 : f32 to vector<8x1xf32>
      %1116 = arith.addf %1067, %1115 : vector<8x1xf32>
      %1117 = vector.broadcast %cst_310 : f32 to vector<8x1xf32>
      %1118 = arith.addf %1066, %1117 : vector<8x1xf32>
      %1119 = arith.mulf %1113, %1118 : vector<8x1xf32>
      %1120 = arith.subf %1116, %1119 : vector<8x1xf32>
      %1121 = vector.broadcast %cst_310 : f32 to vector<8x1xf32>
      %1122 = arith.addf %1101, %1121 : vector<8x1xf32>
      %1123 = vector.broadcast %cst_310 : f32 to vector<8x1xf32>
      %1124 = arith.addf %1066, %1123 : vector<8x1xf32>
      %1125 = arith.divf %1122, %1124 : vector<8x1xf32>
      %1126 = math.log %1125 : vector<8x1xf32>
      %1127 = arith.mulf %1120, %1126 : vector<8x1xf32>
      %1128 = arith.addf %1114, %1127 : vector<8x1xf32>
      %1129 = arith.mulf %1100, %1128 : vector<8x1xf32>
      %cst_359 = arith.constant 9.99999993E-9 : f32
      %1130 = vector.broadcast %cst_359 : f32 to vector<8x1xf32>
      %1131 = arith.addf %1099, %1130 : vector<8x1xf32>
      %1132 = arith.divf %1129, %1131 : vector<8x1xf32>
      %1133 = arith.addf %1098, %1132 : vector<8x1xf32>
      %1134 = vector.extract_strided_slice %463 {offsets = [0, 19], sizes = [8, 1], strides = [1, 1]} : vector<8x25xf32> to vector<8x1xf32>
      %1135 = vector.extract_strided_slice %464 {offsets = [0, 19], sizes = [8, 1], strides = [1, 1]} : vector<8x25xf32> to vector<8x1xf32>
      %1136 = arith.addf %1101, %1134 : vector<8x1xf32>
      %1137 = arith.addf %1102, %1135 : vector<8x1xf32>
      %1138 = vector.broadcast %cst_310 : f32 to vector<8x1xf32>
      %1139 = arith.subf %1135, %1138 : vector<8x1xf32>
      %1140 = vector.broadcast %cst_311 : f32 to vector<8x1xf32>
      %1141 = arith.maximumf %1139, %1140 : vector<8x1xf32>
      %1142 = vector.broadcast %cst_310 : f32 to vector<8x1xf32>
      %1143 = arith.subf %1134, %1142 : vector<8x1xf32>
      %1144 = vector.broadcast %cst_311 : f32 to vector<8x1xf32>
      %1145 = arith.maximumf %1143, %1144 : vector<8x1xf32>
      %cst_360 = arith.constant 9.99999993E-9 : f32
      %1146 = vector.broadcast %cst_360 : f32 to vector<8x1xf32>
      %1147 = arith.addf %1145, %1146 : vector<8x1xf32>
      %1148 = arith.divf %1141, %1147 : vector<8x1xf32>
      %1149 = arith.mulf %1134, %1148 : vector<8x1xf32>
      %1150 = vector.broadcast %cst_310 : f32 to vector<8x1xf32>
      %1151 = arith.addf %1102, %1150 : vector<8x1xf32>
      %1152 = vector.broadcast %cst_310 : f32 to vector<8x1xf32>
      %1153 = arith.addf %1101, %1152 : vector<8x1xf32>
      %1154 = arith.mulf %1148, %1153 : vector<8x1xf32>
      %1155 = arith.subf %1151, %1154 : vector<8x1xf32>
      %1156 = vector.broadcast %cst_310 : f32 to vector<8x1xf32>
      %1157 = arith.addf %1136, %1156 : vector<8x1xf32>
      %1158 = vector.broadcast %cst_310 : f32 to vector<8x1xf32>
      %1159 = arith.addf %1101, %1158 : vector<8x1xf32>
      %1160 = arith.divf %1157, %1159 : vector<8x1xf32>
      %1161 = math.log %1160 : vector<8x1xf32>
      %1162 = arith.mulf %1155, %1161 : vector<8x1xf32>
      %1163 = arith.addf %1149, %1162 : vector<8x1xf32>
      %1164 = arith.mulf %1135, %1163 : vector<8x1xf32>
      %cst_361 = arith.constant 9.99999993E-9 : f32
      %1165 = vector.broadcast %cst_361 : f32 to vector<8x1xf32>
      %1166 = arith.addf %1134, %1165 : vector<8x1xf32>
      %1167 = arith.divf %1164, %1166 : vector<8x1xf32>
      %1168 = arith.addf %1133, %1167 : vector<8x1xf32>
      %1169 = vector.extract_strided_slice %463 {offsets = [0, 20], sizes = [8, 1], strides = [1, 1]} : vector<8x25xf32> to vector<8x1xf32>
      %1170 = vector.extract_strided_slice %464 {offsets = [0, 20], sizes = [8, 1], strides = [1, 1]} : vector<8x25xf32> to vector<8x1xf32>
      %1171 = arith.addf %1136, %1169 : vector<8x1xf32>
      %1172 = arith.addf %1137, %1170 : vector<8x1xf32>
      %1173 = vector.broadcast %cst_310 : f32 to vector<8x1xf32>
      %1174 = arith.subf %1170, %1173 : vector<8x1xf32>
      %1175 = vector.broadcast %cst_311 : f32 to vector<8x1xf32>
      %1176 = arith.maximumf %1174, %1175 : vector<8x1xf32>
      %1177 = vector.broadcast %cst_310 : f32 to vector<8x1xf32>
      %1178 = arith.subf %1169, %1177 : vector<8x1xf32>
      %1179 = vector.broadcast %cst_311 : f32 to vector<8x1xf32>
      %1180 = arith.maximumf %1178, %1179 : vector<8x1xf32>
      %cst_362 = arith.constant 9.99999993E-9 : f32
      %1181 = vector.broadcast %cst_362 : f32 to vector<8x1xf32>
      %1182 = arith.addf %1180, %1181 : vector<8x1xf32>
      %1183 = arith.divf %1176, %1182 : vector<8x1xf32>
      %1184 = arith.mulf %1169, %1183 : vector<8x1xf32>
      %1185 = vector.broadcast %cst_310 : f32 to vector<8x1xf32>
      %1186 = arith.addf %1137, %1185 : vector<8x1xf32>
      %1187 = vector.broadcast %cst_310 : f32 to vector<8x1xf32>
      %1188 = arith.addf %1136, %1187 : vector<8x1xf32>
      %1189 = arith.mulf %1183, %1188 : vector<8x1xf32>
      %1190 = arith.subf %1186, %1189 : vector<8x1xf32>
      %1191 = vector.broadcast %cst_310 : f32 to vector<8x1xf32>
      %1192 = arith.addf %1171, %1191 : vector<8x1xf32>
      %1193 = vector.broadcast %cst_310 : f32 to vector<8x1xf32>
      %1194 = arith.addf %1136, %1193 : vector<8x1xf32>
      %1195 = arith.divf %1192, %1194 : vector<8x1xf32>
      %1196 = math.log %1195 : vector<8x1xf32>
      %1197 = arith.mulf %1190, %1196 : vector<8x1xf32>
      %1198 = arith.addf %1184, %1197 : vector<8x1xf32>
      %1199 = arith.mulf %1170, %1198 : vector<8x1xf32>
      %cst_363 = arith.constant 9.99999993E-9 : f32
      %1200 = vector.broadcast %cst_363 : f32 to vector<8x1xf32>
      %1201 = arith.addf %1169, %1200 : vector<8x1xf32>
      %1202 = arith.divf %1199, %1201 : vector<8x1xf32>
      %1203 = arith.addf %1168, %1202 : vector<8x1xf32>
      %1204 = vector.extract_strided_slice %463 {offsets = [0, 21], sizes = [8, 1], strides = [1, 1]} : vector<8x25xf32> to vector<8x1xf32>
      %1205 = vector.extract_strided_slice %464 {offsets = [0, 21], sizes = [8, 1], strides = [1, 1]} : vector<8x25xf32> to vector<8x1xf32>
      %1206 = arith.addf %1171, %1204 : vector<8x1xf32>
      %1207 = arith.addf %1172, %1205 : vector<8x1xf32>
      %1208 = vector.broadcast %cst_310 : f32 to vector<8x1xf32>
      %1209 = arith.subf %1205, %1208 : vector<8x1xf32>
      %1210 = vector.broadcast %cst_311 : f32 to vector<8x1xf32>
      %1211 = arith.maximumf %1209, %1210 : vector<8x1xf32>
      %1212 = vector.broadcast %cst_310 : f32 to vector<8x1xf32>
      %1213 = arith.subf %1204, %1212 : vector<8x1xf32>
      %1214 = vector.broadcast %cst_311 : f32 to vector<8x1xf32>
      %1215 = arith.maximumf %1213, %1214 : vector<8x1xf32>
      %cst_364 = arith.constant 9.99999993E-9 : f32
      %1216 = vector.broadcast %cst_364 : f32 to vector<8x1xf32>
      %1217 = arith.addf %1215, %1216 : vector<8x1xf32>
      %1218 = arith.divf %1211, %1217 : vector<8x1xf32>
      %1219 = arith.mulf %1204, %1218 : vector<8x1xf32>
      %1220 = vector.broadcast %cst_310 : f32 to vector<8x1xf32>
      %1221 = arith.addf %1172, %1220 : vector<8x1xf32>
      %1222 = vector.broadcast %cst_310 : f32 to vector<8x1xf32>
      %1223 = arith.addf %1171, %1222 : vector<8x1xf32>
      %1224 = arith.mulf %1218, %1223 : vector<8x1xf32>
      %1225 = arith.subf %1221, %1224 : vector<8x1xf32>
      %1226 = vector.broadcast %cst_310 : f32 to vector<8x1xf32>
      %1227 = arith.addf %1206, %1226 : vector<8x1xf32>
      %1228 = vector.broadcast %cst_310 : f32 to vector<8x1xf32>
      %1229 = arith.addf %1171, %1228 : vector<8x1xf32>
      %1230 = arith.divf %1227, %1229 : vector<8x1xf32>
      %1231 = math.log %1230 : vector<8x1xf32>
      %1232 = arith.mulf %1225, %1231 : vector<8x1xf32>
      %1233 = arith.addf %1219, %1232 : vector<8x1xf32>
      %1234 = arith.mulf %1205, %1233 : vector<8x1xf32>
      %cst_365 = arith.constant 9.99999993E-9 : f32
      %1235 = vector.broadcast %cst_365 : f32 to vector<8x1xf32>
      %1236 = arith.addf %1204, %1235 : vector<8x1xf32>
      %1237 = arith.divf %1234, %1236 : vector<8x1xf32>
      %1238 = arith.addf %1203, %1237 : vector<8x1xf32>
      %1239 = vector.extract_strided_slice %463 {offsets = [0, 22], sizes = [8, 1], strides = [1, 1]} : vector<8x25xf32> to vector<8x1xf32>
      %1240 = vector.extract_strided_slice %464 {offsets = [0, 22], sizes = [8, 1], strides = [1, 1]} : vector<8x25xf32> to vector<8x1xf32>
      %1241 = arith.addf %1206, %1239 : vector<8x1xf32>
      %1242 = arith.addf %1207, %1240 : vector<8x1xf32>
      %1243 = vector.broadcast %cst_310 : f32 to vector<8x1xf32>
      %1244 = arith.subf %1240, %1243 : vector<8x1xf32>
      %1245 = vector.broadcast %cst_311 : f32 to vector<8x1xf32>
      %1246 = arith.maximumf %1244, %1245 : vector<8x1xf32>
      %1247 = vector.broadcast %cst_310 : f32 to vector<8x1xf32>
      %1248 = arith.subf %1239, %1247 : vector<8x1xf32>
      %1249 = vector.broadcast %cst_311 : f32 to vector<8x1xf32>
      %1250 = arith.maximumf %1248, %1249 : vector<8x1xf32>
      %cst_366 = arith.constant 9.99999993E-9 : f32
      %1251 = vector.broadcast %cst_366 : f32 to vector<8x1xf32>
      %1252 = arith.addf %1250, %1251 : vector<8x1xf32>
      %1253 = arith.divf %1246, %1252 : vector<8x1xf32>
      %1254 = arith.mulf %1239, %1253 : vector<8x1xf32>
      %1255 = vector.broadcast %cst_310 : f32 to vector<8x1xf32>
      %1256 = arith.addf %1207, %1255 : vector<8x1xf32>
      %1257 = vector.broadcast %cst_310 : f32 to vector<8x1xf32>
      %1258 = arith.addf %1206, %1257 : vector<8x1xf32>
      %1259 = arith.mulf %1253, %1258 : vector<8x1xf32>
      %1260 = arith.subf %1256, %1259 : vector<8x1xf32>
      %1261 = vector.broadcast %cst_310 : f32 to vector<8x1xf32>
      %1262 = arith.addf %1241, %1261 : vector<8x1xf32>
      %1263 = vector.broadcast %cst_310 : f32 to vector<8x1xf32>
      %1264 = arith.addf %1206, %1263 : vector<8x1xf32>
      %1265 = arith.divf %1262, %1264 : vector<8x1xf32>
      %1266 = math.log %1265 : vector<8x1xf32>
      %1267 = arith.mulf %1260, %1266 : vector<8x1xf32>
      %1268 = arith.addf %1254, %1267 : vector<8x1xf32>
      %1269 = arith.mulf %1240, %1268 : vector<8x1xf32>
      %cst_367 = arith.constant 9.99999993E-9 : f32
      %1270 = vector.broadcast %cst_367 : f32 to vector<8x1xf32>
      %1271 = arith.addf %1239, %1270 : vector<8x1xf32>
      %1272 = arith.divf %1269, %1271 : vector<8x1xf32>
      %1273 = arith.addf %1238, %1272 : vector<8x1xf32>
      %1274 = vector.extract_strided_slice %463 {offsets = [0, 23], sizes = [8, 1], strides = [1, 1]} : vector<8x25xf32> to vector<8x1xf32>
      %1275 = vector.extract_strided_slice %464 {offsets = [0, 23], sizes = [8, 1], strides = [1, 1]} : vector<8x25xf32> to vector<8x1xf32>
      %1276 = arith.addf %1241, %1274 : vector<8x1xf32>
      %1277 = arith.addf %1242, %1275 : vector<8x1xf32>
      %1278 = vector.broadcast %cst_310 : f32 to vector<8x1xf32>
      %1279 = arith.subf %1275, %1278 : vector<8x1xf32>
      %1280 = vector.broadcast %cst_311 : f32 to vector<8x1xf32>
      %1281 = arith.maximumf %1279, %1280 : vector<8x1xf32>
      %1282 = vector.broadcast %cst_310 : f32 to vector<8x1xf32>
      %1283 = arith.subf %1274, %1282 : vector<8x1xf32>
      %1284 = vector.broadcast %cst_311 : f32 to vector<8x1xf32>
      %1285 = arith.maximumf %1283, %1284 : vector<8x1xf32>
      %cst_368 = arith.constant 9.99999993E-9 : f32
      %1286 = vector.broadcast %cst_368 : f32 to vector<8x1xf32>
      %1287 = arith.addf %1285, %1286 : vector<8x1xf32>
      %1288 = arith.divf %1281, %1287 : vector<8x1xf32>
      %1289 = arith.mulf %1274, %1288 : vector<8x1xf32>
      %1290 = vector.broadcast %cst_310 : f32 to vector<8x1xf32>
      %1291 = arith.addf %1242, %1290 : vector<8x1xf32>
      %1292 = vector.broadcast %cst_310 : f32 to vector<8x1xf32>
      %1293 = arith.addf %1241, %1292 : vector<8x1xf32>
      %1294 = arith.mulf %1288, %1293 : vector<8x1xf32>
      %1295 = arith.subf %1291, %1294 : vector<8x1xf32>
      %1296 = vector.broadcast %cst_310 : f32 to vector<8x1xf32>
      %1297 = arith.addf %1276, %1296 : vector<8x1xf32>
      %1298 = vector.broadcast %cst_310 : f32 to vector<8x1xf32>
      %1299 = arith.addf %1241, %1298 : vector<8x1xf32>
      %1300 = arith.divf %1297, %1299 : vector<8x1xf32>
      %1301 = math.log %1300 : vector<8x1xf32>
      %1302 = arith.mulf %1295, %1301 : vector<8x1xf32>
      %1303 = arith.addf %1289, %1302 : vector<8x1xf32>
      %1304 = arith.mulf %1275, %1303 : vector<8x1xf32>
      %cst_369 = arith.constant 9.99999993E-9 : f32
      %1305 = vector.broadcast %cst_369 : f32 to vector<8x1xf32>
      %1306 = arith.addf %1274, %1305 : vector<8x1xf32>
      %1307 = arith.divf %1304, %1306 : vector<8x1xf32>
      %1308 = arith.addf %1273, %1307 : vector<8x1xf32>
      %1309 = vector.extract_strided_slice %463 {offsets = [0, 24], sizes = [8, 1], strides = [1, 1]} : vector<8x25xf32> to vector<8x1xf32>
      %1310 = vector.extract_strided_slice %464 {offsets = [0, 24], sizes = [8, 1], strides = [1, 1]} : vector<8x25xf32> to vector<8x1xf32>
      %1311 = arith.addf %1276, %1309 : vector<8x1xf32>
      %1312 = vector.broadcast %cst_310 : f32 to vector<8x1xf32>
      %1313 = arith.subf %1310, %1312 : vector<8x1xf32>
      %1314 = vector.broadcast %cst_311 : f32 to vector<8x1xf32>
      %1315 = arith.maximumf %1313, %1314 : vector<8x1xf32>
      %1316 = vector.broadcast %cst_310 : f32 to vector<8x1xf32>
      %1317 = arith.subf %1309, %1316 : vector<8x1xf32>
      %1318 = vector.broadcast %cst_311 : f32 to vector<8x1xf32>
      %1319 = arith.maximumf %1317, %1318 : vector<8x1xf32>
      %cst_370 = arith.constant 9.99999993E-9 : f32
      %1320 = vector.broadcast %cst_370 : f32 to vector<8x1xf32>
      %1321 = arith.addf %1319, %1320 : vector<8x1xf32>
      %1322 = arith.divf %1315, %1321 : vector<8x1xf32>
      %1323 = arith.mulf %1309, %1322 : vector<8x1xf32>
      %1324 = vector.broadcast %cst_310 : f32 to vector<8x1xf32>
      %1325 = arith.addf %1277, %1324 : vector<8x1xf32>
      %1326 = vector.broadcast %cst_310 : f32 to vector<8x1xf32>
      %1327 = arith.addf %1276, %1326 : vector<8x1xf32>
      %1328 = arith.mulf %1322, %1327 : vector<8x1xf32>
      %1329 = arith.subf %1325, %1328 : vector<8x1xf32>
      %1330 = vector.broadcast %cst_310 : f32 to vector<8x1xf32>
      %1331 = arith.addf %1311, %1330 : vector<8x1xf32>
      %1332 = vector.broadcast %cst_310 : f32 to vector<8x1xf32>
      %1333 = arith.addf %1276, %1332 : vector<8x1xf32>
      %1334 = arith.divf %1331, %1333 : vector<8x1xf32>
      %1335 = math.log %1334 : vector<8x1xf32>
      %1336 = arith.mulf %1329, %1335 : vector<8x1xf32>
      %1337 = arith.addf %1323, %1336 : vector<8x1xf32>
      %1338 = arith.mulf %1310, %1337 : vector<8x1xf32>
      %cst_371 = arith.constant 9.99999993E-9 : f32
      %1339 = vector.broadcast %cst_371 : f32 to vector<8x1xf32>
      %1340 = arith.addf %1309, %1339 : vector<8x1xf32>
      %1341 = arith.divf %1338, %1340 : vector<8x1xf32>
      %1342 = arith.addf %1308, %1341 : vector<8x1xf32>
      %1343 = arith.divf %1342, %465 : vector<8x1xf32>
      %c0_372 = arith.constant 0 : index
      %c0_373 = arith.constant 0 : index
      %1344 = vector.load %arg4[%c0_372, %c0_373] : memref<8x1xf32, #tpu.memory_space<vmem>>, vector<8x1xf32>
      tpu.vector_store %arg4[%c0_372, %c0_373], %1343 {strides = array<i32>} : memref<8x1xf32, #tpu.memory_space<vmem>>, vector<8x1xf32>,
    } else {
    }
    return
  }
  func.func @transform_0(%arg0: i32, %arg1: i32) -> (i32, i32) {
    %c0_i32 = arith.constant 0 : i32
    return %arg0, %arg1 : i32, i32
  }
  func.func @transform_1(%arg0: i32, %arg1: i32) -> (i32, i32) {
    %c0_i32 = arith.constant 0 : i32
    return %arg0, %arg1 : i32, i32
  }
  func.func @transform_2(%arg0: i32, %arg1: i32) -> (i32, i32) {
    %c0_i32 = arith.constant 0 : i32
    %c0_i32_0 = arith.constant 0 : i32
    return %arg0, %c0_i32 : i32, i32
  }
}

</mosaic_0001>

<llo_original>
// kernel: tpu_custom_call.1
$region0: #{tpu_custom_call.1}
  #allocation0 [shape = 'u32[]', space=smem, size = 0x4, offset = 0x4, fixed_abs, tag = 'smem constant byte address 0x4 - core index']
  #allocation1 [shape = 'u32[144,128]{1,0:T(1,128)}', space=vmem, size = 0x12000, scoped, tag = 'internal scratch']
  #allocation2 [shape = 'f32[8,25]{1,0:T(8,128)}', space=vmem, size = 0x1000, scoped, tag = 'scratch operand']
  #allocation3 [shape = 'f32[8,25]{1,0:T(8,128)}', space=vmem, size = 0x1000, scoped, tag = 'scratch operand']
  #allocation4 [shape = 'f32[8,1]{1,0:T(8,128)}', space=vmem, size = 0x1000, scoped, tag = 'scratch operand']
  %s0 = inlined_call_operand.hbm [shape: f32[16,512], index: 0, kind: input, shape index: {}]
  %s1 = inlined_call_operand.hbm [shape: f32[16,512], index: 1, kind: input, shape index: {}]
  %s2 = inlined_call_operand.vmem [shape: f32[16,1], index: 2, kind: output, shape index: {}]
  %s3 = sld [smem:[#allocation0]]
  $region57: #{tpu_custom_call.1} parent=0
    _
  %s5 = ssub.s32 1, %s3
  %s6 = scalar_select 0, %s5, %s3
  $region1: #{tpu_custom_call.1} parent=0
    #allocation5 [shape = 'u8[16384]{0}', space=vmem, size = 0x4000, scoped, tag = 'input window, operand 0']
    #allocation6 [shape = 's32[2]{0}', space=sflag, size = 0x8, scoped, tag = 'scoped memory for tpu_custom_call.1']
    #allocation7 [shape = 'u8[16384]{0}', space=vmem, size = 0x4000, scoped, tag = 'input window, operand 1']
    #allocation8 [shape = 's32[2]{0}', space=sflag, size = 0x8, scoped, tag = 'scoped memory for tpu_custom_call.1']
    %7 = vsyncpa [#allocation6], 0
    %s8 = scalar_lea.sflag [#allocation6], 1
    %9 = vsyncpa %s8, 0
    %10 = vsyncpa [#allocation8], 0
    %s11 = scalar_lea.sflag [#allocation8], 1
    %12 = vsyncpa %s11, 0
    loop: start=0, step=1, limit=6
    $region2: #{tpu_custom_call.1} parent=1 // loop_pre_header
      _
    $region3: #{tpu_custom_call.1} parent=1 // loop_header
      %s14 = sphi 0, %s18
      %p15 = scmp.ge.s32.totalorder %s14, 6
      %s21 = sphi 0, %s33
      %s22 = sphi 0, %s29
      %s23 = sphi 0, %s21
      %s24 = sphi 0, %s22
      %s25 = sphi 0, %s23
      %s26 = sphi 0, %s24
      %s38 = sphi 0, %s40
      %s41 = sphi 0, %s38
      %s42 = sphi 0, %s41
      %s58 = sphi 0, %s42
      %s66 = sphi 0, %s68
      %s69 = sphi 0, %s66
      %s70 = sphi 0, %s69
      %s86 = sphi 0, %s70
      %s92 = sphi 0, %s94
      %s95 = sphi 0, %s92
      %s96 = sphi 0, %s95
      %s112 = sphi 0, %s96
    $region4: #{tpu_custom_call.1} parent=1 // loop_header_branch
      %17 = sbr.rel (%p15) target = $region8
    $region5: #{tpu_custom_call.1} parent=1 // loop_body
      %s19 = ssub.s32 %s14, 1
      %s20 = ssub.s32 %s14, 2
      %s27 = sadd.s32 1, %s22
      %p28 = scmp.ge.s32.totalorder %s27, 2
      %s29 = scalar_select %p28, 0, %s27
      %s30 = sadd.s32 1, %s21
      %s31 = scalar_select %p28, %s30, %s21
      %p32 = scmp.ge.s32.totalorder %s31, 2
      %s33 = scalar_select %p32, 0, %s31
      %s34 = ssub.s32 %s21, %s33
      %s35 = ssub.s32 %s22, %s29
      %s36 = sor.u32 %s34, %s35
      %p37 = scmp.eq.s32.totalorder %s36, 0
      %s39 = sadd.s32 %s38, 1
      %s40 = scalar_select %p37, %s38, %s39
      %p43 = pneg %p37
      %p44 = scmp.eq.s32.totalorder %s14, 3
      %p45 = por %p43, %p44
      %p46 = scmp.ne.s32.totalorder %s38, %s41
      %p47 = scmp.eq.s32.totalorder %s14, 0
      %p48 = por %p46, %p47
      %p49 = scmp.ne.s32.totalorder %s38, %s41
      %p50 = scmp.eq.s32.totalorder %s19, 3
      %p51 = por %p49, %p50
      %p52 = scmp.ne.s32.totalorder %s41, %s42
      %p53 = scmp.eq.s32.totalorder %s19, 0
      %p54 = por %p52, %p53
      %p55 = scmp.ne.s32.totalorder %s41, %s42
      %p56 = scmp.eq.s32.totalorder %s20, 3
      %p57 = por %p55, %p56
      %p59 = scmp.ne.s32.totalorder %s42, %s58
      %p60 = scmp.eq.s32.totalorder %s20, 0
      %p61 = por %p59, %p60
      %s62 = ssub.s32 %s21, %s33
      %s63 = ssub.s32 %s22, %s29
      %s64 = sor.u32 %s62, %s63
      %p65 = scmp.eq.s32.totalorder %s64, 0
      %s67 = sadd.s32 %s66, 1
      %s68 = scalar_select %p65, %s66, %s67
      %p71 = pneg %p65
      %p72 = scmp.eq.s32.totalorder %s14, 3
      %p73 = por %p71, %p72
      %p74 = scmp.ne.s32.totalorder %s66, %s69
      %p75 = scmp.eq.s32.totalorder %s14, 0
      %p76 = por %p74, %p75
      %p77 = scmp.ne.s32.totalorder %s66, %s69
      %p78 = scmp.eq.s32.totalorder %s19, 3
      %p79 = por %p77, %p78
      %p80 = scmp.ne.s32.totalorder %s69, %s70
      %p81 = scmp.eq.s32.totalorder %s19, 0
      %p82 = por %p80, %p81
      %p83 = scmp.ne.s32.totalorder %s69, %s70
      %p84 = scmp.eq.s32.totalorder %s20, 3
      %p85 = por %p83, %p84
      %p87 = scmp.ne.s32.totalorder %s70, %s86
      %p88 = scmp.eq.s32.totalorder %s20, 0
      %p89 = por %p87, %p88
      %s90 = ssub.s32 %s21, %s33
      %p91 = scmp.eq.s32.totalorder %s90, 0
      %s93 = sadd.s32 %s92, 1
      %s94 = scalar_select %p91, %s92, %s93
      %p97 = pneg %p91
      %p98 = scmp.eq.s32.totalorder %s14, 3
      %p99 = por %p97, %p98
      %p100 = scmp.ne.s32.totalorder %s92, %s95
      %p101 = scmp.eq.s32.totalorder %s14, 0
      %p102 = por %p100, %p101
      %p103 = scmp.ne.s32.totalorder %s92, %s95
      %p104 = scmp.eq.s32.totalorder %s19, 3
      %p105 = por %p103, %p104
      %p106 = scmp.ne.s32.totalorder %s95, %s96
      %p107 = scmp.eq.s32.totalorder %s19, 0
      %p108 = por %p106, %p107
      %p109 = scmp.ne.s32.totalorder %s95, %s96
      %p110 = scmp.eq.s32.totalorder %s20, 3
      %p111 = por %p109, %p110
      %p113 = scmp.ne.s32.totalorder %s96, %s112
      %p114 = scmp.eq.s32.totalorder %s20, 0
      %p115 = por %p113, %p114
      %p116 = scmp.le.s32.totalorder 1, %s14
      %p117 = scmp.lt.s32.totalorder %s14, 5
      %p118 = pnand %p116, %p117
      %p119 = pneg %p118
      // Predicated region
      $region9: #{tpu_custom_call.1} parent=5 // pred_check
        _
      $region10: #{tpu_custom_call.1} parent=5 // pred_check_branch
        %121 = sbr.rel (%p118) target = $region12
      $region11: #{tpu_custom_call.1} parent=5 // pred_region
        %s122 = ssub.s32 %s14, 1
      $region12: #{tpu_custom_call.1} parent=5 // pred_fallthru
        _
      %p123 = scmp.lt.s32.totalorder %s14, 4
      // Predicated region
      $region13: #{tpu_custom_call.1} parent=5 // pred_check
        %p124 = pneg %p123
      $region14: #{tpu_custom_call.1} parent=5 // pred_check_branch
        %126 = sbr.rel (%p124) target = $region16
      $region15: #{tpu_custom_call.1} parent=5 // pred_region
        // Predicated region
        $region17: #{tpu_custom_call.1} parent=15 // pred_check
          %p127 = pneg %p48
        $region18: #{tpu_custom_call.1} parent=15 // pred_check_branch
          %129 = sbr.rel (%p127) target = $region20
        $region19: #{tpu_custom_call.1} parent=15 // pred_region
          %s130 = sand.u32 %s38, 1
          %s131 = scalar_lea.sflag [#allocation6], %s130
          %s132 = sand.u32 %s38, 1
          %s133 = smul.addr %s132, 16
          %s134 = scalar_lea.vmem [#allocation5], %s133
          %s135 = smul.u32 2, %s22
          %s137 = ssub.s32 256, 256
          %138 = vsyncadd %s131, %s137
          %s139 = smul.addr %s21, 4
          %s140 = sadd.s32 %s135, %s139
          %s141 = smul.addr %s140, 128
          %s142 = scalar_lea.hbm %s0, %s141
          %s144 = sshll.u32 %s134, 4
          %s145 = int_to_ptr.vmem [resolvable:$true] %s144
          %147 = dma.hbm_to_vmem [thread:$0]  %s142, 256, %s145, %s131
        $region20: #{tpu_custom_call.1} parent=15 // pred_fallthru
          _
        // Predicated region
        $region21: #{tpu_custom_call.1} parent=15 // pred_check
          %p148 = pneg %p76
        $region22: #{tpu_custom_call.1} parent=15 // pred_check_branch
          %150 = sbr.rel (%p148) target = $region24
        $region23: #{tpu_custom_call.1} parent=15 // pred_region
          %s151 = sand.u32 %s66, 1
          %s152 = scalar_lea.sflag [#allocation8], %s151
          %s153 = sand.u32 %s66, 1
          %s154 = smul.addr %s153, 16
          %s155 = scalar_lea.vmem [#allocation7], %s154
          %s156 = smul.u32 2, %s22
          %s158 = ssub.s32 256, 256
          %159 = vsyncadd %s152, %s158
          %s160 = smul.addr %s21, 4
          %s161 = sadd.s32 %s156, %s160
          %s162 = smul.addr %s161, 128
          %s163 = scalar_lea.hbm %s1, %s162
          %s165 = sshll.u32 %s155, 4
          %s166 = int_to_ptr.vmem [resolvable:$true] %s165
          %168 = dma.hbm_to_vmem [thread:$0]  %s163, 256, %s166, %s152
        $region24: #{tpu_custom_call.1} parent=15 // pred_fallthru
          _
      $region16: #{tpu_custom_call.1} parent=5 // pred_fallthru
        _
      %p169 = scmp.le.s32.totalorder 1, %s14
      %p170 = scmp.lt.s32.totalorder %s14, 5
      %p171 = pnand %p169, %p170
      %p172 = pneg %p171
      // Predicated region
      $region25: #{tpu_custom_call.1} parent=5 // pred_check
        _
      $region26: #{tpu_custom_call.1} parent=5 // pred_check_branch
        %174 = sbr.rel (%p171) target = $region28
      $region27: #{tpu_custom_call.1} parent=5 // pred_region
        %s175 = ssub.s32 %s14, 1
        %s176 = sand.u32 %s41, 1
        %s177 = scalar_lea.sflag [#allocation6], %s176
        %s178 = sand.u32 %s41, 1
        %s179 = smul.addr %s178, 16
        %s180 = scalar_lea.vmem [#allocation5], %s179
        // Predicated region
        $region29: #{tpu_custom_call.1} parent=27 // pred_check
          %p181 = pneg %p54
        $region30: #{tpu_custom_call.1} parent=27 // pred_check_branch
          %183 = sbr.rel (%p181) target = $region32
        $region31: #{tpu_custom_call.1} parent=27 // pred_region
          %184 = dma.done %s177, 256
        $region32: #{tpu_custom_call.1} parent=27 // pred_fallthru
          _
        %s185 = sand.u32 %s69, 1
        %s186 = scalar_lea.sflag [#allocation8], %s185
        %s187 = sand.u32 %s69, 1
        %s188 = smul.addr %s187, 16
        %s189 = scalar_lea.vmem [#allocation7], %s188
        // Predicated region
        $region33: #{tpu_custom_call.1} parent=27 // pred_check
          %p190 = pneg %p82
        $region34: #{tpu_custom_call.1} parent=27 // pred_check_branch
          %192 = sbr.rel (%p190) target = $region36
        $region35: #{tpu_custom_call.1} parent=27 // pred_region
          %193 = dma.done %s186, 256
        $region36: #{tpu_custom_call.1} parent=27 // pred_fallthru
          _
        %s194 = sand.u32 %s41, 1
        %s195 = scalar_lea.sflag [#allocation6], %s194
        %s196 = sand.u32 %s41, 1
        %s197 = smul.addr %s196, 16
        %s198 = scalar_lea.vmem [#allocation5], %s197
        %p199 = pneg %p54
        %p200 = pneg %p51
        %s201 = sand.u32 %s69, 1
        %s202 = scalar_lea.sflag [#allocation8], %s201
        %s203 = sand.u32 %s69, 1
        %s204 = smul.addr %s203, 16
        %s205 = scalar_lea.vmem [#allocation7], %s204
        %p206 = pneg %p82
        %p207 = pneg %p79
        %p208 = pneg %p108
        %p209 = pneg %p105
        %p210 = scmp.lt.s32.totalorder %s23, 1
        %s211 = scalar_select %p210, %s23, 1
        %s212 = smul.addr %s211, 8
        %s213 = scalar_lea.vmem %s2, %s212
        %s214 = smul.u32 2, %s24
        %s215 = smul.u32 2, %s24
        %p216 = scmp.lt.s32.totalorder %s23, 1
        %s217 = scalar_select %p216, %s23, 1
        %s218 = smul.addr %s217, 8
        %s219 = scalar_lea.vmem %s2, %s218
        %p220 = scmp.eq.s32.totalorder %s24, 0
        // Predicated region
        $region37: #{tpu_custom_call.1} parent=27 // pred_check
          %p221 = pneg %p220
        $region38: #{tpu_custom_call.1} parent=27 // pred_check_branch
          %223 = sbr.rel (%p221) target = $region40
        $region39: #{tpu_custom_call.1} parent=27 // pred_region
          %vm224 = vcmask 203776
          %225 = vst.msk [vmem:[#allocation2] sm:$0xff] %vm224, 0.0
          %226 = vst.msk [vmem:[#allocation3] sm:$0xff] %vm224, 0.0
          %vm227 = vcmask 7168
          %228 = vst.msk [vmem:[#allocation4] sm:$0xff] %vm227, 0.0
        $region40: #{tpu_custom_call.1} parent=27 // pred_fallthru
          _
        %v229 = vld [vmem:[%s189] sm:$0xff]
        %v230 = vld [vmem:[%s189 + $0x8] sm:$0xff]
        %v231 = vld [vmem:[%s180] sm:$0xff]
        %v232 = vld [vmem:[%s180 + $0x8] sm:$0xff]
        %v233 = vmul.f32 %v231, 24.0
        %v234 = vmul.f32 %v232, 24.0
        %v235 = vld [vmem:[#allocation4] sm:$0xff]
        %v236 = vadd.f32 %v229, %v230
        %237 = vadd.xlane.f32.xlu0 %v236
        %v238 = vpop.xlane.xlu0 %237
        %v239 = vadd.f32 %v235, %v238
        %vm240 = vcmask 7168
        %241 = vst.msk [vmem:[#allocation4] sm:$0xff] %vm240, %v239
        %v242 = vsub.f32 %v233, 23.0
        %v243 = vsub.f32 %v234, 23.0
        %v244 = vmin.f32 %v242, 1.0
        %v245 = vmin.f32 %v243, 1.0
        %v246 = vmax.f32 %v244, 0.0
        %v247 = vmax.f32 %v245, 0.0
        %v248 = vld [vmem:[#allocation2] sm:$0xff]
        %v249 = vadd.f32 %v246, %v247
        %250 = vadd.xlane.f32.xlu0 %v249
        %v251 = vpop.xlane.xlu0 %250
        %v252 = vadd.f32 %v248, %v251
        %253 = vst.msk [vmem:[#allocation2] sm:$0xff] %vm240, %v252
        %v254 = vld [vmem:[#allocation3] sm:$0xff]
        %v255 = vmul.f32 %v246, %v229
        %v256 = vmul.f32 %v247, %v230
        %v257 = vadd.f32 %v255, %v256
        %258 = vadd.xlane.f32.xlu0 %v257
        %v259 = vpop.xlane.xlu0 %258
        %v260 = vadd.f32 %v254, %v259
        %261 = vst.msk [vmem:[#allocation3] sm:$0xff] %vm240, %v260
        %v262 = vand.u32 2147483647, %v242
        %v263 = vand.u32 2147483647, %v243
        %v264 = vsub.f32 1.0, %v262
        %v265 = vsub.f32 1.0, %v263
        %v266 = vmax.f32 %v264, 0.0
        %v267 = vmax.f32 %v265, 0.0
        %v268 = vld [vmem:[#allocation2] sm:$0xff]
        %v269 = vadd.f32 %v266, %v267
        %270 = vadd.xlane.f32.xlu0 %v269
        %v271 = vpop.xlane.xlu0 %270
        %v272 = vadd.f32 %v268, %v271
        %vm273 = vcmask 15368
        %274 = vst.msk [vmem:[#allocation2] sm:$0xff] %vm273, %v272
        %v275 = vld [vmem:[#allocation3] sm:$0xff]
        %v276 = vmul.f32 %v266, %v229
        %v277 = vmul.f32 %v267, %v230
        %v278 = vadd.f32 %v276, %v277
        %279 = vadd.xlane.f32.xlu0 %v278
        %v280 = vpop.xlane.xlu0 %279
        %v281 = vadd.f32 %v275, %v280
        %282 = vst.msk [vmem:[#allocation3] sm:$0xff] %vm273, %v281
        %v283 = vsub.f32 %v233, 22.0
        %v284 = vsub.f32 %v234, 22.0
        %v285 = vand.u32 2147483647, %v283
        %v286 = vand.u32 2147483647, %v284
        %v287 = vsub.f32 1.0, %v285
        %v288 = vsub.f32 1.0, %v286
        %v289 = vmax.f32 %v287, 0.0
        %v290 = vmax.f32 %v288, 0.0
        %v291 = vld [vmem:[#allocation2] sm:$0xff]
        %v292 = vadd.f32 %v289, %v290
        %293 = vadd.xlane.f32.xlu0 %v292
        %v294 = vpop.xlane.xlu0 %293
        %v295 = vadd.f32 %v291, %v294
        %vm296 = vcmask 23568
        %297 = vst.msk [vmem:[#allocation2] sm:$0xff] %vm296, %v295
        %v298 = vld [vmem:[#allocation3] sm:$0xff]
        %v299 = vmul.f32 %v289, %v229
        %v300 = vmul.f32 %v290, %v230
        %v301 = vadd.f32 %v299, %v300
        %302 = vadd.xlane.f32.xlu0 %v301
        %v303 = vpop.xlane.xlu0 %302
        %v304 = vadd.f32 %v298, %v303
        %305 = vst.msk [vmem:[#allocation3] sm:$0xff] %vm296, %v304
        %v306 = vsub.f32 %v233, 21.0
        %v307 = vsub.f32 %v234, 21.0
        %v308 = vand.u32 2147483647, %v306
        %v309 = vand.u32 2147483647, %v307
        %v310 = vsub.f32 1.0, %v308
        %v311 = vsub.f32 1.0, %v309
        %v312 = vmax.f32 %v310, 0.0
        %v313 = vmax.f32 %v311, 0.0
        %v314 = vld [vmem:[#allocation2] sm:$0xff]
        %v315 = vadd.f32 %v312, %v313
        %316 = vadd.xlane.f32.xlu0 %v315
        %v317 = vpop.xlane.xlu0 %316
        %v318 = vadd.f32 %v314, %v317
        %vm319 = vcmask 31768
        %320 = vst.msk [vmem:[#allocation2] sm:$0xff] %vm319, %v318
        %v321 = vld [vmem:[#allocation3] sm:$0xff]
        %v322 = vmul.f32 %v312, %v229
        %v323 = vmul.f32 %v313, %v230
        %v324 = vadd.f32 %v322, %v323
        %325 = vadd.xlane.f32.xlu0 %v324
        %v326 = vpop.xlane.xlu0 %325
        %v327 = vadd.f32 %v321, %v326
        %328 = vst.msk [vmem:[#allocation3] sm:$0xff] %vm319, %v327
        %v329 = vsub.f32 %v233, 20.0
        %v330 = vsub.f32 %v234, 20.0
        %v331 = vand.u32 2147483647, %v329
        %v332 = vand.u32 2147483647, %v330
        %v333 = vsub.f32 1.0, %v331
        %v334 = vsub.f32 1.0, %v332
        %v335 = vmax.f32 %v333, 0.0
        %v336 = vmax.f32 %v334, 0.0
        %v337 = vld [vmem:[#allocation2] sm:$0xff]
        %v338 = vadd.f32 %v335, %v336
        %339 = vadd.xlane.f32.xlu0 %v338
        %v340 = vpop.xlane.xlu0 %339
        %v341 = vadd.f32 %v337, %v340
        %vm342 = vcmask 39968
        %343 = vst.msk [vmem:[#allocation2] sm:$0xff] %vm342, %v341
        %v344 = vld [vmem:[#allocation3] sm:$0xff]
        %v345 = vmul.f32 %v335, %v229
        %v346 = vmul.f32 %v336, %v230
        %v347 = vadd.f32 %v345, %v346
        %348 = vadd.xlane.f32.xlu0 %v347
        %v349 = vpop.xlane.xlu0 %348
        %v350 = vadd.f32 %v344, %v349
        %351 = vst.msk [vmem:[#allocation3] sm:$0xff] %vm342, %v350
        %v352 = vsub.f32 %v233, 19.0
        %v353 = vsub.f32 %v234, 19.0
        %v354 = vand.u32 2147483647, %v352
        %v355 = vand.u32 2147483647, %v353
        %v356 = vsub.f32 1.0, %v354
        %v357 = vsub.f32 1.0, %v355
        %v358 = vmax.f32 %v356, 0.0
        %v359 = vmax.f32 %v357, 0.0
        %v360 = vld [vmem:[#allocation2] sm:$0xff]
        %v361 = vadd.f32 %v358, %v359
        %362 = vadd.xlane.f32.xlu0 %v361
        %v363 = vpop.xlane.xlu0 %362
        %v364 = vadd.f32 %v360, %v363
        %vm365 = vcmask 48168
        %366 = vst.msk [vmem:[#allocation2] sm:$0xff] %vm365, %v364
        %v367 = vld [vmem:[#allocation3] sm:$0xff]
        %v368 = vmul.f32 %v358, %v229
        %v369 = vmul.f32 %v359, %v230
        %v370 = vadd.f32 %v368, %v369
        %371 = vadd.xlane.f32.xlu0 %v370
        %v372 = vpop.xlane.xlu0 %371
        %v373 = vadd.f32 %v367, %v372
        %374 = vst.msk [vmem:[#allocation3] sm:$0xff] %vm365, %v373
        %v375 = vsub.f32 %v233, 18.0
        %v376 = vsub.f32 %v234, 18.0
        %v377 = vand.u32 2147483647, %v375
        %v378 = vand.u32 2147483647, %v376
        %v379 = vsub.f32 1.0, %v377
        %v380 = vsub.f32 1.0, %v378
        %v381 = vmax.f32 %v379, 0.0
        %v382 = vmax.f32 %v380, 0.0
        %v383 = vld [vmem:[#allocation2] sm:$0xff]
        %v384 = vadd.f32 %v381, %v382
        %385 = vadd.xlane.f32.xlu0 %v384
        %v386 = vpop.xlane.xlu0 %385
        %v387 = vadd.f32 %v383, %v386
        %vm388 = vcmask 56368
        %389 = vst.msk [vmem:[#allocation2] sm:$0xff] %vm388, %v387
        %v390 = vld [vmem:[#allocation3] sm:$0xff]
        %v391 = vmul.f32 %v381, %v229
        %v392 = vmul.f32 %v382, %v230
        %v393 = vadd.f32 %v391, %v392
        %394 = vadd.xlane.f32.xlu0 %v393
        %v395 = vpop.xlane.xlu0 %394
        %v396 = vadd.f32 %v390, %v395
        %397 = vst.msk [vmem:[#allocation3] sm:$0xff] %vm388, %v396
        %v398 = vsub.f32 %v233, 17.0
        %v399 = vsub.f32 %v234, 17.0
        %v400 = vand.u32 2147483647, %v398
        %v401 = vand.u32 2147483647, %v399
        %v402 = vsub.f32 1.0, %v400
        %v403 = vsub.f32 1.0, %v401
        %v404 = vmax.f32 %v402, 0.0
        %v405 = vmax.f32 %v403, 0.0
        %v406 = vld [vmem:[#allocation2] sm:$0xff]
        %v407 = vadd.f32 %v404, %v405
        %408 = vadd.xlane.f32.xlu0 %v407
        %v409 = vpop.xlane.xlu0 %408
        %v410 = vadd.f32 %v406, %v409
        %vm411 = vcmask 64568
        %412 = vst.msk [vmem:[#allocation2] sm:$0xff] %vm411, %v410
        %v413 = vld [vmem:[#allocation3] sm:$0xff]
        %v414 = vmul.f32 %v404, %v229
        %v415 = vmul.f32 %v405, %v230
        %v416 = vadd.f32 %v414, %v415
        %417 = vadd.xlane.f32.xlu0 %v416
        %v418 = vpop.xlane.xlu0 %417
        %v419 = vadd.f32 %v413, %v418
        %420 = vst.msk [vmem:[#allocation3] sm:$0xff] %vm411, %v419
        %v421 = vsub.f32 %v233, 16.0
        %v422 = vsub.f32 %v234, 16.0
        %v423 = vand.u32 2147483647, %v421
        %v424 = vand.u32 2147483647, %v422
        %v425 = vsub.f32 1.0, %v423
        %v426 = vsub.f32 1.0, %v424
        %v427 = vmax.f32 %v425, 0.0
        %v428 = vmax.f32 %v426, 0.0
        %v429 = vld [vmem:[#allocation2] sm:$0xff]
        %v430 = vadd.f32 %v427, %v428
        %431 = vadd.xlane.f32.xlu0 %v430
        %v432 = vpop.xlane.xlu0 %431
        %v433 = vadd.f32 %v429, %v432
        %vm434 = vcmask 72768
        %435 = vst.msk [vmem:[#allocation2] sm:$0xff] %vm434, %v433
        %v436 = vld [vmem:[#allocation3] sm:$0xff]
        %v437 = vmul.f32 %v427, %v229
        %v438 = vmul.f32 %v428, %v230
        %v439 = vadd.f32 %v437, %v438
        %440 = vadd.xlane.f32.xlu0 %v439
        %v441 = vpop.xlane.xlu0 %440
        %v442 = vadd.f32 %v436, %v441
        %443 = vst.msk [vmem:[#allocation3] sm:$0xff] %vm434, %v442
        %v444 = vsub.f32 %v233, 15.0
        %v445 = vsub.f32 %v234, 15.0
        %v446 = vand.u32 2147483647, %v444
        %v447 = vand.u32 2147483647, %v445
        %v448 = vsub.f32 1.0, %v446
        %v449 = vsub.f32 1.0, %v447
        %v450 = vmax.f32 %v448, 0.0
        %v451 = vmax.f32 %v449, 0.0
        %v452 = vld [vmem:[#allocation2] sm:$0xff]
        %v453 = vadd.f32 %v450, %v451
        %454 = vadd.xlane.f32.xlu0 %v453
        %v455 = vpop.xlane.xlu0 %454
        %v456 = vadd.f32 %v452, %v455
        %vm457 = vcmask 80968
        %458 = vst.msk [vmem:[#allocation2] sm:$0xff] %vm457, %v456
        %v459 = vld [vmem:[#allocation3] sm:$0xff]
        %v460 = vmul.f32 %v450, %v229
        %v461 = vmul.f32 %v451, %v230
        %v462 = vadd.f32 %v460, %v461
        %463 = vadd.xlane.f32.xlu0 %v462
        %v464 = vpop.xlane.xlu0 %463
        %v465 = vadd.f32 %v459, %v464
        %466 = vst.msk [vmem:[#allocation3] sm:$0xff] %vm457, %v465
        %v467 = vsub.f32 %v233, 14.0
        %v468 = vsub.f32 %v234, 14.0
        %v469 = vand.u32 2147483647, %v467
        %v470 = vand.u32 2147483647, %v468
        %v471 = vsub.f32 1.0, %v469
        %v472 = vsub.f32 1.0, %v470
        %v473 = vmax.f32 %v471, 0.0
        %v474 = vmax.f32 %v472, 0.0
        %v475 = vld [vmem:[#allocation2] sm:$0xff]
        %v476 = vadd.f32 %v473, %v474
        %477 = vadd.xlane.f32.xlu0 %v476
        %v478 = vpop.xlane.xlu0 %477
        %v479 = vadd.f32 %v475, %v478
        %vm480 = vcmask 89168
        %481 = vst.msk [vmem:[#allocation2] sm:$0xff] %vm480, %v479
        %v482 = vld [vmem:[#allocation3] sm:$0xff]
        %v483 = vmul.f32 %v473, %v229
        %v484 = vmul.f32 %v474, %v230
        %v485 = vadd.f32 %v483, %v484
        %486 = vadd.xlane.f32.xlu0 %v485
        %v487 = vpop.xlane.xlu0 %486
        %v488 = vadd.f32 %v482, %v487
        %489 = vst.msk [vmem:[#allocation3] sm:$0xff] %vm480, %v488
        %v490 = vsub.f32 %v233, 13.0
        %v491 = vsub.f32 %v234, 13.0
        %v492 = vand.u32 2147483647, %v490
        %v493 = vand.u32 2147483647, %v491
        %v494 = vsub.f32 1.0, %v492
        %v495 = vsub.f32 1.0, %v493
        %v496 = vmax.f32 %v494, 0.0
        %v497 = vmax.f32 %v495, 0.0
        %v498 = vld [vmem:[#allocation2] sm:$0xff]
        %v499 = vadd.f32 %v496, %v497
        %500 = vadd.xlane.f32.xlu0 %v499
        %v501 = vpop.xlane.xlu0 %500
        %v502 = vadd.f32 %v498, %v501
        %vm503 = vcmask 97368
        %504 = vst.msk [vmem:[#allocation2] sm:$0xff] %vm503, %v502
        %v505 = vld [vmem:[#allocation3] sm:$0xff]
        %v506 = vmul.f32 %v496, %v229
        %v507 = vmul.f32 %v497, %v230
        %v508 = vadd.f32 %v506, %v507
        %509 = vadd.xlane.f32.xlu0 %v508
        %v510 = vpop.xlane.xlu0 %509
        %v511 = vadd.f32 %v505, %v510
        %512 = vst.msk [vmem:[#allocation3] sm:$0xff] %vm503, %v511
        %v513 = vsub.f32 %v233, 12.0
        %v514 = vsub.f32 %v234, 12.0
        %v515 = vand.u32 2147483647, %v513
        %v516 = vand.u32 2147483647, %v514
        %v517 = vsub.f32 1.0, %v515
        %v518 = vsub.f32 1.0, %v516
        %v519 = vmax.f32 %v517, 0.0
        %v520 = vmax.f32 %v518, 0.0
        %v521 = vld [vmem:[#allocation2] sm:$0xff]
        %v522 = vadd.f32 %v519, %v520
        %523 = vadd.xlane.f32.xlu0 %v522
        %v524 = vpop.xlane.xlu0 %523
        %v525 = vadd.f32 %v521, %v524
        %vm526 = vcmask 105568
        %527 = vst.msk [vmem:[#allocation2] sm:$0xff] %vm526, %v525
        %v528 = vld [vmem:[#allocation3] sm:$0xff]
        %v529 = vmul.f32 %v519, %v229
        %v530 = vmul.f32 %v520, %v230
        %v531 = vadd.f32 %v529, %v530
        %532 = vadd.xlane.f32.xlu0 %v531
        %v533 = vpop.xlane.xlu0 %532
        %v534 = vadd.f32 %v528, %v533
        %535 = vst.msk [vmem:[#allocation3] sm:$0xff] %vm526, %v534
        %v536 = vsub.f32 %v233, 11.0
        %v537 = vsub.f32 %v234, 11.0
        %v538 = vand.u32 2147483647, %v536
        %v539 = vand.u32 2147483647, %v537
        %v540 = vsub.f32 1.0, %v538
        %v541 = vsub.f32 1.0, %v539
        %v542 = vmax.f32 %v540, 0.0
        %v543 = vmax.f32 %v541, 0.0
        %v544 = vld [vmem:[#allocation2] sm:$0xff]
        %v545 = vadd.f32 %v542, %v543
        %546 = vadd.xlane.f32.xlu0 %v545
        %v547 = vpop.xlane.xlu0 %546
        %v548 = vadd.f32 %v544, %v547
        %vm549 = vcmask 113768
        %550 = vst.msk [vmem:[#allocation2] sm:$0xff] %vm549, %v548
        %v551 = vld [vmem:[#allocation3] sm:$0xff]
        %v552 = vmul.f32 %v542, %v229
        %v553 = vmul.f32 %v543, %v230
        %v554 = vadd.f32 %v552, %v553
        %555 = vadd.xlane.f32.xlu0 %v554
        %v556 = vpop.xlane.xlu0 %555
        %v557 = vadd.f32 %v551, %v556
        %558 = vst.msk [vmem:[#allocation3] sm:$0xff] %vm549, %v557
        %v559 = vsub.f32 %v233, 10.0
        %v560 = vsub.f32 %v234, 10.0
        %v561 = vand.u32 2147483647, %v559
        %v562 = vand.u32 2147483647, %v560
        %v563 = vsub.f32 1.0, %v561
        %v564 = vsub.f32 1.0, %v562
        %v565 = vmax.f32 %v563, 0.0
        %v566 = vmax.f32 %v564, 0.0
        %v567 = vld [vmem:[#allocation2] sm:$0xff]
        %v568 = vadd.f32 %v565, %v566
        %569 = vadd.xlane.f32.xlu0 %v568
        %v570 = vpop.xlane.xlu0 %569
        %v571 = vadd.f32 %v567, %v570
        %vm572 = vcmask 121968
        %573 = vst.msk [vmem:[#allocation2] sm:$0xff] %vm572, %v571
        %v574 = vld [vmem:[#allocation3] sm:$0xff]
        %v575 = vmul.f32 %v565, %v229
        %v576 = vmul.f32 %v566, %v230
        %v577 = vadd.f32 %v575, %v576
        %578 = vadd.xlane.f32.xlu0 %v577
        %v579 = vpop.xlane.xlu0 %578
        %v580 = vadd.f32 %v574, %v579
        %581 = vst.msk [vmem:[#allocation3] sm:$0xff] %vm572, %v580
        %v582 = vsub.f32 %v233, 9.0
        %v583 = vsub.f32 %v234, 9.0
        %v584 = vand.u32 2147483647, %v582
        %v585 = vand.u32 2147483647, %v583
        %v586 = vsub.f32 1.0, %v584
        %v587 = vsub.f32 1.0, %v585
        %v588 = vmax.f32 %v586, 0.0
        %v589 = vmax.f32 %v587, 0.0
        %v590 = vld [vmem:[#allocation2] sm:$0xff]
        %v591 = vadd.f32 %v588, %v589
        %592 = vadd.xlane.f32.xlu0 %v591
        %v593 = vpop.xlane.xlu0 %592
        %v594 = vadd.f32 %v590, %v593
        %vm595 = vcmask 130168
        %596 = vst.msk [vmem:[#allocation2] sm:$0xff] %vm595, %v594
        %v597 = vld [vmem:[#allocation3] sm:$0xff]
        %v598 = vmul.f32 %v588, %v229
        %v599 = vmul.f32 %v589, %v230
        %v600 = vadd.f32 %v598, %v599
        %601 = vadd.xlane.f32.xlu0 %v600
        %v602 = vpop.xlane.xlu0 %601
        %v603 = vadd.f32 %v597, %v602
        %604 = vst.msk [vmem:[#allocation3] sm:$0xff] %vm595, %v603
        %v605 = vsub.f32 %v233, 8.0
        %v606 = vsub.f32 %v234, 8.0
        %v607 = vand.u32 2147483647, %v605
        %v608 = vand.u32 2147483647, %v606
        %v609 = vsub.f32 1.0, %v607
        %v610 = vsub.f32 1.0, %v608
        %v611 = vmax.f32 %v609, 0.0
        %v612 = vmax.f32 %v610, 0.0
        %v613 = vld [vmem:[#allocation2] sm:$0xff]
        %v614 = vadd.f32 %v611, %v612
        %615 = vadd.xlane.f32.xlu0 %v614
        %v616 = vpop.xlane.xlu0 %615
        %v617 = vadd.f32 %v613, %v616
        %vm618 = vcmask 138368
        %619 = vst.msk [vmem:[#allocation2] sm:$0xff] %vm618, %v617
        %v620 = vld [vmem:[#allocation3] sm:$0xff]
        %v621 = vmul.f32 %v611, %v229
        %v622 = vmul.f32 %v612, %v230
        %v623 = vadd.f32 %v621, %v622
        %624 = vadd.xlane.f32.xlu0 %v623
        %v625 = vpop.xlane.xlu0 %624
        %v626 = vadd.f32 %v620, %v625
        %627 = vst.msk [vmem:[#allocation3] sm:$0xff] %vm618, %v626
        %v628 = vsub.f32 %v233, 7.0
        %v629 = vsub.f32 %v234, 7.0
        %v630 = vand.u32 2147483647, %v628
        %v631 = vand.u32 2147483647, %v629
        %v632 = vsub.f32 1.0, %v630
        %v633 = vsub.f32 1.0, %v631
        %v634 = vmax.f32 %v632, 0.0
        %v635 = vmax.f32 %v633, 0.0
        %v636 = vld [vmem:[#allocation2] sm:$0xff]
        %v637 = vadd.f32 %v634, %v635
        %638 = vadd.xlane.f32.xlu0 %v637
        %v639 = vpop.xlane.xlu0 %638
        %v640 = vadd.f32 %v636, %v639
        %vm641 = vcmask 146568
        %642 = vst.msk [vmem:[#allocation2] sm:$0xff] %vm641, %v640
        %v643 = vld [vmem:[#allocation3] sm:$0xff]
        %v644 = vmul.f32 %v634, %v229
        %v645 = vmul.f32 %v635, %v230
        %v646 = vadd.f32 %v644, %v645
        %647 = vadd.xlane.f32.xlu0 %v646
        %v648 = vpop.xlane.xlu0 %647
        %v649 = vadd.f32 %v643, %v648
        %650 = vst.msk [vmem:[#allocation3] sm:$0xff] %vm641, %v649
        %v651 = vsub.f32 %v233, 6.0
        %v652 = vsub.f32 %v234, 6.0
        %v653 = vand.u32 2147483647, %v651
        %v654 = vand.u32 2147483647, %v652
        %v655 = vsub.f32 1.0, %v653
        %v656 = vsub.f32 1.0, %v654
        %v657 = vmax.f32 %v655, 0.0
        %v658 = vmax.f32 %v656, 0.0
        %v659 = vld [vmem:[#allocation2] sm:$0xff]
        %v660 = vadd.f32 %v657, %v658
        %661 = vadd.xlane.f32.xlu0 %v660
        %v662 = vpop.xlane.xlu0 %661
        %v663 = vadd.f32 %v659, %v662
        %vm664 = vcmask 154768
        %665 = vst.msk [vmem:[#allocation2] sm:$0xff] %vm664, %v663
        %v666 = vld [vmem:[#allocation3] sm:$0xff]
        %v667 = vmul.f32 %v657, %v229
        %v668 = vmul.f32 %v658, %v230
        %v669 = vadd.f32 %v667, %v668
        %670 = vadd.xlane.f32.xlu0 %v669
        %v671 = vpop.xlane.xlu0 %670
        %v672 = vadd.f32 %v666, %v671
        %673 = vst.msk [vmem:[#allocation3] sm:$0xff] %vm664, %v672
        %v674 = vsub.f32 %v233, 5.0
        %v675 = vsub.f32 %v234, 5.0
        %v676 = vand.u32 2147483647, %v674
        %v677 = vand.u32 2147483647, %v675
        %v678 = vsub.f32 1.0, %v676
        %v679 = vsub.f32 1.0, %v677
        %v680 = vmax.f32 %v678, 0.0
        %v681 = vmax.f32 %v679, 0.0
        %v682 = vld [vmem:[#allocation2] sm:$0xff]
        %v683 = vadd.f32 %v680, %v681
        %684 = vadd.xlane.f32.xlu0 %v683
        %v685 = vpop.xlane.xlu0 %684
        %v686 = vadd.f32 %v682, %v685
        %vm687 = vcmask 162968
        %688 = vst.msk [vmem:[#allocation2] sm:$0xff] %vm687, %v686
        %v689 = vld [vmem:[#allocation3] sm:$0xff]
        %v690 = vmul.f32 %v680, %v229
        %v691 = vmul.f32 %v681, %v230
        %v692 = vadd.f32 %v690, %v691
        %693 = vadd.xlane.f32.xlu0 %v692
        %v694 = vpop.xlane.xlu0 %693
        %v695 = vadd.f32 %v689, %v694
        %696 = vst.msk [vmem:[#allocation3] sm:$0xff] %vm687, %v695
        %v697 = vsub.f32 %v233, 4.0
        %v698 = vsub.f32 %v234, 4.0
        %v699 = vand.u32 2147483647, %v697
        %v700 = vand.u32 2147483647, %v698
        %v701 = vsub.f32 1.0, %v699
        %v702 = vsub.f32 1.0, %v700
        %v703 = vmax.f32 %v701, 0.0
        %v704 = vmax.f32 %v702, 0.0
        %v705 = vld [vmem:[#allocation2] sm:$0xff]
        %v706 = vadd.f32 %v703, %v704
        %707 = vadd.xlane.f32.xlu0 %v706
        %v708 = vpop.xlane.xlu0 %707
        %v709 = vadd.f32 %v705, %v708
        %vm710 = vcmask 171168
        %711 = vst.msk [vmem:[#allocation2] sm:$0xff] %vm710, %v709
        %v712 = vld [vmem:[#allocation3] sm:$0xff]
        %v713 = vmul.f32 %v703, %v229
        %v714 = vmul.f32 %v704, %v230
        %v715 = vadd.f32 %v713, %v714
        %716 = vadd.xlane.f32.xlu0 %v715
        %v717 = vpop.xlane.xlu0 %716
        %v718 = vadd.f32 %v712, %v717
        %719 = vst.msk [vmem:[#allocation3] sm:$0xff] %vm710, %v718
        %v720 = vsub.f32 %v233, 3.0
        %v721 = vsub.f32 %v234, 3.0
        %v722 = vand.u32 2147483647, %v720
        %v723 = vand.u32 2147483647, %v721
        %v724 = vsub.f32 1.0, %v722
        %v725 = vsub.f32 1.0, %v723
        %v726 = vmax.f32 %v724, 0.0
        %v727 = vmax.f32 %v725, 0.0
        %v728 = vld [vmem:[#allocation2] sm:$0xff]
        %v729 = vadd.f32 %v726, %v727
        %730 = vadd.xlane.f32.xlu0 %v729
        %v731 = vpop.xlane.xlu0 %730
        %v732 = vadd.f32 %v728, %v731
        %vm733 = vcmask 179368
        %734 = vst.msk [vmem:[#allocation2] sm:$0xff] %vm733, %v732
        %v735 = vld [vmem:[#allocation3] sm:$0xff]
        %v736 = vmul.f32 %v726, %v229
        %v737 = vmul.f32 %v727, %v230
        %v738 = vadd.f32 %v736, %v737
        %739 = vadd.xlane.f32.xlu0 %v738
        %v740 = vpop.xlane.xlu0 %739
        %v741 = vadd.f32 %v735, %v740
        %742 = vst.msk [vmem:[#allocation3] sm:$0xff] %vm733, %v741
        %v743 = vsub.f32 %v233, 2.0
        %v744 = vsub.f32 %v234, 2.0
        %v745 = vand.u32 2147483647, %v743
        %v746 = vand.u32 2147483647, %v744
        %v747 = vsub.f32 1.0, %v745
        %v748 = vsub.f32 1.0, %v746
        %v749 = vmax.f32 %v747, 0.0
        %v750 = vmax.f32 %v748, 0.0
        %v751 = vld [vmem:[#allocation2] sm:$0xff]
        %v752 = vadd.f32 %v749, %v750
        %753 = vadd.xlane.f32.xlu0 %v752
        %v754 = vpop.xlane.xlu0 %753
        %v755 = vadd.f32 %v751, %v754
        %vm756 = vcmask 187568
        %757 = vst.msk [vmem:[#allocation2] sm:$0xff] %vm756, %v755
        %v758 = vld [vmem:[#allocation3] sm:$0xff]
        %v759 = vmul.f32 %v749, %v229
        %v760 = vmul.f32 %v750, %v230
        %v761 = vadd.f32 %v759, %v760
        %762 = vadd.xlane.f32.xlu0 %v761
        %v763 = vpop.xlane.xlu0 %762
        %v764 = vadd.f32 %v758, %v763
        %765 = vst.msk [vmem:[#allocation3] sm:$0xff] %vm756, %v764
        %v766 = vsub.f32 %v233, 1.0
        %v767 = vsub.f32 %v234, 1.0
        %v768 = vand.u32 2147483647, %v766
        %v769 = vand.u32 2147483647, %v767
        %v770 = vsub.f32 1.0, %v768
        %v771 = vsub.f32 1.0, %v769
        %v772 = vmax.f32 %v770, 0.0
        %v773 = vmax.f32 %v771, 0.0
        %v774 = vld [vmem:[#allocation2] sm:$0xff]
        %v775 = vadd.f32 %v772, %v773
        %776 = vadd.xlane.f32.xlu0 %v775
        %v777 = vpop.xlane.xlu0 %776
        %v778 = vadd.f32 %v774, %v777
        %vm779 = vcmask 195768
        %780 = vst.msk [vmem:[#allocation2] sm:$0xff] %vm779, %v778
        %v781 = vld [vmem:[#allocation3] sm:$0xff]
        %v782 = vmul.f32 %v772, %v229
        %v783 = vmul.f32 %v773, %v230
        %v784 = vadd.f32 %v782, %v783
        %785 = vadd.xlane.f32.xlu0 %v784
        %v786 = vpop.xlane.xlu0 %785
        %v787 = vadd.f32 %v781, %v786
        %788 = vst.msk [vmem:[#allocation3] sm:$0xff] %vm779, %v787
        %v789 = vsub.f32 1.0, %v233
        %v790 = vsub.f32 1.0, %v234
        %v791 = vmin.f32 %v789, 1.0
        %v792 = vmin.f32 %v790, 1.0
        %v793 = vmax.f32 %v791, 0.0
        %v794 = vmax.f32 %v792, 0.0
        %v795 = vld [vmem:[#allocation2] sm:$0xff]
        %v796 = vadd.f32 %v793, %v794
        %797 = vadd.xlane.f32.xlu0 %v796
        %v798 = vpop.xlane.xlu0 %797
        %v799 = vadd.f32 %v795, %v798
        %vm800 = vcmask 203968
        %801 = vst.msk [vmem:[#allocation2] sm:$0xff] %vm800, %v799
        %v802 = vld [vmem:[#allocation3] sm:$0xff]
        %v803 = vmul.f32 %v793, %v229
        %v804 = vmul.f32 %v794, %v230
        %v805 = vadd.f32 %v803, %v804
        %806 = vadd.xlane.f32.xlu0 %v805
        %v807 = vpop.xlane.xlu0 %806
        %v808 = vadd.f32 %v802, %v807
        %809 = vst.msk [vmem:[#allocation3] sm:$0xff] %vm800, %v808
        %p810 = scmp.eq.s32.totalorder %s24, 1
        // Predicated region
        $region41: #{tpu_custom_call.1} parent=27 // pred_check
          %p811 = pneg %p810
        $region42: #{tpu_custom_call.1} parent=27 // pred_check_branch
          %813 = sbr.rel (%p811) target = $region44
        $region43: #{tpu_custom_call.1} parent=27 // pred_region
          %v814 = vld [vmem:[#allocation2] sm:$0xff]
          %v815 = vld [vmem:[#allocation3] sm:$0xff]
          %v816 = vld [vmem:[#allocation4] sm:$0xff]
          %v817 = vadd.f32 %v814, 0.0
          %v818 = vadd.f32 %v815, 0.0
          %v819 = vsub.f32 %v815, 1.0
          %v820 = vmax.f32 %v819, 0.0
          %v821 = vsub.f32 %v814, 1.0
          %v822 = vmax.f32 %v821, 0.0
          %v823 = vadd.f32 %v822, 1e-08
          %v824 = vrcp.pop %v823
          %v825 = vmul.f32 %v820, %v824
          %v826 = vmul.f32 %v814, %v825
          %v827 = vsub.f32 1.0, %v825
          %v828 = vadd.f32 %v817, 1.0
          %v829 = vlog2.pop %v828
          %v830 = vmul.f32 %v829, 0.6931472
          %v831 = vmul.f32 %v827, %v830
          %v832 = vadd.f32 %v826, %v831
          %v833 = vmul.f32 %v815, %v832
          %v834 = vadd.f32 %v814, 1e-08
          %v835 = vrcp.pop %v834
          %v836 = vmul.f32 %v833, %v835
          %v837 = vadd.f32 %v836, 0.0
          %839 = vrot.lane.b32.xlu0 %v814, 127
          %v840 = vpop.permute.xlu0 %839
          %v842 = vadd.f32 %v817, %v840
          %844 = vrot.lane.b32.xlu0 %v815, 127
          %v845 = vpop.permute.xlu0 %844
          %v847 = vadd.f32 %v818, %v845
          %v848 = vadd.f32 %v818, 1.0
          %850 = vrot.lane.b32.xlu0 %v828, 1
          %v851 = vpop.permute.xlu0 %850
          %v853 = vmul.f32 %v825, %v851
          %855 = vrot.lane.b32.xlu0 %v853, 127
          %v856 = vpop.permute.xlu0 %855
          %v858 = vsub.f32 %v848, %v856
          %v859 = vadd.f32 %v842, 1.0
          %v860 = vrcp.pop %v828
          %v861 = vmul.f32 %v859, %v860
          %v862 = vlog2.pop %v861
          %v863 = vmul.f32 %v862, 0.6931472
          %v864 = vmul.f32 %v858, %v863
          %866 = vrot.lane.b32.xlu0 %v864, 1
          %v867 = vpop.permute.xlu0 %866
          %v869 = vadd.f32 %v826, %v867
          %v870 = vmul.f32 %v815, %v869
          %v871 = vmul.f32 %v870, %v835
          %873 = vrot.lane.b32.xlu0 %v871, 127
          %v874 = vpop.permute.xlu0 %873
          %v876 = vadd.f32 %v837, %v874
          %877 = vrot.lane.b32.xlu0 %v814, 126
          %v878 = vpop.permute.xlu0 %877
          %v880 = vadd.f32 %v842, %v878
          %881 = vrot.lane.b32.xlu0 %v815, 126
          %v882 = vpop.permute.xlu0 %881
          %v884 = vadd.f32 %v847, %v882
          %v885 = vadd.f32 %v847, 1.0
          %887 = vrot.lane.b32.xlu0 %v859, 2
          %v888 = vpop.permute.xlu0 %887
          %v890 = vmul.f32 %v825, %v888
          %892 = vrot.lane.b32.xlu0 %v890, 126
          %v893 = vpop.permute.xlu0 %892
          %v895 = vsub.f32 %v885, %v893
          %v896 = vadd.f32 %v880, 1.0
          %v897 = vrcp.pop %v859
          %v898 = vmul.f32 %v896, %v897
          %v899 = vlog2.pop %v898
          %v900 = vmul.f32 %v899, 0.6931472
          %v901 = vmul.f32 %v895, %v900
          %903 = vrot.lane.b32.xlu0 %v901, 2
          %v904 = vpop.permute.xlu0 %903
          %v906 = vadd.f32 %v826, %v904
          %v907 = vmul.f32 %v815, %v906
          %v908 = vmul.f32 %v907, %v835
          %910 = vrot.lane.b32.xlu0 %v908, 126
          %v911 = vpop.permute.xlu0 %910
          %v913 = vadd.f32 %v876, %v911
          %914 = vrot.lane.b32.xlu0 %v814, 125
          %v915 = vpop.permute.xlu0 %914
          %v917 = vadd.f32 %v880, %v915
          %918 = vrot.lane.b32.xlu0 %v815, 125
          %v919 = vpop.permute.xlu0 %918
          %v921 = vadd.f32 %v884, %v919
          %v922 = vadd.f32 %v884, 1.0
          %924 = vrot.lane.b32.xlu0 %v896, 3
          %v925 = vpop.permute.xlu0 %924
          %v927 = vmul.f32 %v825, %v925
          %929 = vrot.lane.b32.xlu0 %v927, 125
          %v930 = vpop.permute.xlu0 %929
          %v932 = vsub.f32 %v922, %v930
          %v933 = vadd.f32 %v917, 1.0
          %v934 = vrcp.pop %v896
          %v935 = vmul.f32 %v933, %v934
          %v936 = vlog2.pop %v935
          %v937 = vmul.f32 %v936, 0.6931472
          %v938 = vmul.f32 %v932, %v937
          %940 = vrot.lane.b32.xlu0 %v938, 3
          %v941 = vpop.permute.xlu0 %940
          %v943 = vadd.f32 %v826, %v941
          %v944 = vmul.f32 %v815, %v943
          %v945 = vmul.f32 %v944, %v835
          %947 = vrot.lane.b32.xlu0 %v945, 125
          %v948 = vpop.permute.xlu0 %947
          %v950 = vadd.f32 %v913, %v948
          %951 = vrot.lane.b32.xlu0 %v814, 124
          %v952 = vpop.permute.xlu0 %951
          %v954 = vadd.f32 %v917, %v952
          %955 = vrot.lane.b32.xlu0 %v815, 124
          %v956 = vpop.permute.xlu0 %955
          %v958 = vadd.f32 %v921, %v956
          %v959 = vadd.f32 %v921, 1.0
          %961 = vrot.lane.b32.xlu0 %v933, 4
          %v962 = vpop.permute.xlu0 %961
          %v964 = vmul.f32 %v825, %v962
          %966 = vrot.lane.b32.xlu0 %v964, 124
          %v967 = vpop.permute.xlu0 %966
          %v969 = vsub.f32 %v959, %v967
          %v970 = vadd.f32 %v954, 1.0
          %v971 = vrcp.pop %v933
          %v972 = vmul.f32 %v970, %v971
          %v973 = vlog2.pop %v972
          %v974 = vmul.f32 %v973, 0.6931472
          %v975 = vmul.f32 %v969, %v974
          %977 = vrot.lane.b32.xlu0 %v975, 4
          %v978 = vpop.permute.xlu0 %977
          %v980 = vadd.f32 %v826, %v978
          %v981 = vmul.f32 %v815, %v980
          %v982 = vmul.f32 %v981, %v835
          %984 = vrot.lane.b32.xlu0 %v982, 124
          %v985 = vpop.permute.xlu0 %984
          %v987 = vadd.f32 %v950, %v985
          %988 = vrot.lane.b32.xlu0 %v814, 123
          %v989 = vpop.permute.xlu0 %988
          %v991 = vadd.f32 %v954, %v989
          %992 = vrot.lane.b32.xlu0 %v815, 123
          %v993 = vpop.permute.xlu0 %992
          %v995 = vadd.f32 %v958, %v993
          %v996 = vadd.f32 %v958, 1.0
          %998 = vrot.lane.b32.xlu0 %v970, 5
          %v999 = vpop.permute.xlu0 %998
          %v1001 = vmul.f32 %v825, %v999
          %1003 = vrot.lane.b32.xlu0 %v1001, 123
          %v1004 = vpop.permute.xlu0 %1003
          %v1006 = vsub.f32 %v996, %v1004
          %v1007 = vadd.f32 %v991, 1.0
          %v1008 = vrcp.pop %v970
          %v1009 = vmul.f32 %v1007, %v1008
          %v1010 = vlog2.pop %v1009
          %v1011 = vmul.f32 %v1010, 0.6931472
          %v1012 = vmul.f32 %v1006, %v1011
          %1014 = vrot.lane.b32.xlu0 %v1012, 5
          %v1015 = vpop.permute.xlu0 %1014
          %v1017 = vadd.f32 %v826, %v1015
          %v1018 = vmul.f32 %v815, %v1017
          %v1019 = vmul.f32 %v1018, %v835
          %1021 = vrot.lane.b32.xlu0 %v1019, 123
          %v1022 = vpop.permute.xlu0 %1021
          %v1024 = vadd.f32 %v987, %v1022
          %1025 = vrot.lane.b32.xlu0 %v814, 122
          %v1026 = vpop.permute.xlu0 %1025
          %v1028 = vadd.f32 %v991, %v1026
          %1029 = vrot.lane.b32.xlu0 %v815, 122
          %v1030 = vpop.permute.xlu0 %1029
          %v1032 = vadd.f32 %v995, %v1030
          %v1033 = vadd.f32 %v995, 1.0
          %1035 = vrot.lane.b32.xlu0 %v1007, 6
          %v1036 = vpop.permute.xlu0 %1035
          %v1038 = vmul.f32 %v825, %v1036
          %1040 = vrot.lane.b32.xlu0 %v1038, 122
          %v1041 = vpop.permute.xlu0 %1040
          %v1043 = vsub.f32 %v1033, %v1041
          %v1044 = vadd.f32 %v1028, 1.0
          %v1045 = vrcp.pop %v1007
          %v1046 = vmul.f32 %v1044, %v1045
          %v1047 = vlog2.pop %v1046
          %v1048 = vmul.f32 %v1047, 0.6931472
          %v1049 = vmul.f32 %v1043, %v1048
          %1051 = vrot.lane.b32.xlu0 %v1049, 6
          %v1052 = vpop.permute.xlu0 %1051
          %v1054 = vadd.f32 %v826, %v1052
          %v1055 = vmul.f32 %v815, %v1054
          %v1056 = vmul.f32 %v1055, %v835
          %1058 = vrot.lane.b32.xlu0 %v1056, 122
          %v1059 = vpop.permute.xlu0 %1058
          %v1061 = vadd.f32 %v1024, %v1059
          %1062 = vrot.lane.b32.xlu0 %v814, 121
          %v1063 = vpop.permute.xlu0 %1062
          %v1065 = vadd.f32 %v1028, %v1063
          %1066 = vrot.lane.b32.xlu0 %v815, 121
          %v1067 = vpop.permute.xlu0 %1066
          %v1069 = vadd.f32 %v1032, %v1067
          %v1070 = vadd.f32 %v1032, 1.0
          %1072 = vrot.lane.b32.xlu0 %v1044, 7
          %v1073 = vpop.permute.xlu0 %1072
          %v1075 = vmul.f32 %v825, %v1073
          %1077 = vrot.lane.b32.xlu0 %v1075, 121
          %v1078 = vpop.permute.xlu0 %1077
          %v1080 = vsub.f32 %v1070, %v1078
          %v1081 = vadd.f32 %v1065, 1.0
          %v1082 = vrcp.pop %v1044
          %v1083 = vmul.f32 %v1081, %v1082
          %v1084 = vlog2.pop %v1083
          %v1085 = vmul.f32 %v1084, 0.6931472
          %v1086 = vmul.f32 %v1080, %v1085
          %1088 = vrot.lane.b32.xlu0 %v1086, 7
          %v1089 = vpop.permute.xlu0 %1088
          %v1091 = vadd.f32 %v826, %v1089
          %v1092 = vmul.f32 %v815, %v1091
          %v1093 = vmul.f32 %v1092, %v835
          %1095 = vrot.lane.b32.xlu0 %v1093, 121
          %v1096 = vpop.permute.xlu0 %1095
          %v1098 = vadd.f32 %v1061, %v1096
          %1099 = vrot.lane.b32.xlu0 %v814, 120
          %v1100 = vpop.permute.xlu0 %1099
          %v1102 = vadd.f32 %v1065, %v1100
          %1103 = vrot.lane.b32.xlu0 %v815, 120
          %v1104 = vpop.permute.xlu0 %1103
          %v1106 = vadd.f32 %v1069, %v1104
          %v1107 = vadd.f32 %v1069, 1.0
          %1109 = vrot.lane.b32.xlu0 %v1081, 8
          %v1110 = vpop.permute.xlu0 %1109
          %v1112 = vmul.f32 %v825, %v1110
          %1114 = vrot.lane.b32.xlu0 %v1112, 120
          %v1115 = vpop.permute.xlu0 %1114
          %v1117 = vsub.f32 %v1107, %v1115
          %v1118 = vadd.f32 %v1102, 1.0
          %v1119 = vrcp.pop %v1081
          %v1120 = vmul.f32 %v1118, %v1119
          %v1121 = vlog2.pop %v1120
          %v1122 = vmul.f32 %v1121, 0.6931472
          %v1123 = vmul.f32 %v1117, %v1122
          %1125 = vrot.lane.b32.xlu0 %v1123, 8
          %v1126 = vpop.permute.xlu0 %1125
          %v1128 = vadd.f32 %v826, %v1126
          %v1129 = vmul.f32 %v815, %v1128
          %v1130 = vmul.f32 %v1129, %v835
          %1132 = vrot.lane.b32.xlu0 %v1130, 120
          %v1133 = vpop.permute.xlu0 %1132
          %v1135 = vadd.f32 %v1098, %v1133
          %1136 = vrot.lane.b32.xlu0 %v814, 119
          %v1137 = vpop.permute.xlu0 %1136
          %v1139 = vadd.f32 %v1102, %v1137
          %1140 = vrot.lane.b32.xlu0 %v815, 119
          %v1141 = vpop.permute.xlu0 %1140
          %v1143 = vadd.f32 %v1106, %v1141
          %v1144 = vadd.f32 %v1106, 1.0
          %1146 = vrot.lane.b32.xlu0 %v1118, 9
          %v1147 = vpop.permute.xlu0 %1146
          %v1149 = vmul.f32 %v825, %v1147
          %1151 = vrot.lane.b32.xlu0 %v1149, 119
          %v1152 = vpop.permute.xlu0 %1151
          %v1154 = vsub.f32 %v1144, %v1152
          %v1155 = vadd.f32 %v1139, 1.0
          %v1156 = vrcp.pop %v1118
          %v1157 = vmul.f32 %v1155, %v1156
          %v1158 = vlog2.pop %v1157
          %v1159 = vmul.f32 %v1158, 0.6931472
          %v1160 = vmul.f32 %v1154, %v1159
          %1162 = vrot.lane.b32.xlu0 %v1160, 9
          %v1163 = vpop.permute.xlu0 %1162
          %v1165 = vadd.f32 %v826, %v1163
          %v1166 = vmul.f32 %v815, %v1165
          %v1167 = vmul.f32 %v1166, %v835
          %1169 = vrot.lane.b32.xlu0 %v1167, 119
          %v1170 = vpop.permute.xlu0 %1169
          %v1172 = vadd.f32 %v1135, %v1170
          %1173 = vrot.lane.b32.xlu0 %v814, 118
          %v1174 = vpop.permute.xlu0 %1173
          %v1176 = vadd.f32 %v1139, %v1174
          %1177 = vrot.lane.b32.xlu0 %v815, 118
          %v1178 = vpop.permute.xlu0 %1177
          %v1180 = vadd.f32 %v1143, %v1178
          %v1181 = vadd.f32 %v1143, 1.0
          %1183 = vrot.lane.b32.xlu0 %v1155, 10
          %v1184 = vpop.permute.xlu0 %1183
          %v1186 = vmul.f32 %v825, %v1184
          %1188 = vrot.lane.b32.xlu0 %v1186, 118
          %v1189 = vpop.permute.xlu0 %1188
          %v1191 = vsub.f32 %v1181, %v1189
          %v1192 = vadd.f32 %v1176, 1.0
          %v1193 = vrcp.pop %v1155
          %v1194 = vmul.f32 %v1192, %v1193
          %v1195 = vlog2.pop %v1194
          %v1196 = vmul.f32 %v1195, 0.6931472
          %v1197 = vmul.f32 %v1191, %v1196
          %1199 = vrot.lane.b32.xlu0 %v1197, 10
          %v1200 = vpop.permute.xlu0 %1199
          %v1202 = vadd.f32 %v826, %v1200
          %v1203 = vmul.f32 %v815, %v1202
          %v1204 = vmul.f32 %v1203, %v835
          %1206 = vrot.lane.b32.xlu0 %v1204, 118
          %v1207 = vpop.permute.xlu0 %1206
          %v1209 = vadd.f32 %v1172, %v1207
          %1210 = vrot.lane.b32.xlu0 %v814, 117
          %v1211 = vpop.permute.xlu0 %1210
          %v1213 = vadd.f32 %v1176, %v1211
          %1214 = vrot.lane.b32.xlu0 %v815, 117
          %v1215 = vpop.permute.xlu0 %1214
          %v1217 = vadd.f32 %v1180, %v1215
          %v1218 = vadd.f32 %v1180, 1.0
          %1220 = vrot.lane.b32.xlu0 %v1192, 11
          %v1221 = vpop.permute.xlu0 %1220
          %v1223 = vmul.f32 %v825, %v1221
          %1225 = vrot.lane.b32.xlu0 %v1223, 117
          %v1226 = vpop.permute.xlu0 %1225
          %v1228 = vsub.f32 %v1218, %v1226
          %v1229 = vadd.f32 %v1213, 1.0
          %v1230 = vrcp.pop %v1192
          %v1231 = vmul.f32 %v1229, %v1230
          %v1232 = vlog2.pop %v1231
          %v1233 = vmul.f32 %v1232, 0.6931472
          %v1234 = vmul.f32 %v1228, %v1233
          %1236 = vrot.lane.b32.xlu0 %v1234, 11
          %v1237 = vpop.permute.xlu0 %1236
          %v1239 = vadd.f32 %v826, %v1237
          %v1240 = vmul.f32 %v815, %v1239
          %v1241 = vmul.f32 %v1240, %v835
          %1243 = vrot.lane.b32.xlu0 %v1241, 117
          %v1244 = vpop.permute.xlu0 %1243
          %v1246 = vadd.f32 %v1209, %v1244
          %1247 = vrot.lane.b32.xlu0 %v814, 116
          %v1248 = vpop.permute.xlu0 %1247
          %v1250 = vadd.f32 %v1213, %v1248
          %1251 = vrot.lane.b32.xlu0 %v815, 116
          %v1252 = vpop.permute.xlu0 %1251
          %v1254 = vadd.f32 %v1217, %v1252
          %v1255 = vadd.f32 %v1217, 1.0
          %1257 = vrot.lane.b32.xlu0 %v1229, 12
          %v1258 = vpop.permute.xlu0 %1257
          %v1260 = vmul.f32 %v825, %v1258
          %1262 = vrot.lane.b32.xlu0 %v1260, 116
          %v1263 = vpop.permute.xlu0 %1262
          %v1265 = vsub.f32 %v1255, %v1263
          %v1266 = vadd.f32 %v1250, 1.0
          %v1267 = vrcp.pop %v1229
          %v1268 = vmul.f32 %v1266, %v1267
          %v1269 = vlog2.pop %v1268
          %v1270 = vmul.f32 %v1269, 0.6931472
          %v1271 = vmul.f32 %v1265, %v1270
          %1273 = vrot.lane.b32.xlu0 %v1271, 12
          %v1274 = vpop.permute.xlu0 %1273
          %v1276 = vadd.f32 %v826, %v1274
          %v1277 = vmul.f32 %v815, %v1276
          %v1278 = vmul.f32 %v1277, %v835
          %1280 = vrot.lane.b32.xlu0 %v1278, 116
          %v1281 = vpop.permute.xlu0 %1280
          %v1283 = vadd.f32 %v1246, %v1281
          %1284 = vrot.lane.b32.xlu0 %v814, 115
          %v1285 = vpop.permute.xlu0 %1284
          %v1287 = vadd.f32 %v1250, %v1285
          %1288 = vrot.lane.b32.xlu0 %v815, 115
          %v1289 = vpop.permute.xlu0 %1288
          %v1291 = vadd.f32 %v1254, %v1289
          %v1292 = vadd.f32 %v1254, 1.0
          %1294 = vrot.lane.b32.xlu0 %v1266, 13
          %v1295 = vpop.permute.xlu0 %1294
          %v1297 = vmul.f32 %v825, %v1295
          %1299 = vrot.lane.b32.xlu0 %v1297, 115
          %v1300 = vpop.permute.xlu0 %1299
          %v1302 = vsub.f32 %v1292, %v1300
          %v1303 = vadd.f32 %v1287, 1.0
          %v1304 = vrcp.pop %v1266
          %v1305 = vmul.f32 %v1303, %v1304
          %v1306 = vlog2.pop %v1305
          %v1307 = vmul.f32 %v1306, 0.6931472
          %v1308 = vmul.f32 %v1302, %v1307
          %1310 = vrot.lane.b32.xlu0 %v1308, 13
          %v1311 = vpop.permute.xlu0 %1310
          %v1313 = vadd.f32 %v826, %v1311
          %v1314 = vmul.f32 %v815, %v1313
          %v1315 = vmul.f32 %v1314, %v835
          %1317 = vrot.lane.b32.xlu0 %v1315, 115
          %v1318 = vpop.permute.xlu0 %1317
          %v1320 = vadd.f32 %v1283, %v1318
          %1321 = vrot.lane.b32.xlu0 %v814, 114
          %v1322 = vpop.permute.xlu0 %1321
          %v1324 = vadd.f32 %v1287, %v1322
          %1325 = vrot.lane.b32.xlu0 %v815, 114
          %v1326 = vpop.permute.xlu0 %1325
          %v1328 = vadd.f32 %v1291, %v1326
          %v1329 = vadd.f32 %v1291, 1.0
          %1331 = vrot.lane.b32.xlu0 %v1303, 14
          %v1332 = vpop.permute.xlu0 %1331
          %v1334 = vmul.f32 %v825, %v1332
          %1336 = vrot.lane.b32.xlu0 %v1334, 114
          %v1337 = vpop.permute.xlu0 %1336
          %v1339 = vsub.f32 %v1329, %v1337
          %v1340 = vadd.f32 %v1324, 1.0
          %v1341 = vrcp.pop %v1303
          %v1342 = vmul.f32 %v1340, %v1341
          %v1343 = vlog2.pop %v1342
          %v1344 = vmul.f32 %v1343, 0.6931472
          %v1345 = vmul.f32 %v1339, %v1344
          %1347 = vrot.lane.b32.xlu0 %v1345, 14
          %v1348 = vpop.permute.xlu0 %1347
          %v1350 = vadd.f32 %v826, %v1348
          %v1351 = vmul.f32 %v815, %v1350
          %v1352 = vmul.f32 %v1351, %v835
          %1354 = vrot.lane.b32.xlu0 %v1352, 114
          %v1355 = vpop.permute.xlu0 %1354
          %v1357 = vadd.f32 %v1320, %v1355
          %1358 = vrot.lane.b32.xlu0 %v814, 113
          %v1359 = vpop.permute.xlu0 %1358
          %v1361 = vadd.f32 %v1324, %v1359
          %1362 = vrot.lane.b32.xlu0 %v815, 113
          %v1363 = vpop.permute.xlu0 %1362
          %v1365 = vadd.f32 %v1328, %v1363
          %v1366 = vadd.f32 %v1328, 1.0
          %1368 = vrot.lane.b32.xlu0 %v1340, 15
          %v1369 = vpop.permute.xlu0 %1368
          %v1371 = vmul.f32 %v825, %v1369
          %1373 = vrot.lane.b32.xlu0 %v1371, 113
          %v1374 = vpop.permute.xlu0 %1373
          %v1376 = vsub.f32 %v1366, %v1374
          %v1377 = vadd.f32 %v1361, 1.0
          %v1378 = vrcp.pop %v1340
          %v1379 = vmul.f32 %v1377, %v1378
          %v1380 = vlog2.pop %v1379
          %v1381 = vmul.f32 %v1380, 0.6931472
          %v1382 = vmul.f32 %v1376, %v1381
          %1384 = vrot.lane.b32.xlu0 %v1382, 15
          %v1385 = vpop.permute.xlu0 %1384
          %v1387 = vadd.f32 %v826, %v1385
          %v1388 = vmul.f32 %v815, %v1387
          %v1389 = vmul.f32 %v1388, %v835
          %1391 = vrot.lane.b32.xlu0 %v1389, 113
          %v1392 = vpop.permute.xlu0 %1391
          %v1394 = vadd.f32 %v1357, %v1392
          %1395 = vrot.lane.b32.xlu0 %v814, 112
          %v1396 = vpop.permute.xlu0 %1395
          %v1398 = vadd.f32 %v1361, %v1396
          %1399 = vrot.lane.b32.xlu0 %v815, 112
          %v1400 = vpop.permute.xlu0 %1399
          %v1402 = vadd.f32 %v1365, %v1400
          %v1403 = vadd.f32 %v1365, 1.0
          %1405 = vrot.lane.b32.xlu0 %v1377, 16
          %v1406 = vpop.permute.xlu0 %1405
          %v1408 = vmul.f32 %v825, %v1406
          %1410 = vrot.lane.b32.xlu0 %v1408, 112
          %v1411 = vpop.permute.xlu0 %1410
          %v1413 = vsub.f32 %v1403, %v1411
          %v1414 = vadd.f32 %v1398, 1.0
          %v1415 = vrcp.pop %v1377
          %v1416 = vmul.f32 %v1414, %v1415
          %v1417 = vlog2.pop %v1416
          %v1418 = vmul.f32 %v1417, 0.6931472
          %v1419 = vmul.f32 %v1413, %v1418
          %1421 = vrot.lane.b32.xlu0 %v1419, 16
          %v1422 = vpop.permute.xlu0 %1421
          %v1424 = vadd.f32 %v826, %v1422
          %v1425 = vmul.f32 %v815, %v1424
          %v1426 = vmul.f32 %v1425, %v835
          %1428 = vrot.lane.b32.xlu0 %v1426, 112
          %v1429 = vpop.permute.xlu0 %1428
          %v1431 = vadd.f32 %v1394, %v1429
          %1432 = vrot.lane.b32.xlu0 %v814, 111
          %v1433 = vpop.permute.xlu0 %1432
          %v1435 = vadd.f32 %v1398, %v1433
          %1436 = vrot.lane.b32.xlu0 %v815, 111
          %v1437 = vpop.permute.xlu0 %1436
          %v1439 = vadd.f32 %v1402, %v1437
          %v1440 = vadd.f32 %v1402, 1.0
          %1442 = vrot.lane.b32.xlu0 %v1414, 17
          %v1443 = vpop.permute.xlu0 %1442
          %v1445 = vmul.f32 %v825, %v1443
          %1447 = vrot.lane.b32.xlu0 %v1445, 111
          %v1448 = vpop.permute.xlu0 %1447
          %v1450 = vsub.f32 %v1440, %v1448
          %v1451 = vadd.f32 %v1435, 1.0
          %v1452 = vrcp.pop %v1414
          %v1453 = vmul.f32 %v1451, %v1452
          %v1454 = vlog2.pop %v1453
          %v1455 = vmul.f32 %v1454, 0.6931472
          %v1456 = vmul.f32 %v1450, %v1455
          %1458 = vrot.lane.b32.xlu0 %v1456, 17
          %v1459 = vpop.permute.xlu0 %1458
          %v1461 = vadd.f32 %v826, %v1459
          %v1462 = vmul.f32 %v815, %v1461
          %v1463 = vmul.f32 %v1462, %v835
          %1465 = vrot.lane.b32.xlu0 %v1463, 111
          %v1466 = vpop.permute.xlu0 %1465
          %v1468 = vadd.f32 %v1431, %v1466
          %1469 = vrot.lane.b32.xlu0 %v814, 110
          %v1470 = vpop.permute.xlu0 %1469
          %v1472 = vadd.f32 %v1435, %v1470
          %1473 = vrot.lane.b32.xlu0 %v815, 110
          %v1474 = vpop.permute.xlu0 %1473
          %v1476 = vadd.f32 %v1439, %v1474
          %v1477 = vadd.f32 %v1439, 1.0
          %1479 = vrot.lane.b32.xlu0 %v1451, 18
          %v1480 = vpop.permute.xlu0 %1479
          %v1482 = vmul.f32 %v825, %v1480
          %1484 = vrot.lane.b32.xlu0 %v1482, 110
          %v1485 = vpop.permute.xlu0 %1484
          %v1487 = vsub.f32 %v1477, %v1485
          %v1488 = vadd.f32 %v1472, 1.0
          %v1489 = vrcp.pop %v1451
          %v1490 = vmul.f32 %v1488, %v1489
          %v1491 = vlog2.pop %v1490
          %v1492 = vmul.f32 %v1491, 0.6931472
          %v1493 = vmul.f32 %v1487, %v1492
          %1495 = vrot.lane.b32.xlu0 %v1493, 18
          %v1496 = vpop.permute.xlu0 %1495
          %v1498 = vadd.f32 %v826, %v1496
          %v1499 = vmul.f32 %v815, %v1498
          %v1500 = vmul.f32 %v1499, %v835
          %1502 = vrot.lane.b32.xlu0 %v1500, 110
          %v1503 = vpop.permute.xlu0 %1502
          %v1505 = vadd.f32 %v1468, %v1503
          %1506 = vrot.lane.b32.xlu0 %v814, 109
          %v1507 = vpop.permute.xlu0 %1506
          %v1509 = vadd.f32 %v1472, %v1507
          %1510 = vrot.lane.b32.xlu0 %v815, 109
          %v1511 = vpop.permute.xlu0 %1510
          %v1513 = vadd.f32 %v1476, %v1511
          %v1514 = vadd.f32 %v1476, 1.0
          %1516 = vrot.lane.b32.xlu0 %v1488, 19
          %v1517 = vpop.permute.xlu0 %1516
          %v1519 = vmul.f32 %v825, %v1517
          %1521 = vrot.lane.b32.xlu0 %v1519, 109
          %v1522 = vpop.permute.xlu0 %1521
          %v1524 = vsub.f32 %v1514, %v1522
          %v1525 = vadd.f32 %v1509, 1.0
          %v1526 = vrcp.pop %v1488
          %v1527 = vmul.f32 %v1525, %v1526
          %v1528 = vlog2.pop %v1527
          %v1529 = vmul.f32 %v1528, 0.6931472
          %v1530 = vmul.f32 %v1524, %v1529
          %1532 = vrot.lane.b32.xlu0 %v1530, 19
          %v1533 = vpop.permute.xlu0 %1532
          %v1535 = vadd.f32 %v826, %v1533
          %v1536 = vmul.f32 %v815, %v1535
          %v1537 = vmul.f32 %v1536, %v835
          %1539 = vrot.lane.b32.xlu0 %v1537, 109
          %v1540 = vpop.permute.xlu0 %1539
          %v1542 = vadd.f32 %v1505, %v1540
          %1543 = vrot.lane.b32.xlu0 %v814, 108
          %v1544 = vpop.permute.xlu0 %1543
          %v1546 = vadd.f32 %v1509, %v1544
          %1547 = vrot.lane.b32.xlu0 %v815, 108
          %v1548 = vpop.permute.xlu0 %1547
          %v1550 = vadd.f32 %v1513, %v1548
          %v1551 = vadd.f32 %v1513, 1.0
          %1553 = vrot.lane.b32.xlu0 %v1525, 20
          %v1554 = vpop.permute.xlu0 %1553
          %v1556 = vmul.f32 %v825, %v1554
          %1558 = vrot.lane.b32.xlu0 %v1556, 108
          %v1559 = vpop.permute.xlu0 %1558
          %v1561 = vsub.f32 %v1551, %v1559
          %v1562 = vadd.f32 %v1546, 1.0
          %v1563 = vrcp.pop %v1525
          %v1564 = vmul.f32 %v1562, %v1563
          %v1565 = vlog2.pop %v1564
          %v1566 = vmul.f32 %v1565, 0.6931472
          %v1567 = vmul.f32 %v1561, %v1566
          %1569 = vrot.lane.b32.xlu0 %v1567, 20
          %v1570 = vpop.permute.xlu0 %1569
          %v1572 = vadd.f32 %v826, %v1570
          %v1573 = vmul.f32 %v815, %v1572
          %v1574 = vmul.f32 %v1573, %v835
          %1576 = vrot.lane.b32.xlu0 %v1574, 108
          %v1577 = vpop.permute.xlu0 %1576
          %v1579 = vadd.f32 %v1542, %v1577
          %1580 = vrot.lane.b32.xlu0 %v814, 107
          %v1581 = vpop.permute.xlu0 %1580
          %v1583 = vadd.f32 %v1546, %v1581
          %1584 = vrot.lane.b32.xlu0 %v815, 107
          %v1585 = vpop.permute.xlu0 %1584
          %v1587 = vadd.f32 %v1550, %v1585
          %v1588 = vadd.f32 %v1550, 1.0
          %1590 = vrot.lane.b32.xlu0 %v1562, 21
          %v1591 = vpop.permute.xlu0 %1590
          %v1593 = vmul.f32 %v825, %v1591
          %1595 = vrot.lane.b32.xlu0 %v1593, 107
          %v1596 = vpop.permute.xlu0 %1595
          %v1598 = vsub.f32 %v1588, %v1596
          %v1599 = vadd.f32 %v1583, 1.0
          %v1600 = vrcp.pop %v1562
          %v1601 = vmul.f32 %v1599, %v1600
          %v1602 = vlog2.pop %v1601
          %v1603 = vmul.f32 %v1602, 0.6931472
          %v1604 = vmul.f32 %v1598, %v1603
          %1606 = vrot.lane.b32.xlu0 %v1604, 21
          %v1607 = vpop.permute.xlu0 %1606
          %v1609 = vadd.f32 %v826, %v1607
          %v1610 = vmul.f32 %v815, %v1609
          %v1611 = vmul.f32 %v1610, %v835
          %1613 = vrot.lane.b32.xlu0 %v1611, 107
          %v1614 = vpop.permute.xlu0 %1613
          %v1616 = vadd.f32 %v1579, %v1614
          %1617 = vrot.lane.b32.xlu0 %v814, 106
          %v1618 = vpop.permute.xlu0 %1617
          %v1620 = vadd.f32 %v1583, %v1618
          %1621 = vrot.lane.b32.xlu0 %v815, 106
          %v1622 = vpop.permute.xlu0 %1621
          %v1624 = vadd.f32 %v1587, %v1622
          %v1625 = vadd.f32 %v1587, 1.0
          %1627 = vrot.lane.b32.xlu0 %v1599, 22
          %v1628 = vpop.permute.xlu0 %1627
          %v1630 = vmul.f32 %v825, %v1628
          %1632 = vrot.lane.b32.xlu0 %v1630, 106
          %v1633 = vpop.permute.xlu0 %1632
          %v1635 = vsub.f32 %v1625, %v1633
          %v1636 = vadd.f32 %v1620, 1.0
          %v1637 = vrcp.pop %v1599
          %v1638 = vmul.f32 %v1636, %v1637
          %v1639 = vlog2.pop %v1638
          %v1640 = vmul.f32 %v1639, 0.6931472
          %v1641 = vmul.f32 %v1635, %v1640
          %1643 = vrot.lane.b32.xlu0 %v1641, 22
          %v1644 = vpop.permute.xlu0 %1643
          %v1646 = vadd.f32 %v826, %v1644
          %v1647 = vmul.f32 %v815, %v1646
          %v1648 = vmul.f32 %v1647, %v835
          %1650 = vrot.lane.b32.xlu0 %v1648, 106
          %v1651 = vpop.permute.xlu0 %1650
          %v1653 = vadd.f32 %v1616, %v1651
          %1654 = vrot.lane.b32.xlu0 %v814, 105
          %v1655 = vpop.permute.xlu0 %1654
          %v1657 = vadd.f32 %v1620, %v1655
          %1658 = vrot.lane.b32.xlu0 %v815, 105
          %v1659 = vpop.permute.xlu0 %1658
          %v1661 = vadd.f32 %v1624, %v1659
          %v1662 = vadd.f32 %v1624, 1.0
          %1664 = vrot.lane.b32.xlu0 %v1636, 23
          %v1665 = vpop.permute.xlu0 %1664
          %v1667 = vmul.f32 %v825, %v1665
          %1669 = vrot.lane.b32.xlu0 %v1667, 105
          %v1670 = vpop.permute.xlu0 %1669
          %v1672 = vsub.f32 %v1662, %v1670
          %v1673 = vadd.f32 %v1657, 1.0
          %v1674 = vrcp.pop %v1636
          %v1675 = vmul.f32 %v1673, %v1674
          %v1676 = vlog2.pop %v1675
          %v1677 = vmul.f32 %v1676, 0.6931472
          %v1678 = vmul.f32 %v1672, %v1677
          %1680 = vrot.lane.b32.xlu0 %v1678, 23
          %v1681 = vpop.permute.xlu0 %1680
          %v1683 = vadd.f32 %v826, %v1681
          %v1684 = vmul.f32 %v815, %v1683
          %v1685 = vmul.f32 %v1684, %v835
          %1687 = vrot.lane.b32.xlu0 %v1685, 105
          %v1688 = vpop.permute.xlu0 %1687
          %v1690 = vadd.f32 %v1653, %v1688
          %1691 = vrot.lane.b32.xlu0 %v814, 104
          %v1692 = vpop.permute.xlu0 %1691
          %v1694 = vadd.f32 %v1657, %v1692
          %v1695 = vadd.f32 %v1661, 1.0
          %1697 = vrot.lane.b32.xlu0 %v1673, 24
          %v1698 = vpop.permute.xlu0 %1697
          %v1700 = vmul.f32 %v825, %v1698
          %1702 = vrot.lane.b32.xlu0 %v1700, 104
          %v1703 = vpop.permute.xlu0 %1702
          %v1705 = vsub.f32 %v1695, %v1703
          %v1706 = vadd.f32 %v1694, 1.0
          %v1707 = vrcp.pop %v1673
          %v1708 = vmul.f32 %v1706, %v1707
          %v1709 = vlog2.pop %v1708
          %v1710 = vmul.f32 %v1709, 0.6931472
          %v1711 = vmul.f32 %v1705, %v1710
          %1713 = vrot.lane.b32.xlu0 %v1711, 24
          %v1714 = vpop.permute.xlu0 %1713
          %v1716 = vadd.f32 %v826, %v1714
          %v1717 = vmul.f32 %v815, %v1716
          %v1718 = vmul.f32 %v1717, %v835
          %1720 = vrot.lane.b32.xlu0 %v1718, 104
          %v1721 = vpop.permute.xlu0 %1720
          %v1723 = vadd.f32 %v1690, %v1721
          %v1724 = vrcp.pop %v816
          %v1725 = vmul.f32 %v1723, %v1724
          %1726 = vst.msk [vmem:[%s219] sm:$0xff] %vm240, %v1725
        $region44: #{tpu_custom_call.1} parent=27 // pred_fallthru
          _
        %p1727 = scmp.lt.s32.totalorder %s23, 1
        %s1728 = scalar_select %p1727, %s23, 1
        %s1729 = smul.addr %s1728, 8
        %s1730 = scalar_lea.vmem %s2, %s1729
        // Predicated region
        $region45: #{tpu_custom_call.1} parent=27 // pred_check
          %p1731 = pneg %p105
        $region46: #{tpu_custom_call.1} parent=27 // pred_check_branch
          %1733 = sbr.rel (%p1731) target = $region48
        $region47: #{tpu_custom_call.1} parent=27 // pred_region
          _
        $region48: #{tpu_custom_call.1} parent=27 // pred_fallthru
          _
      $region28: #{tpu_custom_call.1} parent=5 // pred_fallthru
        _
      %p1734 = scmp.le.s32.totalorder 2, %s14
      // Predicated region
      $region49: #{tpu_custom_call.1} parent=5 // pred_check
        %p1735 = pneg %p1734
      $region50: #{tpu_custom_call.1} parent=5 // pred_check_branch
        %1737 = sbr.rel (%p1735) target = $region52
      $region51: #{tpu_custom_call.1} parent=5 // pred_region
        %s1738 = ssub.s32 %s14, 2
        // Predicated region
        $region53: #{tpu_custom_call.1} parent=51 // pred_check
          %p1739 = pneg %p111
        $region54: #{tpu_custom_call.1} parent=51 // pred_check_branch
          %1741 = sbr.rel (%p1739) target = $region56
        $region55: #{tpu_custom_call.1} parent=51 // pred_region
          %p1742 = scmp.lt.s32.totalorder %s25, 1
          %s1743 = scalar_select %p1742, %s25, 1
          %s1744 = smul.addr %s1743, 8
          %s1745 = scalar_lea.vmem %s2, %s1744
        $region56: #{tpu_custom_call.1} parent=51 // pred_fallthru
          _
      $region52: #{tpu_custom_call.1} parent=5 // pred_fallthru
        _
    $region6: #{tpu_custom_call.1} parent=1 // loop_footer
      %s18 = sadd.s32 1, %s14
    $region7: #{tpu_custom_call.1} parent=1 // loop_footer_branch
      %13 = sbr.rel target = $region3
    $region8: #{tpu_custom_call.1} parent=1 // loop_exit
      _
    %1746 = vsyncpa [#allocation6], 1
    %s1747 = scalar_lea.sflag [#allocation6], 1
    %1748 = vsyncpa %s1747, 1
    %1749 = vsyncpa [#allocation8], 1
    %s1750 = scalar_lea.sflag [#allocation8], 1
    %1751 = vsyncpa %s1750, 1

</llo_original>
